<compile_context>
chip_gen: v7x
topology: tpu7x:2x2x1
jax: 0.10.0
libtpu: 0.0.40
codegen_flags: <defaults>
</compile_context>

<pallas_src>
import jax
import jax.numpy as jnp
from jax import lax
from jax.experimental import pallas as pl
from jax.experimental.pallas import tpu as pltpu


SEQ_LEN = 30
INPUT_DIM = 88
B_TILE = 8          # one full sublane group per grid step


# ---------------------------------------------------------------------------
# Fused kernel
# ---------------------------------------------------------------------------
def make_fused_kernel(T, B, H):
    H2, H3, H4 = 2 * H, 3 * H, 4 * H
    f32 = jnp.float32
    bf16 = jnp.bfloat16

    def gate_update(gates, c):
        # gate order [i | f | o | g] -> one sigmoid (3H lanes) + one tanh (H lanes)
        sig = jax.nn.sigmoid(gates[:, :H3])
        g = jnp.tanh(gates[:, H3:])
        c_new = sig[:, H:H2] * c + sig[:, :H] * g
        h_new = sig[:, H2:H3] * jnp.tanh(c_new)
        return h_new, c_new

    def kernel(x_ref, wih0_ref, b0_ref, wc_ref, b1_ref,
               w1_ref, bb1_ref, w2_ref, bb2_ref, w3_ref, bb3_ref,
               out_ref, xg_ref):
        # ---- hoisted layer-0 input-side matmul: one big MXU op over the seq ----
        xg_ref[...] = (
            jnp.dot(x_ref[...], wih0_ref[...], preferred_element_type=f32)
            + b0_ref[...])

        w_comb = wc_ref[...]                               # (2H, 8H) bf16, resident
        b1 = jnp.broadcast_to(b1_ref[...], (B, H4))        # hoisted broadcast

        zeros = jnp.zeros((B, H), f32)
        # Prologue (iteration 0): layer-0 step 0 only; h0_{-1}=0 so gates = xg[0].
        h0, c0 = gate_update(xg_ref[pl.ds(0, B), :], zeros)
        h1, c1 = zeros, zeros

        # Main interleaved loop: iteration t = layer-0 step t + layer-1 step t-1,
        # driven by ONE merged (B,2H)@(2H,8H) bf16 MXU matmul.
        def step(t, carry):
            h0, c0, h1, c1 = carry
            off = pl.multiple_of(t * B, B)
            lhs = jnp.concatenate([h0, h1], axis=1).astype(bf16)      # (B, 2H)
            comb = jnp.dot(lhs, w_comb, preferred_element_type=f32)   # (B, 8H)
            gates0 = comb[:, :H4] + xg_ref[pl.ds(off, B), :]
            gates1 = comb[:, H4:] + b1
            h0n, c0n = gate_update(gates0, c0)      # layer-0 step t
            h1n, c1n = gate_update(gates1, c1)      # layer-1 step t-1
            return (h0n, c0n, h1n, c1n)

        h0, c0, h1, c1 = lax.fori_loop(1, T, step, (h0, c0, h1, c1), unroll=True)

        # Epilogue (iteration T): layer-1 step T-1 only.
        lhs = jnp.concatenate([h0, h1], axis=1).astype(bf16)
        comb = jnp.dot(lhs, w_comb, preferred_element_type=f32)
        h1, _ = gate_update(comb[:, H4:] + b1, c1)

        # ---- head: relu(fc1) -> relu(fc2) -> fc3 -> softmax(dim=1) ----
        a1 = jnp.maximum(
            jnp.dot(h1.astype(bf16), w1_ref[...], preferred_element_type=f32)
            + bb1_ref[...], 0.0)
        a2 = jnp.maximum(
            jnp.dot(a1.astype(bf16), w2_ref[...], preferred_element_type=f32)
            + bb2_ref[...], 0.0)
        logits = (jnp.dot(a2.astype(bf16), w3_ref[...], preferred_element_type=f32)
                  + bb3_ref[...])
        m = jnp.max(logits, axis=1, keepdims=True)
        e = jnp.exp(logits - m)
        out_ref[...] = e / jnp.sum(e, axis=1, keepdims=True)   # exact softmax

    return kernel


def _full_spec(shape):
    return pl.BlockSpec(shape, lambda j: (0,) * len(shape))


def fused_forward(params, xt, n_tiles):
    """xt: (n_tiles, SEQ_LEN*B_TILE, INPUT_DIM) bf16, time-major inside each tile."""
    H = params["w_comb"].shape[0] // 2
    O = params["fc3"][0].shape[1]

    inputs = (xt, params["wih0"], params["b0"], params["w_comb"], params["b1"],
              *params["fc1"], *params["fc2"], *params["fc3"])

    in_specs = [pl.BlockSpec((None, SEQ_LEN * B_TILE, INPUT_DIM),
                             lambda j: (j, 0, 0))]
    in_specs += [_full_spec(a.shape) for a in inputs[1:]]

    kernel = make_fused_kernel(SEQ_LEN, B_TILE, H)
    return pl.pallas_call(
        kernel,
        out_shape=jax.ShapeDtypeStruct((n_tiles * B_TILE, O), jnp.float32),
        grid_spec=pltpu.PrefetchScalarGridSpec(
            num_scalar_prefetch=0,
            grid=(n_tiles,),
            in_specs=in_specs,
            out_specs=pl.BlockSpec((B_TILE, O), lambda j: (j, 0)),
            scratch_shapes=[
                pltpu.VMEM((SEQ_LEN * B_TILE, 4 * H), jnp.float32),  # xg scratch
            ],
        ),
        compiler_params=pltpu.CompilerParams(
            dimension_semantics=("parallel",)),
    )(*inputs)


# ---------------------------------------------------------------------------
# Parameters (PyTorch-style init, pre-transposed to [in, out], gate columns
# reordered (i,f,g,o)->(i,f,o,g), layer weights stacked for the merged matmul,
# MXU-side weights stored bf16, biases f32).
# ---------------------------------------------------------------------------
def init_params(key, input_dim, hidden_dim, output_dim, layers):
    assert layers == 2, "fused interleaved kernel is specialized to 2 LSTM layers"
    H = hidden_dim
    bound = hidden_dim ** -0.5

    def u(k, shape):
        return jax.random.uniform(k, shape, jnp.float32, -bound, bound)

    def reorder(w):  # (i,f,g,o) -> (i,f,o,g) along last axis
        return jnp.concatenate(
            [w[..., :2 * H], w[..., 3 * H:4 * H], w[..., 2 * H:3 * H]], axis=-1)

    key, *ks = jax.random.split(key, 9)
    wih0 = reorder(u(ks[0], (input_dim, 4 * H)))
    whh0 = reorder(u(ks[1], (H, 4 * H)))
    b0 = reorder(u(ks[2], (1, 4 * H)) + u(ks[3], (1, 4 * H)))
    wih1 = reorder(u(ks[4], (H, 4 * H)))
    whh1 = reorder(u(ks[5], (H, 4 * H)))
    b1 = reorder(u(ks[6], (1, 4 * H)) + u(ks[7], (1, 4 * H)))

    # Stacked per-step weight: [h0 | h1] @ [[Whh0, Wih1], [0, Whh1]]
    w_comb = jnp.concatenate(
        [jnp.concatenate([whh0, wih1], axis=1),
         jnp.concatenate([jnp.zeros((H, 4 * H), jnp.float32), whh1], axis=1)],
        axis=0)

    key, k1, k2, k3, k4, k5, k6 = jax.random.split(key, 7)
    return {
        "wih0": wih0.astype(jnp.bfloat16),
        "b0": b0,
        "w_comb": w_comb.astype(jnp.bfloat16),
        "b1": b1,
        "fc1": (u(k1, (H, H)).astype(jnp.bfloat16), u(k2, (1, H))),
        "fc2": (u(k3, (H, H)).astype(jnp.bfloat16), u(k4, (1, H))),
        "fc3": (u(k5, (H, output_dim)).astype(jnp.bfloat16),
                u(k6, (1, output_dim))),
    }


# ---------------------------------------------------------------------------
# Forward (matches Model.forward inference semantics)
# ---------------------------------------------------------------------------
@jax.jit
def forward(params, x):
    # x.view([-1, 30, 88])
    x = jnp.reshape(x, (-1, SEQ_LEN, INPUT_DIM)).astype(jnp.float32)
    batch = x.shape[0]
    b_pad = max(B_TILE, ((batch + B_TILE - 1) // B_TILE) * B_TILE)
    if b_pad != batch:
        x = jnp.pad(x, ((0, b_pad - batch), (0, 0), (0, 0)))
    n_tiles = b_pad // B_TILE
    # (n_tiles, B_TILE, T, D) -> time-major within each batch tile
    xt = x.reshape(n_tiles, B_TILE, SEQ_LEN, INPUT_DIM)
    xt = jnp.transpose(xt, (0, 2, 1, 3)).reshape(
        n_tiles, SEQ_LEN * B_TILE, INPUT_DIM).astype(jnp.bfloat16)
    out = fused_forward(params, xt, n_tiles)   # (b_pad, O), softmax rows
    return out[:batch]


if __name__ == "__main__":
    hidden_dim = 32
    output_dim = 10
    layers = 2
    batch = 2

    key = jax.random.PRNGKey(0)
    kp, kx = jax.random.split(key)
    params = init_params(kp, INPUT_DIM, hidden_dim, output_dim, layers)
    x = jax.random.normal(kx, (batch, SEQ_LEN, INPUT_DIM), jnp.float32)

    out = forward(params, x)
    out = jax.block_until_ready(out)
    assert out.shape == (batch, output_dim)
    # exact softmax -> rows sum to 1 within float rounding
    assert bool(jnp.all(jnp.abs(jnp.sum(out, axis=1) - 1.0) < 1e-3))
    assert bool(jnp.all(jnp.isfinite(out)))
    assert bool(jnp.all(out >= 0.0))
    print("KERNEL_OK")
</pallas_src>

<mosaic_0001>
module attributes {stable_mosaic.version = 11 : i64} {
  func.func @kernel(%arg0: i32, %arg1: memref<1x240x88xbf16, #tpu.memory_space<vmem>>, %arg2: memref<88x128xbf16, #tpu.memory_space<vmem>>, %arg3: memref<1x128xf32, #tpu.memory_space<vmem>>, %arg4: memref<64x256xbf16, #tpu.memory_space<vmem>>, %arg5: memref<1x128xf32, #tpu.memory_space<vmem>>, %arg6: memref<32x32xbf16, #tpu.memory_space<vmem>>, %arg7: memref<1x32xf32, #tpu.memory_space<vmem>>, %arg8: memref<32x32xbf16, #tpu.memory_space<vmem>>, %arg9: memref<1x32xf32, #tpu.memory_space<vmem>>, %arg10: memref<32x10xbf16, #tpu.memory_space<vmem>>, %arg11: memref<1x10xf32, #tpu.memory_space<vmem>>, %arg12: memref<8x10xf32, #tpu.memory_space<vmem>>, %arg13: memref<240x128xf32, #tpu.memory_space<vmem>>) attributes {dimension_semantics = [#tpu.dimension_semantics<parallel>], iteration_bounds = array<i64: 1>, scalar_prefetch = 0 : i64, scratch_operands = 1 : i64, tpu.core_type = #tpu.core_type<tc>, window_params = [{transform_indices = @transform_0, window_bounds = array<i64: 1, 240, 88>}, {pipeline_mode = #tpu.pipeline_mode<synchronous>, transform_indices = @transform_1, window_bounds = array<i64: 88, 128>}, {pipeline_mode = #tpu.pipeline_mode<synchronous>, transform_indices = @transform_2, window_bounds = array<i64: 1, 128>}, {pipeline_mode = #tpu.pipeline_mode<synchronous>, transform_indices = @transform_3, window_bounds = array<i64: 64, 256>}, {pipeline_mode = #tpu.pipeline_mode<synchronous>, transform_indices = @transform_4, window_bounds = array<i64: 1, 128>}, {pipeline_mode = #tpu.pipeline_mode<synchronous>, transform_indices = @transform_5, window_bounds = array<i64: 32, 32>}, {pipeline_mode = #tpu.pipeline_mode<synchronous>, transform_indices = @transform_6, window_bounds = array<i64: 1, 32>}, {pipeline_mode = #tpu.pipeline_mode<synchronous>, transform_indices = @transform_7, window_bounds = array<i64: 32, 32>}, {pipeline_mode = #tpu.pipeline_mode<synchronous>, transform_indices = @transform_8, window_bounds = array<i64: 1, 32>}, {pipeline_mode = #tpu.pipeline_mode<synchronous>, transform_indices = @transform_9, window_bounds = array<i64: 32, 10>}, {pipeline_mode = #tpu.pipeline_mode<synchronous>, transform_indices = @transform_10, window_bounds = array<i64: 1, 10>}, {transform_indices = @transform_11, window_bounds = array<i64: 8, 10>}]} {
    %c0 = arith.constant 0 : index
    %c0_0 = arith.constant 0 : index
    %c0_1 = arith.constant 0 : index
    %0 = vector.load %arg1[%c0, %c0_0, %c0_1] : memref<1x240x88xbf16, #tpu.memory_space<vmem>>, vector<1x240x88xbf16>
    %1 = vector.shape_cast %0 : vector<1x240x88xbf16> to vector<240x88xbf16>
    %c0_2 = arith.constant 0 : index
    %c0_3 = arith.constant 0 : index
    %2 = vector.load %arg2[%c0_2, %c0_3] : memref<88x128xbf16, #tpu.memory_space<vmem>>, vector<88x128xbf16>
    %cst = arith.constant dense<0.000000e+00> : vector<240x128xf32>
    %3 = tpu.matmul %1, %2, %cst {dimension_numbers = #tpu.dot_dimension_numbers<[1], [0], [0], [1], [0, 0, 1, 1], [], []>} : vector<240x88xbf16>, vector<88x128xbf16>, vector<240x128xf32> -> vector<240x128xf32>
    %c0_4 = arith.constant 0 : index
    %c0_5 = arith.constant 0 : index
    %4 = vector.load %arg3[%c0_4, %c0_5] : memref<1x128xf32, #tpu.memory_space<vmem>>, vector<1x128xf32>
    %5 = vector.broadcast %4 : vector<1x128xf32> to vector<240x128xf32>
    %6 = arith.addf %3, %5 : vector<240x128xf32>
    %c0_6 = arith.constant 0 : index
    %c0_7 = arith.constant 0 : index
    %7 = vector.load %arg13[%c0_6, %c0_7] : memref<240x128xf32, #tpu.memory_space<vmem>>, vector<240x128xf32>
    tpu.vector_store %arg13[%c0_6, %c0_7], %6 {strides = array<i32>} : memref<240x128xf32, #tpu.memory_space<vmem>>, vector<240x128xf32>,
    %c0_8 = arith.constant 0 : index
    %c0_9 = arith.constant 0 : index
    %8 = vector.load %arg4[%c0_8, %c0_9] : memref<64x256xbf16, #tpu.memory_space<vmem>>, vector<64x256xbf16>
    %c0_10 = arith.constant 0 : index
    %c0_11 = arith.constant 0 : index
    %9 = vector.load %arg5[%c0_10, %c0_11] : memref<1x128xf32, #tpu.memory_space<vmem>>, vector<1x128xf32>
    %10 = vector.shape_cast %9 : vector<1x128xf32> to vector<1x128xf32>
    %11 = vector.broadcast %10 : vector<1x128xf32> to vector<8x128xf32>
    %cst_12 = arith.constant 0.000000e+00 : f32
    %12 = vector.broadcast %cst_12 : f32 to vector<8x32xf32>
    %c0_13 = arith.constant 0 : index
    %c0_14 = arith.constant 0 : index
    %13 = vector.load %arg13[%c0_13, %c0_14] : memref<240x128xf32, #tpu.memory_space<vmem>>, vector<8x128xf32>
    %14 = vector.extract_strided_slice %13 {offsets = [0, 0], sizes = [8, 96], strides = [1, 1]} : vector<8x128xf32> to vector<8x96xf32>
    %15 = arith.negf %14 : vector<8x96xf32>
    %16 = math.exp %15 : vector<8x96xf32>
    %cst_15 = arith.constant 1.000000e+00 : f32
    %17 = vector.broadcast %cst_15 : f32 to vector<8x96xf32>
    %18 = arith.addf %17, %16 : vector<8x96xf32>
    %19 = arith.divf %17, %18 : vector<8x96xf32>
    %20 = vector.extract_strided_slice %13 {offsets = [0, 96], sizes = [8, 32], strides = [1, 1]} : vector<8x128xf32> to vector<8x32xf32>
    %21 = math.tanh %20 : vector<8x32xf32>
    %22 = vector.extract_strided_slice %19 {offsets = [0, 32], sizes = [8, 32], strides = [1, 1]} : vector<8x96xf32> to vector<8x32xf32>
    %23 = arith.mulf %22, %12 : vector<8x32xf32>
    %24 = vector.extract_strided_slice %19 {offsets = [0, 0], sizes = [8, 32], strides = [1, 1]} : vector<8x96xf32> to vector<8x32xf32>
    %25 = arith.mulf %24, %21 : vector<8x32xf32>
    %26 = arith.addf %23, %25 : vector<8x32xf32>
    %27 = vector.extract_strided_slice %19 {offsets = [0, 64], sizes = [8, 32], strides = [1, 1]} : vector<8x96xf32> to vector<8x32xf32>
    %28 = math.tanh %26 : vector<8x32xf32>
    %29 = arith.mulf %27, %28 : vector<8x32xf32>
    %c1_i32 = arith.constant 1 : i32
    %c8_i32 = arith.constant 8 : i32
    %30 = arith.muli %c1_i32, %c8_i32 : i32
    %31 = tpu.assume_multiple %30, 8 : i32
    %32 = tpu.concatenate %29, %12 in 1 : vector<8x32xf32>, vector<8x32xf32> -> vector<8x64xf32>
    %33 = arith.truncf %32 : vector<8x64xf32> to vector<8x64xbf16>
    %cst_16 = arith.constant dense<0.000000e+00> : vector<8x256xf32>
    %34 = tpu.matmul %33, %8, %cst_16 {dimension_numbers = #tpu.dot_dimension_numbers<[1], [0], [0], [1], [0, 0, 1, 1], [], []>} : vector<8x64xbf16>, vector<64x256xbf16>, vector<8x256xf32> -> vector<8x256xf32>
    %35 = vector.extract_strided_slice %34 {offsets = [0, 0], sizes = [8, 128], strides = [1, 1]} : vector<8x256xf32> to vector<8x128xf32>
    %36 = arith.index_cast %31 : i32 to index
    %c0_17 = arith.constant 0 : index
    %37 = vector.load %arg13[%36, %c0_17] : memref<240x128xf32, #tpu.memory_space<vmem>>, vector<8x128xf32>
    %38 = arith.addf %35, %37 : vector<8x128xf32>
    %39 = vector.extract_strided_slice %34 {offsets = [0, 128], sizes = [8, 128], strides = [1, 1]} : vector<8x256xf32> to vector<8x128xf32>
    %40 = arith.addf %39, %11 : vector<8x128xf32>
    %41 = vector.extract_strided_slice %38 {offsets = [0, 0], sizes = [8, 96], strides = [1, 1]} : vector<8x128xf32> to vector<8x96xf32>
    %42 = arith.negf %41 : vector<8x96xf32>
    %43 = math.exp %42 : vector<8x96xf32>
    %cst_18 = arith.constant 1.000000e+00 : f32
    %44 = vector.broadcast %cst_18 : f32 to vector<8x96xf32>
    %45 = arith.addf %44, %43 : vector<8x96xf32>
    %46 = arith.divf %44, %45 : vector<8x96xf32>
    %47 = vector.extract_strided_slice %38 {offsets = [0, 96], sizes = [8, 32], strides = [1, 1]} : vector<8x128xf32> to vector<8x32xf32>
    %48 = math.tanh %47 : vector<8x32xf32>
    %49 = vector.extract_strided_slice %46 {offsets = [0, 32], sizes = [8, 32], strides = [1, 1]} : vector<8x96xf32> to vector<8x32xf32>
    %50 = arith.mulf %49, %26 : vector<8x32xf32>
    %51 = vector.extract_strided_slice %46 {offsets = [0, 0], sizes = [8, 32], strides = [1, 1]} : vector<8x96xf32> to vector<8x32xf32>
    %52 = arith.mulf %51, %48 : vector<8x32xf32>
    %53 = arith.addf %50, %52 : vector<8x32xf32>
    %54 = vector.extract_strided_slice %46 {offsets = [0, 64], sizes = [8, 32], strides = [1, 1]} : vector<8x96xf32> to vector<8x32xf32>
    %55 = math.tanh %53 : vector<8x32xf32>
    %56 = arith.mulf %54, %55 : vector<8x32xf32>
    %57 = vector.extract_strided_slice %40 {offsets = [0, 0], sizes = [8, 96], strides = [1, 1]} : vector<8x128xf32> to vector<8x96xf32>
    %58 = arith.negf %57 : vector<8x96xf32>
    %59 = math.exp %58 : vector<8x96xf32>
    %cst_19 = arith.constant 1.000000e+00 : f32
    %60 = vector.broadcast %cst_19 : f32 to vector<8x96xf32>
    %61 = arith.addf %60, %59 : vector<8x96xf32>
    %62 = arith.divf %60, %61 : vector<8x96xf32>
    %63 = vector.extract_strided_slice %40 {offsets = [0, 96], sizes = [8, 32], strides = [1, 1]} : vector<8x128xf32> to vector<8x32xf32>
    %64 = math.tanh %63 : vector<8x32xf32>
    %65 = vector.extract_strided_slice %62 {offsets = [0, 32], sizes = [8, 32], strides = [1, 1]} : vector<8x96xf32> to vector<8x32xf32>
    %66 = arith.mulf %65, %12 : vector<8x32xf32>
    %67 = vector.extract_strided_slice %62 {offsets = [0, 0], sizes = [8, 32], strides = [1, 1]} : vector<8x96xf32> to vector<8x32xf32>
    %68 = arith.mulf %67, %64 : vector<8x32xf32>
    %69 = arith.addf %66, %68 : vector<8x32xf32>
    %70 = vector.extract_strided_slice %62 {offsets = [0, 64], sizes = [8, 32], strides = [1, 1]} : vector<8x96xf32> to vector<8x32xf32>
    %71 = math.tanh %69 : vector<8x32xf32>
    %72 = arith.mulf %70, %71 : vector<8x32xf32>
    %c2_i32 = arith.constant 2 : i32
    %c8_i32_20 = arith.constant 8 : i32
    %73 = arith.muli %c2_i32, %c8_i32_20 : i32
    %74 = tpu.assume_multiple %73, 8 : i32
    %75 = tpu.concatenate %56, %72 in 1 : vector<8x32xf32>, vector<8x32xf32> -> vector<8x64xf32>
    %76 = arith.truncf %75 : vector<8x64xf32> to vector<8x64xbf16>
    %cst_21 = arith.constant dense<0.000000e+00> : vector<8x256xf32>
    %77 = tpu.matmul %76, %8, %cst_21 {dimension_numbers = #tpu.dot_dimension_numbers<[1], [0], [0], [1], [0, 0, 1, 1], [], []>} : vector<8x64xbf16>, vector<64x256xbf16>, vector<8x256xf32> -> vector<8x256xf32>
    %78 = vector.extract_strided_slice %77 {offsets = [0, 0], sizes = [8, 128], strides = [1, 1]} : vector<8x256xf32> to vector<8x128xf32>
    %79 = arith.index_cast %74 : i32 to index
    %c0_22 = arith.constant 0 : index
    %80 = vector.load %arg13[%79, %c0_22] : memref<240x128xf32, #tpu.memory_space<vmem>>, vector<8x128xf32>
    %81 = arith.addf %78, %80 : vector<8x128xf32>
    %82 = vector.extract_strided_slice %77 {offsets = [0, 128], sizes = [8, 128], strides = [1, 1]} : vector<8x256xf32> to vector<8x128xf32>
    %83 = arith.addf %82, %11 : vector<8x128xf32>
    %84 = vector.extract_strided_slice %81 {offsets = [0, 0], sizes = [8, 96], strides = [1, 1]} : vector<8x128xf32> to vector<8x96xf32>
    %85 = arith.negf %84 : vector<8x96xf32>
    %86 = math.exp %85 : vector<8x96xf32>
    %cst_23 = arith.constant 1.000000e+00 : f32
    %87 = vector.broadcast %cst_23 : f32 to vector<8x96xf32>
    %88 = arith.addf %87, %86 : vector<8x96xf32>
    %89 = arith.divf %87, %88 : vector<8x96xf32>
    %90 = vector.extract_strided_slice %81 {offsets = [0, 96], sizes = [8, 32], strides = [1, 1]} : vector<8x128xf32> to vector<8x32xf32>
    %91 = math.tanh %90 : vector<8x32xf32>
    %92 = vector.extract_strided_slice %89 {offsets = [0, 32], sizes = [8, 32], strides = [1, 1]} : vector<8x96xf32> to vector<8x32xf32>
    %93 = arith.mulf %92, %53 : vector<8x32xf32>
    %94 = vector.extract_strided_slice %89 {offsets = [0, 0], sizes = [8, 32], strides = [1, 1]} : vector<8x96xf32> to vector<8x32xf32>
    %95 = arith.mulf %94, %91 : vector<8x32xf32>
    %96 = arith.addf %93, %95 : vector<8x32xf32>
    %97 = vector.extract_strided_slice %89 {offsets = [0, 64], sizes = [8, 32], strides = [1, 1]} : vector<8x96xf32> to vector<8x32xf32>
    %98 = math.tanh %96 : vector<8x32xf32>
    %99 = arith.mulf %97, %98 : vector<8x32xf32>
    %100 = vector.extract_strided_slice %83 {offsets = [0, 0], sizes = [8, 96], strides = [1, 1]} : vector<8x128xf32> to vector<8x96xf32>
    %101 = arith.negf %100 : vector<8x96xf32>
    %102 = math.exp %101 : vector<8x96xf32>
    %cst_24 = arith.constant 1.000000e+00 : f32
    %103 = vector.broadcast %cst_24 : f32 to vector<8x96xf32>
    %104 = arith.addf %103, %102 : vector<8x96xf32>
    %105 = arith.divf %103, %104 : vector<8x96xf32>
    %106 = vector.extract_strided_slice %83 {offsets = [0, 96], sizes = [8, 32], strides = [1, 1]} : vector<8x128xf32> to vector<8x32xf32>
    %107 = math.tanh %106 : vector<8x32xf32>
    %108 = vector.extract_strided_slice %105 {offsets = [0, 32], sizes = [8, 32], strides = [1, 1]} : vector<8x96xf32> to vector<8x32xf32>
    %109 = arith.mulf %108, %69 : vector<8x32xf32>
    %110 = vector.extract_strided_slice %105 {offsets = [0, 0], sizes = [8, 32], strides = [1, 1]} : vector<8x96xf32> to vector<8x32xf32>
    %111 = arith.mulf %110, %107 : vector<8x32xf32>
    %112 = arith.addf %109, %111 : vector<8x32xf32>
    %113 = vector.extract_strided_slice %105 {offsets = [0, 64], sizes = [8, 32], strides = [1, 1]} : vector<8x96xf32> to vector<8x32xf32>
    %114 = math.tanh %112 : vector<8x32xf32>
    %115 = arith.mulf %113, %114 : vector<8x32xf32>
    %c3_i32 = arith.constant 3 : i32
    %c8_i32_25 = arith.constant 8 : i32
    %116 = arith.muli %c3_i32, %c8_i32_25 : i32
    %117 = tpu.assume_multiple %116, 8 : i32
    %118 = tpu.concatenate %99, %115 in 1 : vector<8x32xf32>, vector<8x32xf32> -> vector<8x64xf32>
    %119 = arith.truncf %118 : vector<8x64xf32> to vector<8x64xbf16>
    %cst_26 = arith.constant dense<0.000000e+00> : vector<8x256xf32>
    %120 = tpu.matmul %119, %8, %cst_26 {dimension_numbers = #tpu.dot_dimension_numbers<[1], [0], [0], [1], [0, 0, 1, 1], [], []>} : vector<8x64xbf16>, vector<64x256xbf16>, vector<8x256xf32> -> vector<8x256xf32>
    %121 = vector.extract_strided_slice %120 {offsets = [0, 0], sizes = [8, 128], strides = [1, 1]} : vector<8x256xf32> to vector<8x128xf32>
    %122 = arith.index_cast %117 : i32 to index
    %c0_27 = arith.constant 0 : index
    %123 = vector.load %arg13[%122, %c0_27] : memref<240x128xf32, #tpu.memory_space<vmem>>, vector<8x128xf32>
    %124 = arith.addf %121, %123 : vector<8x128xf32>
    %125 = vector.extract_strided_slice %120 {offsets = [0, 128], sizes = [8, 128], strides = [1, 1]} : vector<8x256xf32> to vector<8x128xf32>
    %126 = arith.addf %125, %11 : vector<8x128xf32>
    %127 = vector.extract_strided_slice %124 {offsets = [0, 0], sizes = [8, 96], strides = [1, 1]} : vector<8x128xf32> to vector<8x96xf32>
    %128 = arith.negf %127 : vector<8x96xf32>
    %129 = math.exp %128 : vector<8x96xf32>
    %cst_28 = arith.constant 1.000000e+00 : f32
    %130 = vector.broadcast %cst_28 : f32 to vector<8x96xf32>
    %131 = arith.addf %130, %129 : vector<8x96xf32>
    %132 = arith.divf %130, %131 : vector<8x96xf32>
    %133 = vector.extract_strided_slice %124 {offsets = [0, 96], sizes = [8, 32], strides = [1, 1]} : vector<8x128xf32> to vector<8x32xf32>
    %134 = math.tanh %133 : vector<8x32xf32>
    %135 = vector.extract_strided_slice %132 {offsets = [0, 32], sizes = [8, 32], strides = [1, 1]} : vector<8x96xf32> to vector<8x32xf32>
    %136 = arith.mulf %135, %96 : vector<8x32xf32>
    %137 = vector.extract_strided_slice %132 {offsets = [0, 0], sizes = [8, 32], strides = [1, 1]} : vector<8x96xf32> to vector<8x32xf32>
    %138 = arith.mulf %137, %134 : vector<8x32xf32>
    %139 = arith.addf %136, %138 : vector<8x32xf32>
    %140 = vector.extract_strided_slice %132 {offsets = [0, 64], sizes = [8, 32], strides = [1, 1]} : vector<8x96xf32> to vector<8x32xf32>
    %141 = math.tanh %139 : vector<8x32xf32>
    %142 = arith.mulf %140, %141 : vector<8x32xf32>
    %143 = vector.extract_strided_slice %126 {offsets = [0, 0], sizes = [8, 96], strides = [1, 1]} : vector<8x128xf32> to vector<8x96xf32>
    %144 = arith.negf %143 : vector<8x96xf32>
    %145 = math.exp %144 : vector<8x96xf32>
    %cst_29 = arith.constant 1.000000e+00 : f32
    %146 = vector.broadcast %cst_29 : f32 to vector<8x96xf32>
    %147 = arith.addf %146, %145 : vector<8x96xf32>
    %148 = arith.divf %146, %147 : vector<8x96xf32>
    %149 = vector.extract_strided_slice %126 {offsets = [0, 96], sizes = [8, 32], strides = [1, 1]} : vector<8x128xf32> to vector<8x32xf32>
    %150 = math.tanh %149 : vector<8x32xf32>
    %151 = vector.extract_strided_slice %148 {offsets = [0, 32], sizes = [8, 32], strides = [1, 1]} : vector<8x96xf32> to vector<8x32xf32>
    %152 = arith.mulf %151, %112 : vector<8x32xf32>
    %153 = vector.extract_strided_slice %148 {offsets = [0, 0], sizes = [8, 32], strides = [1, 1]} : vector<8x96xf32> to vector<8x32xf32>
    %154 = arith.mulf %153, %150 : vector<8x32xf32>
    %155 = arith.addf %152, %154 : vector<8x32xf32>
    %156 = vector.extract_strided_slice %148 {offsets = [0, 64], sizes = [8, 32], strides = [1, 1]} : vector<8x96xf32> to vector<8x32xf32>
    %157 = math.tanh %155 : vector<8x32xf32>
    %158 = arith.mulf %156, %157 : vector<8x32xf32>
    %c4_i32 = arith.constant 4 : i32
    %c8_i32_30 = arith.constant 8 : i32
    %159 = arith.muli %c4_i32, %c8_i32_30 : i32
    %160 = tpu.assume_multiple %159, 8 : i32
    %161 = tpu.concatenate %142, %158 in 1 : vector<8x32xf32>, vector<8x32xf32> -> vector<8x64xf32>
    %162 = arith.truncf %161 : vector<8x64xf32> to vector<8x64xbf16>
    %cst_31 = arith.constant dense<0.000000e+00> : vector<8x256xf32>
    %163 = tpu.matmul %162, %8, %cst_31 {dimension_numbers = #tpu.dot_dimension_numbers<[1], [0], [0], [1], [0, 0, 1, 1], [], []>} : vector<8x64xbf16>, vector<64x256xbf16>, vector<8x256xf32> -> vector<8x256xf32>
    %164 = vector.extract_strided_slice %163 {offsets = [0, 0], sizes = [8, 128], strides = [1, 1]} : vector<8x256xf32> to vector<8x128xf32>
    %165 = arith.index_cast %160 : i32 to index
    %c0_32 = arith.constant 0 : index
    %166 = vector.load %arg13[%165, %c0_32] : memref<240x128xf32, #tpu.memory_space<vmem>>, vector<8x128xf32>
    %167 = arith.addf %164, %166 : vector<8x128xf32>
    %168 = vector.extract_strided_slice %163 {offsets = [0, 128], sizes = [8, 128], strides = [1, 1]} : vector<8x256xf32> to vector<8x128xf32>
    %169 = arith.addf %168, %11 : vector<8x128xf32>
    %170 = vector.extract_strided_slice %167 {offsets = [0, 0], sizes = [8, 96], strides = [1, 1]} : vector<8x128xf32> to vector<8x96xf32>
    %171 = arith.negf %170 : vector<8x96xf32>
    %172 = math.exp %171 : vector<8x96xf32>
    %cst_33 = arith.constant 1.000000e+00 : f32
    %173 = vector.broadcast %cst_33 : f32 to vector<8x96xf32>
    %174 = arith.addf %173, %172 : vector<8x96xf32>
    %175 = arith.divf %173, %174 : vector<8x96xf32>
    %176 = vector.extract_strided_slice %167 {offsets = [0, 96], sizes = [8, 32], strides = [1, 1]} : vector<8x128xf32> to vector<8x32xf32>
    %177 = math.tanh %176 : vector<8x32xf32>
    %178 = vector.extract_strided_slice %175 {offsets = [0, 32], sizes = [8, 32], strides = [1, 1]} : vector<8x96xf32> to vector<8x32xf32>
    %179 = arith.mulf %178, %139 : vector<8x32xf32>
    %180 = vector.extract_strided_slice %175 {offsets = [0, 0], sizes = [8, 32], strides = [1, 1]} : vector<8x96xf32> to vector<8x32xf32>
    %181 = arith.mulf %180, %177 : vector<8x32xf32>
    %182 = arith.addf %179, %181 : vector<8x32xf32>
    %183 = vector.extract_strided_slice %175 {offsets = [0, 64], sizes = [8, 32], strides = [1, 1]} : vector<8x96xf32> to vector<8x32xf32>
    %184 = math.tanh %182 : vector<8x32xf32>
    %185 = arith.mulf %183, %184 : vector<8x32xf32>
    %186 = vector.extract_strided_slice %169 {offsets = [0, 0], sizes = [8, 96], strides = [1, 1]} : vector<8x128xf32> to vector<8x96xf32>
    %187 = arith.negf %186 : vector<8x96xf32>
    %188 = math.exp %187 : vector<8x96xf32>
    %cst_34 = arith.constant 1.000000e+00 : f32
    %189 = vector.broadcast %cst_34 : f32 to vector<8x96xf32>
    %190 = arith.addf %189, %188 : vector<8x96xf32>
    %191 = arith.divf %189, %190 : vector<8x96xf32>
    %192 = vector.extract_strided_slice %169 {offsets = [0, 96], sizes = [8, 32], strides = [1, 1]} : vector<8x128xf32> to vector<8x32xf32>
    %193 = math.tanh %192 : vector<8x32xf32>
    %194 = vector.extract_strided_slice %191 {offsets = [0, 32], sizes = [8, 32], strides = [1, 1]} : vector<8x96xf32> to vector<8x32xf32>
    %195 = arith.mulf %194, %155 : vector<8x32xf32>
    %196 = vector.extract_strided_slice %191 {offsets = [0, 0], sizes = [8, 32], strides = [1, 1]} : vector<8x96xf32> to vector<8x32xf32>
    %197 = arith.mulf %196, %193 : vector<8x32xf32>
    %198 = arith.addf %195, %197 : vector<8x32xf32>
    %199 = vector.extract_strided_slice %191 {offsets = [0, 64], sizes = [8, 32], strides = [1, 1]} : vector<8x96xf32> to vector<8x32xf32>
    %200 = math.tanh %198 : vector<8x32xf32>
    %201 = arith.mulf %199, %200 : vector<8x32xf32>
    %c5_i32 = arith.constant 5 : i32
    %c8_i32_35 = arith.constant 8 : i32
    %202 = arith.muli %c5_i32, %c8_i32_35 : i32
    %203 = tpu.assume_multiple %202, 8 : i32
    %204 = tpu.concatenate %185, %201 in 1 : vector<8x32xf32>, vector<8x32xf32> -> vector<8x64xf32>
    %205 = arith.truncf %204 : vector<8x64xf32> to vector<8x64xbf16>
    %cst_36 = arith.constant dense<0.000000e+00> : vector<8x256xf32>
    %206 = tpu.matmul %205, %8, %cst_36 {dimension_numbers = #tpu.dot_dimension_numbers<[1], [0], [0], [1], [0, 0, 1, 1], [], []>} : vector<8x64xbf16>, vector<64x256xbf16>, vector<8x256xf32> -> vector<8x256xf32>
    %207 = vector.extract_strided_slice %206 {offsets = [0, 0], sizes = [8, 128], strides = [1, 1]} : vector<8x256xf32> to vector<8x128xf32>
    %208 = arith.index_cast %203 : i32 to index
    %c0_37 = arith.constant 0 : index
    %209 = vector.load %arg13[%208, %c0_37] : memref<240x128xf32, #tpu.memory_space<vmem>>, vector<8x128xf32>
    %210 = arith.addf %207, %209 : vector<8x128xf32>
    %211 = vector.extract_strided_slice %206 {offsets = [0, 128], sizes = [8, 128], strides = [1, 1]} : vector<8x256xf32> to vector<8x128xf32>
    %212 = arith.addf %211, %11 : vector<8x128xf32>
    %213 = vector.extract_strided_slice %210 {offsets = [0, 0], sizes = [8, 96], strides = [1, 1]} : vector<8x128xf32> to vector<8x96xf32>
    %214 = arith.negf %213 : vector<8x96xf32>
    %215 = math.exp %214 : vector<8x96xf32>
    %cst_38 = arith.constant 1.000000e+00 : f32
    %216 = vector.broadcast %cst_38 : f32 to vector<8x96xf32>
    %217 = arith.addf %216, %215 : vector<8x96xf32>
    %218 = arith.divf %216, %217 : vector<8x96xf32>
    %219 = vector.extract_strided_slice %210 {offsets = [0, 96], sizes = [8, 32], strides = [1, 1]} : vector<8x128xf32> to vector<8x32xf32>
    %220 = math.tanh %219 : vector<8x32xf32>
    %221 = vector.extract_strided_slice %218 {offsets = [0, 32], sizes = [8, 32], strides = [1, 1]} : vector<8x96xf32> to vector<8x32xf32>
    %222 = arith.mulf %221, %182 : vector<8x32xf32>
    %223 = vector.extract_strided_slice %218 {offsets = [0, 0], sizes = [8, 32], strides = [1, 1]} : vector<8x96xf32> to vector<8x32xf32>
    %224 = arith.mulf %223, %220 : vector<8x32xf32>
    %225 = arith.addf %222, %224 : vector<8x32xf32>
    %226 = vector.extract_strided_slice %218 {offsets = [0, 64], sizes = [8, 32], strides = [1, 1]} : vector<8x96xf32> to vector<8x32xf32>
    %227 = math.tanh %225 : vector<8x32xf32>
    %228 = arith.mulf %226, %227 : vector<8x32xf32>
    %229 = vector.extract_strided_slice %212 {offsets = [0, 0], sizes = [8, 96], strides = [1, 1]} : vector<8x128xf32> to vector<8x96xf32>
    %230 = arith.negf %229 : vector<8x96xf32>
    %231 = math.exp %230 : vector<8x96xf32>
    %cst_39 = arith.constant 1.000000e+00 : f32
    %232 = vector.broadcast %cst_39 : f32 to vector<8x96xf32>
    %233 = arith.addf %232, %231 : vector<8x96xf32>
    %234 = arith.divf %232, %233 : vector<8x96xf32>
    %235 = vector.extract_strided_slice %212 {offsets = [0, 96], sizes = [8, 32], strides = [1, 1]} : vector<8x128xf32> to vector<8x32xf32>
    %236 = math.tanh %235 : vector<8x32xf32>
    %237 = vector.extract_strided_slice %234 {offsets = [0, 32], sizes = [8, 32], strides = [1, 1]} : vector<8x96xf32> to vector<8x32xf32>
    %238 = arith.mulf %237, %198 : vector<8x32xf32>
    %239 = vector.extract_strided_slice %234 {offsets = [0, 0], sizes = [8, 32], strides = [1, 1]} : vector<8x96xf32> to vector<8x32xf32>
    %240 = arith.mulf %239, %236 : vector<8x32xf32>
    %241 = arith.addf %238, %240 : vector<8x32xf32>
    %242 = vector.extract_strided_slice %234 {offsets = [0, 64], sizes = [8, 32], strides = [1, 1]} : vector<8x96xf32> to vector<8x32xf32>
    %243 = math.tanh %241 : vector<8x32xf32>
    %244 = arith.mulf %242, %243 : vector<8x32xf32>
    %c6_i32 = arith.constant 6 : i32
    %c8_i32_40 = arith.constant 8 : i32
    %245 = arith.muli %c6_i32, %c8_i32_40 : i32
    %246 = tpu.assume_multiple %245, 8 : i32
    %247 = tpu.concatenate %228, %244 in 1 : vector<8x32xf32>, vector<8x32xf32> -> vector<8x64xf32>
    %248 = arith.truncf %247 : vector<8x64xf32> to vector<8x64xbf16>
    %cst_41 = arith.constant dense<0.000000e+00> : vector<8x256xf32>
    %249 = tpu.matmul %248, %8, %cst_41 {dimension_numbers = #tpu.dot_dimension_numbers<[1], [0], [0], [1], [0, 0, 1, 1], [], []>} : vector<8x64xbf16>, vector<64x256xbf16>, vector<8x256xf32> -> vector<8x256xf32>
    %250 = vector.extract_strided_slice %249 {offsets = [0, 0], sizes = [8, 128], strides = [1, 1]} : vector<8x256xf32> to vector<8x128xf32>
    %251 = arith.index_cast %246 : i32 to index
    %c0_42 = arith.constant 0 : index
    %252 = vector.load %arg13[%251, %c0_42] : memref<240x128xf32, #tpu.memory_space<vmem>>, vector<8x128xf32>
    %253 = arith.addf %250, %252 : vector<8x128xf32>
    %254 = vector.extract_strided_slice %249 {offsets = [0, 128], sizes = [8, 128], strides = [1, 1]} : vector<8x256xf32> to vector<8x128xf32>
    %255 = arith.addf %254, %11 : vector<8x128xf32>
    %256 = vector.extract_strided_slice %253 {offsets = [0, 0], sizes = [8, 96], strides = [1, 1]} : vector<8x128xf32> to vector<8x96xf32>
    %257 = arith.negf %256 : vector<8x96xf32>
    %258 = math.exp %257 : vector<8x96xf32>
    %cst_43 = arith.constant 1.000000e+00 : f32
    %259 = vector.broadcast %cst_43 : f32 to vector<8x96xf32>
    %260 = arith.addf %259, %258 : vector<8x96xf32>
    %261 = arith.divf %259, %260 : vector<8x96xf32>
    %262 = vector.extract_strided_slice %253 {offsets = [0, 96], sizes = [8, 32], strides = [1, 1]} : vector<8x128xf32> to vector<8x32xf32>
    %263 = math.tanh %262 : vector<8x32xf32>
    %264 = vector.extract_strided_slice %261 {offsets = [0, 32], sizes = [8, 32], strides = [1, 1]} : vector<8x96xf32> to vector<8x32xf32>
    %265 = arith.mulf %264, %225 : vector<8x32xf32>
    %266 = vector.extract_strided_slice %261 {offsets = [0, 0], sizes = [8, 32], strides = [1, 1]} : vector<8x96xf32> to vector<8x32xf32>
    %267 = arith.mulf %266, %263 : vector<8x32xf32>
    %268 = arith.addf %265, %267 : vector<8x32xf32>
    %269 = vector.extract_strided_slice %261 {offsets = [0, 64], sizes = [8, 32], strides = [1, 1]} : vector<8x96xf32> to vector<8x32xf32>
    %270 = math.tanh %268 : vector<8x32xf32>
    %271 = arith.mulf %269, %270 : vector<8x32xf32>
    %272 = vector.extract_strided_slice %255 {offsets = [0, 0], sizes = [8, 96], strides = [1, 1]} : vector<8x128xf32> to vector<8x96xf32>
    %273 = arith.negf %272 : vector<8x96xf32>
    %274 = math.exp %273 : vector<8x96xf32>
    %cst_44 = arith.constant 1.000000e+00 : f32
    %275 = vector.broadcast %cst_44 : f32 to vector<8x96xf32>
    %276 = arith.addf %275, %274 : vector<8x96xf32>
    %277 = arith.divf %275, %276 : vector<8x96xf32>
    %278 = vector.extract_strided_slice %255 {offsets = [0, 96], sizes = [8, 32], strides = [1, 1]} : vector<8x128xf32> to vector<8x32xf32>
    %279 = math.tanh %278 : vector<8x32xf32>
    %280 = vector.extract_strided_slice %277 {offsets = [0, 32], sizes = [8, 32], strides = [1, 1]} : vector<8x96xf32> to vector<8x32xf32>
    %281 = arith.mulf %280, %241 : vector<8x32xf32>
    %282 = vector.extract_strided_slice %277 {offsets = [0, 0], sizes = [8, 32], strides = [1, 1]} : vector<8x96xf32> to vector<8x32xf32>
    %283 = arith.mulf %282, %279 : vector<8x32xf32>
    %284 = arith.addf %281, %283 : vector<8x32xf32>
    %285 = vector.extract_strided_slice %277 {offsets = [0, 64], sizes = [8, 32], strides = [1, 1]} : vector<8x96xf32> to vector<8x32xf32>
    %286 = math.tanh %284 : vector<8x32xf32>
    %287 = arith.mulf %285, %286 : vector<8x32xf32>
    %c7_i32 = arith.constant 7 : i32
    %c8_i32_45 = arith.constant 8 : i32
    %288 = arith.muli %c7_i32, %c8_i32_45 : i32
    %289 = tpu.assume_multiple %288, 8 : i32
    %290 = tpu.concatenate %271, %287 in 1 : vector<8x32xf32>, vector<8x32xf32> -> vector<8x64xf32>
    %291 = arith.truncf %290 : vector<8x64xf32> to vector<8x64xbf16>
    %cst_46 = arith.constant dense<0.000000e+00> : vector<8x256xf32>
    %292 = tpu.matmul %291, %8, %cst_46 {dimension_numbers = #tpu.dot_dimension_numbers<[1], [0], [0], [1], [0, 0, 1, 1], [], []>} : vector<8x64xbf16>, vector<64x256xbf16>, vector<8x256xf32> -> vector<8x256xf32>
    %293 = vector.extract_strided_slice %292 {offsets = [0, 0], sizes = [8, 128], strides = [1, 1]} : vector<8x256xf32> to vector<8x128xf32>
    %294 = arith.index_cast %289 : i32 to index
    %c0_47 = arith.constant 0 : index
    %295 = vector.load %arg13[%294, %c0_47] : memref<240x128xf32, #tpu.memory_space<vmem>>, vector<8x128xf32>
    %296 = arith.addf %293, %295 : vector<8x128xf32>
    %297 = vector.extract_strided_slice %292 {offsets = [0, 128], sizes = [8, 128], strides = [1, 1]} : vector<8x256xf32> to vector<8x128xf32>
    %298 = arith.addf %297, %11 : vector<8x128xf32>
    %299 = vector.extract_strided_slice %296 {offsets = [0, 0], sizes = [8, 96], strides = [1, 1]} : vector<8x128xf32> to vector<8x96xf32>
    %300 = arith.negf %299 : vector<8x96xf32>
    %301 = math.exp %300 : vector<8x96xf32>
    %cst_48 = arith.constant 1.000000e+00 : f32
    %302 = vector.broadcast %cst_48 : f32 to vector<8x96xf32>
    %303 = arith.addf %302, %301 : vector<8x96xf32>
    %304 = arith.divf %302, %303 : vector<8x96xf32>
    %305 = vector.extract_strided_slice %296 {offsets = [0, 96], sizes = [8, 32], strides = [1, 1]} : vector<8x128xf32> to vector<8x32xf32>
    %306 = math.tanh %305 : vector<8x32xf32>
    %307 = vector.extract_strided_slice %304 {offsets = [0, 32], sizes = [8, 32], strides = [1, 1]} : vector<8x96xf32> to vector<8x32xf32>
    %308 = arith.mulf %307, %268 : vector<8x32xf32>
    %309 = vector.extract_strided_slice %304 {offsets = [0, 0], sizes = [8, 32], strides = [1, 1]} : vector<8x96xf32> to vector<8x32xf32>
    %310 = arith.mulf %309, %306 : vector<8x32xf32>
    %311 = arith.addf %308, %310 : vector<8x32xf32>
    %312 = vector.extract_strided_slice %304 {offsets = [0, 64], sizes = [8, 32], strides = [1, 1]} : vector<8x96xf32> to vector<8x32xf32>
    %313 = math.tanh %311 : vector<8x32xf32>
    %314 = arith.mulf %312, %313 : vector<8x32xf32>
    %315 = vector.extract_strided_slice %298 {offsets = [0, 0], sizes = [8, 96], strides = [1, 1]} : vector<8x128xf32> to vector<8x96xf32>
    %316 = arith.negf %315 : vector<8x96xf32>
    %317 = math.exp %316 : vector<8x96xf32>
    %cst_49 = arith.constant 1.000000e+00 : f32
    %318 = vector.broadcast %cst_49 : f32 to vector<8x96xf32>
    %319 = arith.addf %318, %317 : vector<8x96xf32>
    %320 = arith.divf %318, %319 : vector<8x96xf32>
    %321 = vector.extract_strided_slice %298 {offsets = [0, 96], sizes = [8, 32], strides = [1, 1]} : vector<8x128xf32> to vector<8x32xf32>
    %322 = math.tanh %321 : vector<8x32xf32>
    %323 = vector.extract_strided_slice %320 {offsets = [0, 32], sizes = [8, 32], strides = [1, 1]} : vector<8x96xf32> to vector<8x32xf32>
    %324 = arith.mulf %323, %284 : vector<8x32xf32>
    %325 = vector.extract_strided_slice %320 {offsets = [0, 0], sizes = [8, 32], strides = [1, 1]} : vector<8x96xf32> to vector<8x32xf32>
    %326 = arith.mulf %325, %322 : vector<8x32xf32>
    %327 = arith.addf %324, %326 : vector<8x32xf32>
    %328 = vector.extract_strided_slice %320 {offsets = [0, 64], sizes = [8, 32], strides = [1, 1]} : vector<8x96xf32> to vector<8x32xf32>
    %329 = math.tanh %327 : vector<8x32xf32>
    %330 = arith.mulf %328, %329 : vector<8x32xf32>
    %c8_i32_50 = arith.constant 8 : i32
    %c8_i32_51 = arith.constant 8 : i32
    %331 = arith.muli %c8_i32_50, %c8_i32_51 : i32
    %332 = tpu.assume_multiple %331, 8 : i32
    %333 = tpu.concatenate %314, %330 in 1 : vector<8x32xf32>, vector<8x32xf32> -> vector<8x64xf32>
    %334 = arith.truncf %333 : vector<8x64xf32> to vector<8x64xbf16>
    %cst_52 = arith.constant dense<0.000000e+00> : vector<8x256xf32>
    %335 = tpu.matmul %334, %8, %cst_52 {dimension_numbers = #tpu.dot_dimension_numbers<[1], [0], [0], [1], [0, 0, 1, 1], [], []>} : vector<8x64xbf16>, vector<64x256xbf16>, vector<8x256xf32> -> vector<8x256xf32>
    %336 = vector.extract_strided_slice %335 {offsets = [0, 0], sizes = [8, 128], strides = [1, 1]} : vector<8x256xf32> to vector<8x128xf32>
    %337 = arith.index_cast %332 : i32 to index
    %c0_53 = arith.constant 0 : index
    %338 = vector.load %arg13[%337, %c0_53] : memref<240x128xf32, #tpu.memory_space<vmem>>, vector<8x128xf32>
    %339 = arith.addf %336, %338 : vector<8x128xf32>
    %340 = vector.extract_strided_slice %335 {offsets = [0, 128], sizes = [8, 128], strides = [1, 1]} : vector<8x256xf32> to vector<8x128xf32>
    %341 = arith.addf %340, %11 : vector<8x128xf32>
    %342 = vector.extract_strided_slice %339 {offsets = [0, 0], sizes = [8, 96], strides = [1, 1]} : vector<8x128xf32> to vector<8x96xf32>
    %343 = arith.negf %342 : vector<8x96xf32>
    %344 = math.exp %343 : vector<8x96xf32>
    %cst_54 = arith.constant 1.000000e+00 : f32
    %345 = vector.broadcast %cst_54 : f32 to vector<8x96xf32>
    %346 = arith.addf %345, %344 : vector<8x96xf32>
    %347 = arith.divf %345, %346 : vector<8x96xf32>
    %348 = vector.extract_strided_slice %339 {offsets = [0, 96], sizes = [8, 32], strides = [1, 1]} : vector<8x128xf32> to vector<8x32xf32>
    %349 = math.tanh %348 : vector<8x32xf32>
    %350 = vector.extract_strided_slice %347 {offsets = [0, 32], sizes = [8, 32], strides = [1, 1]} : vector<8x96xf32> to vector<8x32xf32>
    %351 = arith.mulf %350, %311 : vector<8x32xf32>
    %352 = vector.extract_strided_slice %347 {offsets = [0, 0], sizes = [8, 32], strides = [1, 1]} : vector<8x96xf32> to vector<8x32xf32>
    %353 = arith.mulf %352, %349 : vector<8x32xf32>
    %354 = arith.addf %351, %353 : vector<8x32xf32>
    %355 = vector.extract_strided_slice %347 {offsets = [0, 64], sizes = [8, 32], strides = [1, 1]} : vector<8x96xf32> to vector<8x32xf32>
    %356 = math.tanh %354 : vector<8x32xf32>
    %357 = arith.mulf %355, %356 : vector<8x32xf32>
    %358 = vector.extract_strided_slice %341 {offsets = [0, 0], sizes = [8, 96], strides = [1, 1]} : vector<8x128xf32> to vector<8x96xf32>
    %359 = arith.negf %358 : vector<8x96xf32>
    %360 = math.exp %359 : vector<8x96xf32>
    %cst_55 = arith.constant 1.000000e+00 : f32
    %361 = vector.broadcast %cst_55 : f32 to vector<8x96xf32>
    %362 = arith.addf %361, %360 : vector<8x96xf32>
    %363 = arith.divf %361, %362 : vector<8x96xf32>
    %364 = vector.extract_strided_slice %341 {offsets = [0, 96], sizes = [8, 32], strides = [1, 1]} : vector<8x128xf32> to vector<8x32xf32>
    %365 = math.tanh %364 : vector<8x32xf32>
    %366 = vector.extract_strided_slice %363 {offsets = [0, 32], sizes = [8, 32], strides = [1, 1]} : vector<8x96xf32> to vector<8x32xf32>
    %367 = arith.mulf %366, %327 : vector<8x32xf32>
    %368 = vector.extract_strided_slice %363 {offsets = [0, 0], sizes = [8, 32], strides = [1, 1]} : vector<8x96xf32> to vector<8x32xf32>
    %369 = arith.mulf %368, %365 : vector<8x32xf32>
    %370 = arith.addf %367, %369 : vector<8x32xf32>
    %371 = vector.extract_strided_slice %363 {offsets = [0, 64], sizes = [8, 32], strides = [1, 1]} : vector<8x96xf32> to vector<8x32xf32>
    %372 = math.tanh %370 : vector<8x32xf32>
    %373 = arith.mulf %371, %372 : vector<8x32xf32>
    %c9_i32 = arith.constant 9 : i32
    %c8_i32_56 = arith.constant 8 : i32
    %374 = arith.muli %c9_i32, %c8_i32_56 : i32
    %375 = tpu.assume_multiple %374, 8 : i32
    %376 = tpu.concatenate %357, %373 in 1 : vector<8x32xf32>, vector<8x32xf32> -> vector<8x64xf32>
    %377 = arith.truncf %376 : vector<8x64xf32> to vector<8x64xbf16>
    %cst_57 = arith.constant dense<0.000000e+00> : vector<8x256xf32>
    %378 = tpu.matmul %377, %8, %cst_57 {dimension_numbers = #tpu.dot_dimension_numbers<[1], [0], [0], [1], [0, 0, 1, 1], [], []>} : vector<8x64xbf16>, vector<64x256xbf16>, vector<8x256xf32> -> vector<8x256xf32>
    %379 = vector.extract_strided_slice %378 {offsets = [0, 0], sizes = [8, 128], strides = [1, 1]} : vector<8x256xf32> to vector<8x128xf32>
    %380 = arith.index_cast %375 : i32 to index
    %c0_58 = arith.constant 0 : index
    %381 = vector.load %arg13[%380, %c0_58] : memref<240x128xf32, #tpu.memory_space<vmem>>, vector<8x128xf32>
    %382 = arith.addf %379, %381 : vector<8x128xf32>
    %383 = vector.extract_strided_slice %378 {offsets = [0, 128], sizes = [8, 128], strides = [1, 1]} : vector<8x256xf32> to vector<8x128xf32>
    %384 = arith.addf %383, %11 : vector<8x128xf32>
    %385 = vector.extract_strided_slice %382 {offsets = [0, 0], sizes = [8, 96], strides = [1, 1]} : vector<8x128xf32> to vector<8x96xf32>
    %386 = arith.negf %385 : vector<8x96xf32>
    %387 = math.exp %386 : vector<8x96xf32>
    %cst_59 = arith.constant 1.000000e+00 : f32
    %388 = vector.broadcast %cst_59 : f32 to vector<8x96xf32>
    %389 = arith.addf %388, %387 : vector<8x96xf32>
    %390 = arith.divf %388, %389 : vector<8x96xf32>
    %391 = vector.extract_strided_slice %382 {offsets = [0, 96], sizes = [8, 32], strides = [1, 1]} : vector<8x128xf32> to vector<8x32xf32>
    %392 = math.tanh %391 : vector<8x32xf32>
    %393 = vector.extract_strided_slice %390 {offsets = [0, 32], sizes = [8, 32], strides = [1, 1]} : vector<8x96xf32> to vector<8x32xf32>
    %394 = arith.mulf %393, %354 : vector<8x32xf32>
    %395 = vector.extract_strided_slice %390 {offsets = [0, 0], sizes = [8, 32], strides = [1, 1]} : vector<8x96xf32> to vector<8x32xf32>
    %396 = arith.mulf %395, %392 : vector<8x32xf32>
    %397 = arith.addf %394, %396 : vector<8x32xf32>
    %398 = vector.extract_strided_slice %390 {offsets = [0, 64], sizes = [8, 32], strides = [1, 1]} : vector<8x96xf32> to vector<8x32xf32>
    %399 = math.tanh %397 : vector<8x32xf32>
    %400 = arith.mulf %398, %399 : vector<8x32xf32>
    %401 = vector.extract_strided_slice %384 {offsets = [0, 0], sizes = [8, 96], strides = [1, 1]} : vector<8x128xf32> to vector<8x96xf32>
    %402 = arith.negf %401 : vector<8x96xf32>
    %403 = math.exp %402 : vector<8x96xf32>
    %cst_60 = arith.constant 1.000000e+00 : f32
    %404 = vector.broadcast %cst_60 : f32 to vector<8x96xf32>
    %405 = arith.addf %404, %403 : vector<8x96xf32>
    %406 = arith.divf %404, %405 : vector<8x96xf32>
    %407 = vector.extract_strided_slice %384 {offsets = [0, 96], sizes = [8, 32], strides = [1, 1]} : vector<8x128xf32> to vector<8x32xf32>
    %408 = math.tanh %407 : vector<8x32xf32>
    %409 = vector.extract_strided_slice %406 {offsets = [0, 32], sizes = [8, 32], strides = [1, 1]} : vector<8x96xf32> to vector<8x32xf32>
    %410 = arith.mulf %409, %370 : vector<8x32xf32>
    %411 = vector.extract_strided_slice %406 {offsets = [0, 0], sizes = [8, 32], strides = [1, 1]} : vector<8x96xf32> to vector<8x32xf32>
    %412 = arith.mulf %411, %408 : vector<8x32xf32>
    %413 = arith.addf %410, %412 : vector<8x32xf32>
    %414 = vector.extract_strided_slice %406 {offsets = [0, 64], sizes = [8, 32], strides = [1, 1]} : vector<8x96xf32> to vector<8x32xf32>
    %415 = math.tanh %413 : vector<8x32xf32>
    %416 = arith.mulf %414, %415 : vector<8x32xf32>
    %c10_i32 = arith.constant 10 : i32
    %c8_i32_61 = arith.constant 8 : i32
    %417 = arith.muli %c10_i32, %c8_i32_61 : i32
    %418 = tpu.assume_multiple %417, 8 : i32
    %419 = tpu.concatenate %400, %416 in 1 : vector<8x32xf32>, vector<8x32xf32> -> vector<8x64xf32>
    %420 = arith.truncf %419 : vector<8x64xf32> to vector<8x64xbf16>
    %cst_62 = arith.constant dense<0.000000e+00> : vector<8x256xf32>
    %421 = tpu.matmul %420, %8, %cst_62 {dimension_numbers = #tpu.dot_dimension_numbers<[1], [0], [0], [1], [0, 0, 1, 1], [], []>} : vector<8x64xbf16>, vector<64x256xbf16>, vector<8x256xf32> -> vector<8x256xf32>
    %422 = vector.extract_strided_slice %421 {offsets = [0, 0], sizes = [8, 128], strides = [1, 1]} : vector<8x256xf32> to vector<8x128xf32>
    %423 = arith.index_cast %418 : i32 to index
    %c0_63 = arith.constant 0 : index
    %424 = vector.load %arg13[%423, %c0_63] : memref<240x128xf32, #tpu.memory_space<vmem>>, vector<8x128xf32>
    %425 = arith.addf %422, %424 : vector<8x128xf32>
    %426 = vector.extract_strided_slice %421 {offsets = [0, 128], sizes = [8, 128], strides = [1, 1]} : vector<8x256xf32> to vector<8x128xf32>
    %427 = arith.addf %426, %11 : vector<8x128xf32>
    %428 = vector.extract_strided_slice %425 {offsets = [0, 0], sizes = [8, 96], strides = [1, 1]} : vector<8x128xf32> to vector<8x96xf32>
    %429 = arith.negf %428 : vector<8x96xf32>
    %430 = math.exp %429 : vector<8x96xf32>
    %cst_64 = arith.constant 1.000000e+00 : f32
    %431 = vector.broadcast %cst_64 : f32 to vector<8x96xf32>
    %432 = arith.addf %431, %430 : vector<8x96xf32>
    %433 = arith.divf %431, %432 : vector<8x96xf32>
    %434 = vector.extract_strided_slice %425 {offsets = [0, 96], sizes = [8, 32], strides = [1, 1]} : vector<8x128xf32> to vector<8x32xf32>
    %435 = math.tanh %434 : vector<8x32xf32>
    %436 = vector.extract_strided_slice %433 {offsets = [0, 32], sizes = [8, 32], strides = [1, 1]} : vector<8x96xf32> to vector<8x32xf32>
    %437 = arith.mulf %436, %397 : vector<8x32xf32>
    %438 = vector.extract_strided_slice %433 {offsets = [0, 0], sizes = [8, 32], strides = [1, 1]} : vector<8x96xf32> to vector<8x32xf32>
    %439 = arith.mulf %438, %435 : vector<8x32xf32>
    %440 = arith.addf %437, %439 : vector<8x32xf32>
    %441 = vector.extract_strided_slice %433 {offsets = [0, 64], sizes = [8, 32], strides = [1, 1]} : vector<8x96xf32> to vector<8x32xf32>
    %442 = math.tanh %440 : vector<8x32xf32>
    %443 = arith.mulf %441, %442 : vector<8x32xf32>
    %444 = vector.extract_strided_slice %427 {offsets = [0, 0], sizes = [8, 96], strides = [1, 1]} : vector<8x128xf32> to vector<8x96xf32>
    %445 = arith.negf %444 : vector<8x96xf32>
    %446 = math.exp %445 : vector<8x96xf32>
    %cst_65 = arith.constant 1.000000e+00 : f32
    %447 = vector.broadcast %cst_65 : f32 to vector<8x96xf32>
    %448 = arith.addf %447, %446 : vector<8x96xf32>
    %449 = arith.divf %447, %448 : vector<8x96xf32>
    %450 = vector.extract_strided_slice %427 {offsets = [0, 96], sizes = [8, 32], strides = [1, 1]} : vector<8x128xf32> to vector<8x32xf32>
    %451 = math.tanh %450 : vector<8x32xf32>
    %452 = vector.extract_strided_slice %449 {offsets = [0, 32], sizes = [8, 32], strides = [1, 1]} : vector<8x96xf32> to vector<8x32xf32>
    %453 = arith.mulf %452, %413 : vector<8x32xf32>
    %454 = vector.extract_strided_slice %449 {offsets = [0, 0], sizes = [8, 32], strides = [1, 1]} : vector<8x96xf32> to vector<8x32xf32>
    %455 = arith.mulf %454, %451 : vector<8x32xf32>
    %456 = arith.addf %453, %455 : vector<8x32xf32>
    %457 = vector.extract_strided_slice %449 {offsets = [0, 64], sizes = [8, 32], strides = [1, 1]} : vector<8x96xf32> to vector<8x32xf32>
    %458 = math.tanh %456 : vector<8x32xf32>
    %459 = arith.mulf %457, %458 : vector<8x32xf32>
    %c11_i32 = arith.constant 11 : i32
    %c8_i32_66 = arith.constant 8 : i32
    %460 = arith.muli %c11_i32, %c8_i32_66 : i32
    %461 = tpu.assume_multiple %460, 8 : i32
    %462 = tpu.concatenate %443, %459 in 1 : vector<8x32xf32>, vector<8x32xf32> -> vector<8x64xf32>
    %463 = arith.truncf %462 : vector<8x64xf32> to vector<8x64xbf16>
    %cst_67 = arith.constant dense<0.000000e+00> : vector<8x256xf32>
    %464 = tpu.matmul %463, %8, %cst_67 {dimension_numbers = #tpu.dot_dimension_numbers<[1], [0], [0], [1], [0, 0, 1, 1], [], []>} : vector<8x64xbf16>, vector<64x256xbf16>, vector<8x256xf32> -> vector<8x256xf32>
    %465 = vector.extract_strided_slice %464 {offsets = [0, 0], sizes = [8, 128], strides = [1, 1]} : vector<8x256xf32> to vector<8x128xf32>
    %466 = arith.index_cast %461 : i32 to index
    %c0_68 = arith.constant 0 : index
    %467 = vector.load %arg13[%466, %c0_68] : memref<240x128xf32, #tpu.memory_space<vmem>>, vector<8x128xf32>
    %468 = arith.addf %465, %467 : vector<8x128xf32>
    %469 = vector.extract_strided_slice %464 {offsets = [0, 128], sizes = [8, 128], strides = [1, 1]} : vector<8x256xf32> to vector<8x128xf32>
    %470 = arith.addf %469, %11 : vector<8x128xf32>
    %471 = vector.extract_strided_slice %468 {offsets = [0, 0], sizes = [8, 96], strides = [1, 1]} : vector<8x128xf32> to vector<8x96xf32>
    %472 = arith.negf %471 : vector<8x96xf32>
    %473 = math.exp %472 : vector<8x96xf32>
    %cst_69 = arith.constant 1.000000e+00 : f32
    %474 = vector.broadcast %cst_69 : f32 to vector<8x96xf32>
    %475 = arith.addf %474, %473 : vector<8x96xf32>
    %476 = arith.divf %474, %475 : vector<8x96xf32>
    %477 = vector.extract_strided_slice %468 {offsets = [0, 96], sizes = [8, 32], strides = [1, 1]} : vector<8x128xf32> to vector<8x32xf32>
    %478 = math.tanh %477 : vector<8x32xf32>
    %479 = vector.extract_strided_slice %476 {offsets = [0, 32], sizes = [8, 32], strides = [1, 1]} : vector<8x96xf32> to vector<8x32xf32>
    %480 = arith.mulf %479, %440 : vector<8x32xf32>
    %481 = vector.extract_strided_slice %476 {offsets = [0, 0], sizes = [8, 32], strides = [1, 1]} : vector<8x96xf32> to vector<8x32xf32>
    %482 = arith.mulf %481, %478 : vector<8x32xf32>
    %483 = arith.addf %480, %482 : vector<8x32xf32>
    %484 = vector.extract_strided_slice %476 {offsets = [0, 64], sizes = [8, 32], strides = [1, 1]} : vector<8x96xf32> to vector<8x32xf32>
    %485 = math.tanh %483 : vector<8x32xf32>
    %486 = arith.mulf %484, %485 : vector<8x32xf32>
    %487 = vector.extract_strided_slice %470 {offsets = [0, 0], sizes = [8, 96], strides = [1, 1]} : vector<8x128xf32> to vector<8x96xf32>
    %488 = arith.negf %487 : vector<8x96xf32>
    %489 = math.exp %488 : vector<8x96xf32>
    %cst_70 = arith.constant 1.000000e+00 : f32
    %490 = vector.broadcast %cst_70 : f32 to vector<8x96xf32>
    %491 = arith.addf %490, %489 : vector<8x96xf32>
    %492 = arith.divf %490, %491 : vector<8x96xf32>
    %493 = vector.extract_strided_slice %470 {offsets = [0, 96], sizes = [8, 32], strides = [1, 1]} : vector<8x128xf32> to vector<8x32xf32>
    %494 = math.tanh %493 : vector<8x32xf32>
    %495 = vector.extract_strided_slice %492 {offsets = [0, 32], sizes = [8, 32], strides = [1, 1]} : vector<8x96xf32> to vector<8x32xf32>
    %496 = arith.mulf %495, %456 : vector<8x32xf32>
    %497 = vector.extract_strided_slice %492 {offsets = [0, 0], sizes = [8, 32], strides = [1, 1]} : vector<8x96xf32> to vector<8x32xf32>
    %498 = arith.mulf %497, %494 : vector<8x32xf32>
    %499 = arith.addf %496, %498 : vector<8x32xf32>
    %500 = vector.extract_strided_slice %492 {offsets = [0, 64], sizes = [8, 32], strides = [1, 1]} : vector<8x96xf32> to vector<8x32xf32>
    %501 = math.tanh %499 : vector<8x32xf32>
    %502 = arith.mulf %500, %501 : vector<8x32xf32>
    %c12_i32 = arith.constant 12 : i32
    %c8_i32_71 = arith.constant 8 : i32
    %503 = arith.muli %c12_i32, %c8_i32_71 : i32
    %504 = tpu.assume_multiple %503, 8 : i32
    %505 = tpu.concatenate %486, %502 in 1 : vector<8x32xf32>, vector<8x32xf32> -> vector<8x64xf32>
    %506 = arith.truncf %505 : vector<8x64xf32> to vector<8x64xbf16>
    %cst_72 = arith.constant dense<0.000000e+00> : vector<8x256xf32>
    %507 = tpu.matmul %506, %8, %cst_72 {dimension_numbers = #tpu.dot_dimension_numbers<[1], [0], [0], [1], [0, 0, 1, 1], [], []>} : vector<8x64xbf16>, vector<64x256xbf16>, vector<8x256xf32> -> vector<8x256xf32>
    %508 = vector.extract_strided_slice %507 {offsets = [0, 0], sizes = [8, 128], strides = [1, 1]} : vector<8x256xf32> to vector<8x128xf32>
    %509 = arith.index_cast %504 : i32 to index
    %c0_73 = arith.constant 0 : index
    %510 = vector.load %arg13[%509, %c0_73] : memref<240x128xf32, #tpu.memory_space<vmem>>, vector<8x128xf32>
    %511 = arith.addf %508, %510 : vector<8x128xf32>
    %512 = vector.extract_strided_slice %507 {offsets = [0, 128], sizes = [8, 128], strides = [1, 1]} : vector<8x256xf32> to vector<8x128xf32>
    %513 = arith.addf %512, %11 : vector<8x128xf32>
    %514 = vector.extract_strided_slice %511 {offsets = [0, 0], sizes = [8, 96], strides = [1, 1]} : vector<8x128xf32> to vector<8x96xf32>
    %515 = arith.negf %514 : vector<8x96xf32>
    %516 = math.exp %515 : vector<8x96xf32>
    %cst_74 = arith.constant 1.000000e+00 : f32
    %517 = vector.broadcast %cst_74 : f32 to vector<8x96xf32>
    %518 = arith.addf %517, %516 : vector<8x96xf32>
    %519 = arith.divf %517, %518 : vector<8x96xf32>
    %520 = vector.extract_strided_slice %511 {offsets = [0, 96], sizes = [8, 32], strides = [1, 1]} : vector<8x128xf32> to vector<8x32xf32>
    %521 = math.tanh %520 : vector<8x32xf32>
    %522 = vector.extract_strided_slice %519 {offsets = [0, 32], sizes = [8, 32], strides = [1, 1]} : vector<8x96xf32> to vector<8x32xf32>
    %523 = arith.mulf %522, %483 : vector<8x32xf32>
    %524 = vector.extract_strided_slice %519 {offsets = [0, 0], sizes = [8, 32], strides = [1, 1]} : vector<8x96xf32> to vector<8x32xf32>
    %525 = arith.mulf %524, %521 : vector<8x32xf32>
    %526 = arith.addf %523, %525 : vector<8x32xf32>
    %527 = vector.extract_strided_slice %519 {offsets = [0, 64], sizes = [8, 32], strides = [1, 1]} : vector<8x96xf32> to vector<8x32xf32>
    %528 = math.tanh %526 : vector<8x32xf32>
    %529 = arith.mulf %527, %528 : vector<8x32xf32>
    %530 = vector.extract_strided_slice %513 {offsets = [0, 0], sizes = [8, 96], strides = [1, 1]} : vector<8x128xf32> to vector<8x96xf32>
    %531 = arith.negf %530 : vector<8x96xf32>
    %532 = math.exp %531 : vector<8x96xf32>
    %cst_75 = arith.constant 1.000000e+00 : f32
    %533 = vector.broadcast %cst_75 : f32 to vector<8x96xf32>
    %534 = arith.addf %533, %532 : vector<8x96xf32>
    %535 = arith.divf %533, %534 : vector<8x96xf32>
    %536 = vector.extract_strided_slice %513 {offsets = [0, 96], sizes = [8, 32], strides = [1, 1]} : vector<8x128xf32> to vector<8x32xf32>
    %537 = math.tanh %536 : vector<8x32xf32>
    %538 = vector.extract_strided_slice %535 {offsets = [0, 32], sizes = [8, 32], strides = [1, 1]} : vector<8x96xf32> to vector<8x32xf32>
    %539 = arith.mulf %538, %499 : vector<8x32xf32>
    %540 = vector.extract_strided_slice %535 {offsets = [0, 0], sizes = [8, 32], strides = [1, 1]} : vector<8x96xf32> to vector<8x32xf32>
    %541 = arith.mulf %540, %537 : vector<8x32xf32>
    %542 = arith.addf %539, %541 : vector<8x32xf32>
    %543 = vector.extract_strided_slice %535 {offsets = [0, 64], sizes = [8, 32], strides = [1, 1]} : vector<8x96xf32> to vector<8x32xf32>
    %544 = math.tanh %542 : vector<8x32xf32>
    %545 = arith.mulf %543, %544 : vector<8x32xf32>
    %c13_i32 = arith.constant 13 : i32
    %c8_i32_76 = arith.constant 8 : i32
    %546 = arith.muli %c13_i32, %c8_i32_76 : i32
    %547 = tpu.assume_multiple %546, 8 : i32
    %548 = tpu.concatenate %529, %545 in 1 : vector<8x32xf32>, vector<8x32xf32> -> vector<8x64xf32>
    %549 = arith.truncf %548 : vector<8x64xf32> to vector<8x64xbf16>
    %cst_77 = arith.constant dense<0.000000e+00> : vector<8x256xf32>
    %550 = tpu.matmul %549, %8, %cst_77 {dimension_numbers = #tpu.dot_dimension_numbers<[1], [0], [0], [1], [0, 0, 1, 1], [], []>} : vector<8x64xbf16>, vector<64x256xbf16>, vector<8x256xf32> -> vector<8x256xf32>
    %551 = vector.extract_strided_slice %550 {offsets = [0, 0], sizes = [8, 128], strides = [1, 1]} : vector<8x256xf32> to vector<8x128xf32>
    %552 = arith.index_cast %547 : i32 to index
    %c0_78 = arith.constant 0 : index
    %553 = vector.load %arg13[%552, %c0_78] : memref<240x128xf32, #tpu.memory_space<vmem>>, vector<8x128xf32>
    %554 = arith.addf %551, %553 : vector<8x128xf32>
    %555 = vector.extract_strided_slice %550 {offsets = [0, 128], sizes = [8, 128], strides = [1, 1]} : vector<8x256xf32> to vector<8x128xf32>
    %556 = arith.addf %555, %11 : vector<8x128xf32>
    %557 = vector.extract_strided_slice %554 {offsets = [0, 0], sizes = [8, 96], strides = [1, 1]} : vector<8x128xf32> to vector<8x96xf32>
    %558 = arith.negf %557 : vector<8x96xf32>
    %559 = math.exp %558 : vector<8x96xf32>
    %cst_79 = arith.constant 1.000000e+00 : f32
    %560 = vector.broadcast %cst_79 : f32 to vector<8x96xf32>
    %561 = arith.addf %560, %559 : vector<8x96xf32>
    %562 = arith.divf %560, %561 : vector<8x96xf32>
    %563 = vector.extract_strided_slice %554 {offsets = [0, 96], sizes = [8, 32], strides = [1, 1]} : vector<8x128xf32> to vector<8x32xf32>
    %564 = math.tanh %563 : vector<8x32xf32>
    %565 = vector.extract_strided_slice %562 {offsets = [0, 32], sizes = [8, 32], strides = [1, 1]} : vector<8x96xf32> to vector<8x32xf32>
    %566 = arith.mulf %565, %526 : vector<8x32xf32>
    %567 = vector.extract_strided_slice %562 {offsets = [0, 0], sizes = [8, 32], strides = [1, 1]} : vector<8x96xf32> to vector<8x32xf32>
    %568 = arith.mulf %567, %564 : vector<8x32xf32>
    %569 = arith.addf %566, %568 : vector<8x32xf32>
    %570 = vector.extract_strided_slice %562 {offsets = [0, 64], sizes = [8, 32], strides = [1, 1]} : vector<8x96xf32> to vector<8x32xf32>
    %571 = math.tanh %569 : vector<8x32xf32>
    %572 = arith.mulf %570, %571 : vector<8x32xf32>
    %573 = vector.extract_strided_slice %556 {offsets = [0, 0], sizes = [8, 96], strides = [1, 1]} : vector<8x128xf32> to vector<8x96xf32>
    %574 = arith.negf %573 : vector<8x96xf32>
    %575 = math.exp %574 : vector<8x96xf32>
    %cst_80 = arith.constant 1.000000e+00 : f32
    %576 = vector.broadcast %cst_80 : f32 to vector<8x96xf32>
    %577 = arith.addf %576, %575 : vector<8x96xf32>
    %578 = arith.divf %576, %577 : vector<8x96xf32>
    %579 = vector.extract_strided_slice %556 {offsets = [0, 96], sizes = [8, 32], strides = [1, 1]} : vector<8x128xf32> to vector<8x32xf32>
    %580 = math.tanh %579 : vector<8x32xf32>
    %581 = vector.extract_strided_slice %578 {offsets = [0, 32], sizes = [8, 32], strides = [1, 1]} : vector<8x96xf32> to vector<8x32xf32>
    %582 = arith.mulf %581, %542 : vector<8x32xf32>
    %583 = vector.extract_strided_slice %578 {offsets = [0, 0], sizes = [8, 32], strides = [1, 1]} : vector<8x96xf32> to vector<8x32xf32>
    %584 = arith.mulf %583, %580 : vector<8x32xf32>
    %585 = arith.addf %582, %584 : vector<8x32xf32>
    %586 = vector.extract_strided_slice %578 {offsets = [0, 64], sizes = [8, 32], strides = [1, 1]} : vector<8x96xf32> to vector<8x32xf32>
    %587 = math.tanh %585 : vector<8x32xf32>
    %588 = arith.mulf %586, %587 : vector<8x32xf32>
    %c14_i32 = arith.constant 14 : i32
    %c8_i32_81 = arith.constant 8 : i32
    %589 = arith.muli %c14_i32, %c8_i32_81 : i32
    %590 = tpu.assume_multiple %589, 8 : i32
    %591 = tpu.concatenate %572, %588 in 1 : vector<8x32xf32>, vector<8x32xf32> -> vector<8x64xf32>
    %592 = arith.truncf %591 : vector<8x64xf32> to vector<8x64xbf16>
    %cst_82 = arith.constant dense<0.000000e+00> : vector<8x256xf32>
    %593 = tpu.matmul %592, %8, %cst_82 {dimension_numbers = #tpu.dot_dimension_numbers<[1], [0], [0], [1], [0, 0, 1, 1], [], []>} : vector<8x64xbf16>, vector<64x256xbf16>, vector<8x256xf32> -> vector<8x256xf32>
    %594 = vector.extract_strided_slice %593 {offsets = [0, 0], sizes = [8, 128], strides = [1, 1]} : vector<8x256xf32> to vector<8x128xf32>
    %595 = arith.index_cast %590 : i32 to index
    %c0_83 = arith.constant 0 : index
    %596 = vector.load %arg13[%595, %c0_83] : memref<240x128xf32, #tpu.memory_space<vmem>>, vector<8x128xf32>
    %597 = arith.addf %594, %596 : vector<8x128xf32>
    %598 = vector.extract_strided_slice %593 {offsets = [0, 128], sizes = [8, 128], strides = [1, 1]} : vector<8x256xf32> to vector<8x128xf32>
    %599 = arith.addf %598, %11 : vector<8x128xf32>
    %600 = vector.extract_strided_slice %597 {offsets = [0, 0], sizes = [8, 96], strides = [1, 1]} : vector<8x128xf32> to vector<8x96xf32>
    %601 = arith.negf %600 : vector<8x96xf32>
    %602 = math.exp %601 : vector<8x96xf32>
    %cst_84 = arith.constant 1.000000e+00 : f32
    %603 = vector.broadcast %cst_84 : f32 to vector<8x96xf32>
    %604 = arith.addf %603, %602 : vector<8x96xf32>
    %605 = arith.divf %603, %604 : vector<8x96xf32>
    %606 = vector.extract_strided_slice %597 {offsets = [0, 96], sizes = [8, 32], strides = [1, 1]} : vector<8x128xf32> to vector<8x32xf32>
    %607 = math.tanh %606 : vector<8x32xf32>
    %608 = vector.extract_strided_slice %605 {offsets = [0, 32], sizes = [8, 32], strides = [1, 1]} : vector<8x96xf32> to vector<8x32xf32>
    %609 = arith.mulf %608, %569 : vector<8x32xf32>
    %610 = vector.extract_strided_slice %605 {offsets = [0, 0], sizes = [8, 32], strides = [1, 1]} : vector<8x96xf32> to vector<8x32xf32>
    %611 = arith.mulf %610, %607 : vector<8x32xf32>
    %612 = arith.addf %609, %611 : vector<8x32xf32>
    %613 = vector.extract_strided_slice %605 {offsets = [0, 64], sizes = [8, 32], strides = [1, 1]} : vector<8x96xf32> to vector<8x32xf32>
    %614 = math.tanh %612 : vector<8x32xf32>
    %615 = arith.mulf %613, %614 : vector<8x32xf32>
    %616 = vector.extract_strided_slice %599 {offsets = [0, 0], sizes = [8, 96], strides = [1, 1]} : vector<8x128xf32> to vector<8x96xf32>
    %617 = arith.negf %616 : vector<8x96xf32>
    %618 = math.exp %617 : vector<8x96xf32>
    %cst_85 = arith.constant 1.000000e+00 : f32
    %619 = vector.broadcast %cst_85 : f32 to vector<8x96xf32>
    %620 = arith.addf %619, %618 : vector<8x96xf32>
    %621 = arith.divf %619, %620 : vector<8x96xf32>
    %622 = vector.extract_strided_slice %599 {offsets = [0, 96], sizes = [8, 32], strides = [1, 1]} : vector<8x128xf32> to vector<8x32xf32>
    %623 = math.tanh %622 : vector<8x32xf32>
    %624 = vector.extract_strided_slice %621 {offsets = [0, 32], sizes = [8, 32], strides = [1, 1]} : vector<8x96xf32> to vector<8x32xf32>
    %625 = arith.mulf %624, %585 : vector<8x32xf32>
    %626 = vector.extract_strided_slice %621 {offsets = [0, 0], sizes = [8, 32], strides = [1, 1]} : vector<8x96xf32> to vector<8x32xf32>
    %627 = arith.mulf %626, %623 : vector<8x32xf32>
    %628 = arith.addf %625, %627 : vector<8x32xf32>
    %629 = vector.extract_strided_slice %621 {offsets = [0, 64], sizes = [8, 32], strides = [1, 1]} : vector<8x96xf32> to vector<8x32xf32>
    %630 = math.tanh %628 : vector<8x32xf32>
    %631 = arith.mulf %629, %630 : vector<8x32xf32>
    %c15_i32 = arith.constant 15 : i32
    %c8_i32_86 = arith.constant 8 : i32
    %632 = arith.muli %c15_i32, %c8_i32_86 : i32
    %633 = tpu.assume_multiple %632, 8 : i32
    %634 = tpu.concatenate %615, %631 in 1 : vector<8x32xf32>, vector<8x32xf32> -> vector<8x64xf32>
    %635 = arith.truncf %634 : vector<8x64xf32> to vector<8x64xbf16>
    %cst_87 = arith.constant dense<0.000000e+00> : vector<8x256xf32>
    %636 = tpu.matmul %635, %8, %cst_87 {dimension_numbers = #tpu.dot_dimension_numbers<[1], [0], [0], [1], [0, 0, 1, 1], [], []>} : vector<8x64xbf16>, vector<64x256xbf16>, vector<8x256xf32> -> vector<8x256xf32>
    %637 = vector.extract_strided_slice %636 {offsets = [0, 0], sizes = [8, 128], strides = [1, 1]} : vector<8x256xf32> to vector<8x128xf32>
    %638 = arith.index_cast %633 : i32 to index
    %c0_88 = arith.constant 0 : index
    %639 = vector.load %arg13[%638, %c0_88] : memref<240x128xf32, #tpu.memory_space<vmem>>, vector<8x128xf32>
    %640 = arith.addf %637, %639 : vector<8x128xf32>
    %641 = vector.extract_strided_slice %636 {offsets = [0, 128], sizes = [8, 128], strides = [1, 1]} : vector<8x256xf32> to vector<8x128xf32>
    %642 = arith.addf %641, %11 : vector<8x128xf32>
    %643 = vector.extract_strided_slice %640 {offsets = [0, 0], sizes = [8, 96], strides = [1, 1]} : vector<8x128xf32> to vector<8x96xf32>
    %644 = arith.negf %643 : vector<8x96xf32>
    %645 = math.exp %644 : vector<8x96xf32>
    %cst_89 = arith.constant 1.000000e+00 : f32
    %646 = vector.broadcast %cst_89 : f32 to vector<8x96xf32>
    %647 = arith.addf %646, %645 : vector<8x96xf32>
    %648 = arith.divf %646, %647 : vector<8x96xf32>
    %649 = vector.extract_strided_slice %640 {offsets = [0, 96], sizes = [8, 32], strides = [1, 1]} : vector<8x128xf32> to vector<8x32xf32>
    %650 = math.tanh %649 : vector<8x32xf32>
    %651 = vector.extract_strided_slice %648 {offsets = [0, 32], sizes = [8, 32], strides = [1, 1]} : vector<8x96xf32> to vector<8x32xf32>
    %652 = arith.mulf %651, %612 : vector<8x32xf32>
    %653 = vector.extract_strided_slice %648 {offsets = [0, 0], sizes = [8, 32], strides = [1, 1]} : vector<8x96xf32> to vector<8x32xf32>
    %654 = arith.mulf %653, %650 : vector<8x32xf32>
    %655 = arith.addf %652, %654 : vector<8x32xf32>
    %656 = vector.extract_strided_slice %648 {offsets = [0, 64], sizes = [8, 32], strides = [1, 1]} : vector<8x96xf32> to vector<8x32xf32>
    %657 = math.tanh %655 : vector<8x32xf32>
    %658 = arith.mulf %656, %657 : vector<8x32xf32>
    %659 = vector.extract_strided_slice %642 {offsets = [0, 0], sizes = [8, 96], strides = [1, 1]} : vector<8x128xf32> to vector<8x96xf32>
    %660 = arith.negf %659 : vector<8x96xf32>
    %661 = math.exp %660 : vector<8x96xf32>
    %cst_90 = arith.constant 1.000000e+00 : f32
    %662 = vector.broadcast %cst_90 : f32 to vector<8x96xf32>
    %663 = arith.addf %662, %661 : vector<8x96xf32>
    %664 = arith.divf %662, %663 : vector<8x96xf32>
    %665 = vector.extract_strided_slice %642 {offsets = [0, 96], sizes = [8, 32], strides = [1, 1]} : vector<8x128xf32> to vector<8x32xf32>
    %666 = math.tanh %665 : vector<8x32xf32>
    %667 = vector.extract_strided_slice %664 {offsets = [0, 32], sizes = [8, 32], strides = [1, 1]} : vector<8x96xf32> to vector<8x32xf32>
    %668 = arith.mulf %667, %628 : vector<8x32xf32>
    %669 = vector.extract_strided_slice %664 {offsets = [0, 0], sizes = [8, 32], strides = [1, 1]} : vector<8x96xf32> to vector<8x32xf32>
    %670 = arith.mulf %669, %666 : vector<8x32xf32>
    %671 = arith.addf %668, %670 : vector<8x32xf32>
    %672 = vector.extract_strided_slice %664 {offsets = [0, 64], sizes = [8, 32], strides = [1, 1]} : vector<8x96xf32> to vector<8x32xf32>
    %673 = math.tanh %671 : vector<8x32xf32>
    %674 = arith.mulf %672, %673 : vector<8x32xf32>
    %c16_i32 = arith.constant 16 : i32
    %c8_i32_91 = arith.constant 8 : i32
    %675 = arith.muli %c16_i32, %c8_i32_91 : i32
    %676 = tpu.assume_multiple %675, 8 : i32
    %677 = tpu.concatenate %658, %674 in 1 : vector<8x32xf32>, vector<8x32xf32> -> vector<8x64xf32>
    %678 = arith.truncf %677 : vector<8x64xf32> to vector<8x64xbf16>
    %cst_92 = arith.constant dense<0.000000e+00> : vector<8x256xf32>
    %679 = tpu.matmul %678, %8, %cst_92 {dimension_numbers = #tpu.dot_dimension_numbers<[1], [0], [0], [1], [0, 0, 1, 1], [], []>} : vector<8x64xbf16>, vector<64x256xbf16>, vector<8x256xf32> -> vector<8x256xf32>
    %680 = vector.extract_strided_slice %679 {offsets = [0, 0], sizes = [8, 128], strides = [1, 1]} : vector<8x256xf32> to vector<8x128xf32>
    %681 = arith.index_cast %676 : i32 to index
    %c0_93 = arith.constant 0 : index
    %682 = vector.load %arg13[%681, %c0_93] : memref<240x128xf32, #tpu.memory_space<vmem>>, vector<8x128xf32>
    %683 = arith.addf %680, %682 : vector<8x128xf32>
    %684 = vector.extract_strided_slice %679 {offsets = [0, 128], sizes = [8, 128], strides = [1, 1]} : vector<8x256xf32> to vector<8x128xf32>
    %685 = arith.addf %684, %11 : vector<8x128xf32>
    %686 = vector.extract_strided_slice %683 {offsets = [0, 0], sizes = [8, 96], strides = [1, 1]} : vector<8x128xf32> to vector<8x96xf32>
    %687 = arith.negf %686 : vector<8x96xf32>
    %688 = math.exp %687 : vector<8x96xf32>
    %cst_94 = arith.constant 1.000000e+00 : f32
    %689 = vector.broadcast %cst_94 : f32 to vector<8x96xf32>
    %690 = arith.addf %689, %688 : vector<8x96xf32>
    %691 = arith.divf %689, %690 : vector<8x96xf32>
    %692 = vector.extract_strided_slice %683 {offsets = [0, 96], sizes = [8, 32], strides = [1, 1]} : vector<8x128xf32> to vector<8x32xf32>
    %693 = math.tanh %692 : vector<8x32xf32>
    %694 = vector.extract_strided_slice %691 {offsets = [0, 32], sizes = [8, 32], strides = [1, 1]} : vector<8x96xf32> to vector<8x32xf32>
    %695 = arith.mulf %694, %655 : vector<8x32xf32>
    %696 = vector.extract_strided_slice %691 {offsets = [0, 0], sizes = [8, 32], strides = [1, 1]} : vector<8x96xf32> to vector<8x32xf32>
    %697 = arith.mulf %696, %693 : vector<8x32xf32>
    %698 = arith.addf %695, %697 : vector<8x32xf32>
    %699 = vector.extract_strided_slice %691 {offsets = [0, 64], sizes = [8, 32], strides = [1, 1]} : vector<8x96xf32> to vector<8x32xf32>
    %700 = math.tanh %698 : vector<8x32xf32>
    %701 = arith.mulf %699, %700 : vector<8x32xf32>
    %702 = vector.extract_strided_slice %685 {offsets = [0, 0], sizes = [8, 96], strides = [1, 1]} : vector<8x128xf32> to vector<8x96xf32>
    %703 = arith.negf %702 : vector<8x96xf32>
    %704 = math.exp %703 : vector<8x96xf32>
    %cst_95 = arith.constant 1.000000e+00 : f32
    %705 = vector.broadcast %cst_95 : f32 to vector<8x96xf32>
    %706 = arith.addf %705, %704 : vector<8x96xf32>
    %707 = arith.divf %705, %706 : vector<8x96xf32>
    %708 = vector.extract_strided_slice %685 {offsets = [0, 96], sizes = [8, 32], strides = [1, 1]} : vector<8x128xf32> to vector<8x32xf32>
    %709 = math.tanh %708 : vector<8x32xf32>
    %710 = vector.extract_strided_slice %707 {offsets = [0, 32], sizes = [8, 32], strides = [1, 1]} : vector<8x96xf32> to vector<8x32xf32>
    %711 = arith.mulf %710, %671 : vector<8x32xf32>
    %712 = vector.extract_strided_slice %707 {offsets = [0, 0], sizes = [8, 32], strides = [1, 1]} : vector<8x96xf32> to vector<8x32xf32>
    %713 = arith.mulf %712, %709 : vector<8x32xf32>
    %714 = arith.addf %711, %713 : vector<8x32xf32>
    %715 = vector.extract_strided_slice %707 {offsets = [0, 64], sizes = [8, 32], strides = [1, 1]} : vector<8x96xf32> to vector<8x32xf32>
    %716 = math.tanh %714 : vector<8x32xf32>
    %717 = arith.mulf %715, %716 : vector<8x32xf32>
    %c17_i32 = arith.constant 17 : i32
    %c8_i32_96 = arith.constant 8 : i32
    %718 = arith.muli %c17_i32, %c8_i32_96 : i32
    %719 = tpu.assume_multiple %718, 8 : i32
    %720 = tpu.concatenate %701, %717 in 1 : vector<8x32xf32>, vector<8x32xf32> -> vector<8x64xf32>
    %721 = arith.truncf %720 : vector<8x64xf32> to vector<8x64xbf16>
    %cst_97 = arith.constant dense<0.000000e+00> : vector<8x256xf32>
    %722 = tpu.matmul %721, %8, %cst_97 {dimension_numbers = #tpu.dot_dimension_numbers<[1], [0], [0], [1], [0, 0, 1, 1], [], []>} : vector<8x64xbf16>, vector<64x256xbf16>, vector<8x256xf32> -> vector<8x256xf32>
    %723 = vector.extract_strided_slice %722 {offsets = [0, 0], sizes = [8, 128], strides = [1, 1]} : vector<8x256xf32> to vector<8x128xf32>
    %724 = arith.index_cast %719 : i32 to index
    %c0_98 = arith.constant 0 : index
    %725 = vector.load %arg13[%724, %c0_98] : memref<240x128xf32, #tpu.memory_space<vmem>>, vector<8x128xf32>
    %726 = arith.addf %723, %725 : vector<8x128xf32>
    %727 = vector.extract_strided_slice %722 {offsets = [0, 128], sizes = [8, 128], strides = [1, 1]} : vector<8x256xf32> to vector<8x128xf32>
    %728 = arith.addf %727, %11 : vector<8x128xf32>
    %729 = vector.extract_strided_slice %726 {offsets = [0, 0], sizes = [8, 96], strides = [1, 1]} : vector<8x128xf32> to vector<8x96xf32>
    %730 = arith.negf %729 : vector<8x96xf32>
    %731 = math.exp %730 : vector<8x96xf32>
    %cst_99 = arith.constant 1.000000e+00 : f32
    %732 = vector.broadcast %cst_99 : f32 to vector<8x96xf32>
    %733 = arith.addf %732, %731 : vector<8x96xf32>
    %734 = arith.divf %732, %733 : vector<8x96xf32>
    %735 = vector.extract_strided_slice %726 {offsets = [0, 96], sizes = [8, 32], strides = [1, 1]} : vector<8x128xf32> to vector<8x32xf32>
    %736 = math.tanh %735 : vector<8x32xf32>
    %737 = vector.extract_strided_slice %734 {offsets = [0, 32], sizes = [8, 32], strides = [1, 1]} : vector<8x96xf32> to vector<8x32xf32>
    %738 = arith.mulf %737, %698 : vector<8x32xf32>
    %739 = vector.extract_strided_slice %734 {offsets = [0, 0], sizes = [8, 32], strides = [1, 1]} : vector<8x96xf32> to vector<8x32xf32>
    %740 = arith.mulf %739, %736 : vector<8x32xf32>
    %741 = arith.addf %738, %740 : vector<8x32xf32>
    %742 = vector.extract_strided_slice %734 {offsets = [0, 64], sizes = [8, 32], strides = [1, 1]} : vector<8x96xf32> to vector<8x32xf32>
    %743 = math.tanh %741 : vector<8x32xf32>
    %744 = arith.mulf %742, %743 : vector<8x32xf32>
    %745 = vector.extract_strided_slice %728 {offsets = [0, 0], sizes = [8, 96], strides = [1, 1]} : vector<8x128xf32> to vector<8x96xf32>
    %746 = arith.negf %745 : vector<8x96xf32>
    %747 = math.exp %746 : vector<8x96xf32>
    %cst_100 = arith.constant 1.000000e+00 : f32
    %748 = vector.broadcast %cst_100 : f32 to vector<8x96xf32>
    %749 = arith.addf %748, %747 : vector<8x96xf32>
    %750 = arith.divf %748, %749 : vector<8x96xf32>
    %751 = vector.extract_strided_slice %728 {offsets = [0, 96], sizes = [8, 32], strides = [1, 1]} : vector<8x128xf32> to vector<8x32xf32>
    %752 = math.tanh %751 : vector<8x32xf32>
    %753 = vector.extract_strided_slice %750 {offsets = [0, 32], sizes = [8, 32], strides = [1, 1]} : vector<8x96xf32> to vector<8x32xf32>
    %754 = arith.mulf %753, %714 : vector<8x32xf32>
    %755 = vector.extract_strided_slice %750 {offsets = [0, 0], sizes = [8, 32], strides = [1, 1]} : vector<8x96xf32> to vector<8x32xf32>
    %756 = arith.mulf %755, %752 : vector<8x32xf32>
    %757 = arith.addf %754, %756 : vector<8x32xf32>
    %758 = vector.extract_strided_slice %750 {offsets = [0, 64], sizes = [8, 32], strides = [1, 1]} : vector<8x96xf32> to vector<8x32xf32>
    %759 = math.tanh %757 : vector<8x32xf32>
    %760 = arith.mulf %758, %759 : vector<8x32xf32>
    %c18_i32 = arith.constant 18 : i32
    %c8_i32_101 = arith.constant 8 : i32
    %761 = arith.muli %c18_i32, %c8_i32_101 : i32
    %762 = tpu.assume_multiple %761, 8 : i32
    %763 = tpu.concatenate %744, %760 in 1 : vector<8x32xf32>, vector<8x32xf32> -> vector<8x64xf32>
    %764 = arith.truncf %763 : vector<8x64xf32> to vector<8x64xbf16>
    %cst_102 = arith.constant dense<0.000000e+00> : vector<8x256xf32>
    %765 = tpu.matmul %764, %8, %cst_102 {dimension_numbers = #tpu.dot_dimension_numbers<[1], [0], [0], [1], [0, 0, 1, 1], [], []>} : vector<8x64xbf16>, vector<64x256xbf16>, vector<8x256xf32> -> vector<8x256xf32>
    %766 = vector.extract_strided_slice %765 {offsets = [0, 0], sizes = [8, 128], strides = [1, 1]} : vector<8x256xf32> to vector<8x128xf32>
    %767 = arith.index_cast %762 : i32 to index
    %c0_103 = arith.constant 0 : index
    %768 = vector.load %arg13[%767, %c0_103] : memref<240x128xf32, #tpu.memory_space<vmem>>, vector<8x128xf32>
    %769 = arith.addf %766, %768 : vector<8x128xf32>
    %770 = vector.extract_strided_slice %765 {offsets = [0, 128], sizes = [8, 128], strides = [1, 1]} : vector<8x256xf32> to vector<8x128xf32>
    %771 = arith.addf %770, %11 : vector<8x128xf32>
    %772 = vector.extract_strided_slice %769 {offsets = [0, 0], sizes = [8, 96], strides = [1, 1]} : vector<8x128xf32> to vector<8x96xf32>
    %773 = arith.negf %772 : vector<8x96xf32>
    %774 = math.exp %773 : vector<8x96xf32>
    %cst_104 = arith.constant 1.000000e+00 : f32
    %775 = vector.broadcast %cst_104 : f32 to vector<8x96xf32>
    %776 = arith.addf %775, %774 : vector<8x96xf32>
    %777 = arith.divf %775, %776 : vector<8x96xf32>
    %778 = vector.extract_strided_slice %769 {offsets = [0, 96], sizes = [8, 32], strides = [1, 1]} : vector<8x128xf32> to vector<8x32xf32>
    %779 = math.tanh %778 : vector<8x32xf32>
    %780 = vector.extract_strided_slice %777 {offsets = [0, 32], sizes = [8, 32], strides = [1, 1]} : vector<8x96xf32> to vector<8x32xf32>
    %781 = arith.mulf %780, %741 : vector<8x32xf32>
    %782 = vector.extract_strided_slice %777 {offsets = [0, 0], sizes = [8, 32], strides = [1, 1]} : vector<8x96xf32> to vector<8x32xf32>
    %783 = arith.mulf %782, %779 : vector<8x32xf32>
    %784 = arith.addf %781, %783 : vector<8x32xf32>
    %785 = vector.extract_strided_slice %777 {offsets = [0, 64], sizes = [8, 32], strides = [1, 1]} : vector<8x96xf32> to vector<8x32xf32>
    %786 = math.tanh %784 : vector<8x32xf32>
    %787 = arith.mulf %785, %786 : vector<8x32xf32>
    %788 = vector.extract_strided_slice %771 {offsets = [0, 0], sizes = [8, 96], strides = [1, 1]} : vector<8x128xf32> to vector<8x96xf32>
    %789 = arith.negf %788 : vector<8x96xf32>
    %790 = math.exp %789 : vector<8x96xf32>
    %cst_105 = arith.constant 1.000000e+00 : f32
    %791 = vector.broadcast %cst_105 : f32 to vector<8x96xf32>
    %792 = arith.addf %791, %790 : vector<8x96xf32>
    %793 = arith.divf %791, %792 : vector<8x96xf32>
    %794 = vector.extract_strided_slice %771 {offsets = [0, 96], sizes = [8, 32], strides = [1, 1]} : vector<8x128xf32> to vector<8x32xf32>
    %795 = math.tanh %794 : vector<8x32xf32>
    %796 = vector.extract_strided_slice %793 {offsets = [0, 32], sizes = [8, 32], strides = [1, 1]} : vector<8x96xf32> to vector<8x32xf32>
    %797 = arith.mulf %796, %757 : vector<8x32xf32>
    %798 = vector.extract_strided_slice %793 {offsets = [0, 0], sizes = [8, 32], strides = [1, 1]} : vector<8x96xf32> to vector<8x32xf32>
    %799 = arith.mulf %798, %795 : vector<8x32xf32>
    %800 = arith.addf %797, %799 : vector<8x32xf32>
    %801 = vector.extract_strided_slice %793 {offsets = [0, 64], sizes = [8, 32], strides = [1, 1]} : vector<8x96xf32> to vector<8x32xf32>
    %802 = math.tanh %800 : vector<8x32xf32>
    %803 = arith.mulf %801, %802 : vector<8x32xf32>
    %c19_i32 = arith.constant 19 : i32
    %c8_i32_106 = arith.constant 8 : i32
    %804 = arith.muli %c19_i32, %c8_i32_106 : i32
    %805 = tpu.assume_multiple %804, 8 : i32
    %806 = tpu.concatenate %787, %803 in 1 : vector<8x32xf32>, vector<8x32xf32> -> vector<8x64xf32>
    %807 = arith.truncf %806 : vector<8x64xf32> to vector<8x64xbf16>
    %cst_107 = arith.constant dense<0.000000e+00> : vector<8x256xf32>
    %808 = tpu.matmul %807, %8, %cst_107 {dimension_numbers = #tpu.dot_dimension_numbers<[1], [0], [0], [1], [0, 0, 1, 1], [], []>} : vector<8x64xbf16>, vector<64x256xbf16>, vector<8x256xf32> -> vector<8x256xf32>
    %809 = vector.extract_strided_slice %808 {offsets = [0, 0], sizes = [8, 128], strides = [1, 1]} : vector<8x256xf32> to vector<8x128xf32>
    %810 = arith.index_cast %805 : i32 to index
    %c0_108 = arith.constant 0 : index
    %811 = vector.load %arg13[%810, %c0_108] : memref<240x128xf32, #tpu.memory_space<vmem>>, vector<8x128xf32>
    %812 = arith.addf %809, %811 : vector<8x128xf32>
    %813 = vector.extract_strided_slice %808 {offsets = [0, 128], sizes = [8, 128], strides = [1, 1]} : vector<8x256xf32> to vector<8x128xf32>
    %814 = arith.addf %813, %11 : vector<8x128xf32>
    %815 = vector.extract_strided_slice %812 {offsets = [0, 0], sizes = [8, 96], strides = [1, 1]} : vector<8x128xf32> to vector<8x96xf32>
    %816 = arith.negf %815 : vector<8x96xf32>
    %817 = math.exp %816 : vector<8x96xf32>
    %cst_109 = arith.constant 1.000000e+00 : f32
    %818 = vector.broadcast %cst_109 : f32 to vector<8x96xf32>
    %819 = arith.addf %818, %817 : vector<8x96xf32>
    %820 = arith.divf %818, %819 : vector<8x96xf32>
    %821 = vector.extract_strided_slice %812 {offsets = [0, 96], sizes = [8, 32], strides = [1, 1]} : vector<8x128xf32> to vector<8x32xf32>
    %822 = math.tanh %821 : vector<8x32xf32>
    %823 = vector.extract_strided_slice %820 {offsets = [0, 32], sizes = [8, 32], strides = [1, 1]} : vector<8x96xf32> to vector<8x32xf32>
    %824 = arith.mulf %823, %784 : vector<8x32xf32>
    %825 = vector.extract_strided_slice %820 {offsets = [0, 0], sizes = [8, 32], strides = [1, 1]} : vector<8x96xf32> to vector<8x32xf32>
    %826 = arith.mulf %825, %822 : vector<8x32xf32>
    %827 = arith.addf %824, %826 : vector<8x32xf32>
    %828 = vector.extract_strided_slice %820 {offsets = [0, 64], sizes = [8, 32], strides = [1, 1]} : vector<8x96xf32> to vector<8x32xf32>
    %829 = math.tanh %827 : vector<8x32xf32>
    %830 = arith.mulf %828, %829 : vector<8x32xf32>
    %831 = vector.extract_strided_slice %814 {offsets = [0, 0], sizes = [8, 96], strides = [1, 1]} : vector<8x128xf32> to vector<8x96xf32>
    %832 = arith.negf %831 : vector<8x96xf32>
    %833 = math.exp %832 : vector<8x96xf32>
    %cst_110 = arith.constant 1.000000e+00 : f32
    %834 = vector.broadcast %cst_110 : f32 to vector<8x96xf32>
    %835 = arith.addf %834, %833 : vector<8x96xf32>
    %836 = arith.divf %834, %835 : vector<8x96xf32>
    %837 = vector.extract_strided_slice %814 {offsets = [0, 96], sizes = [8, 32], strides = [1, 1]} : vector<8x128xf32> to vector<8x32xf32>
    %838 = math.tanh %837 : vector<8x32xf32>
    %839 = vector.extract_strided_slice %836 {offsets = [0, 32], sizes = [8, 32], strides = [1, 1]} : vector<8x96xf32> to vector<8x32xf32>
    %840 = arith.mulf %839, %800 : vector<8x32xf32>
    %841 = vector.extract_strided_slice %836 {offsets = [0, 0], sizes = [8, 32], strides = [1, 1]} : vector<8x96xf32> to vector<8x32xf32>
    %842 = arith.mulf %841, %838 : vector<8x32xf32>
    %843 = arith.addf %840, %842 : vector<8x32xf32>
    %844 = vector.extract_strided_slice %836 {offsets = [0, 64], sizes = [8, 32], strides = [1, 1]} : vector<8x96xf32> to vector<8x32xf32>
    %845 = math.tanh %843 : vector<8x32xf32>
    %846 = arith.mulf %844, %845 : vector<8x32xf32>
    %c20_i32 = arith.constant 20 : i32
    %c8_i32_111 = arith.constant 8 : i32
    %847 = arith.muli %c20_i32, %c8_i32_111 : i32
    %848 = tpu.assume_multiple %847, 8 : i32
    %849 = tpu.concatenate %830, %846 in 1 : vector<8x32xf32>, vector<8x32xf32> -> vector<8x64xf32>
    %850 = arith.truncf %849 : vector<8x64xf32> to vector<8x64xbf16>
    %cst_112 = arith.constant dense<0.000000e+00> : vector<8x256xf32>
    %851 = tpu.matmul %850, %8, %cst_112 {dimension_numbers = #tpu.dot_dimension_numbers<[1], [0], [0], [1], [0, 0, 1, 1], [], []>} : vector<8x64xbf16>, vector<64x256xbf16>, vector<8x256xf32> -> vector<8x256xf32>
    %852 = vector.extract_strided_slice %851 {offsets = [0, 0], sizes = [8, 128], strides = [1, 1]} : vector<8x256xf32> to vector<8x128xf32>
    %853 = arith.index_cast %848 : i32 to index
    %c0_113 = arith.constant 0 : index
    %854 = vector.load %arg13[%853, %c0_113] : memref<240x128xf32, #tpu.memory_space<vmem>>, vector<8x128xf32>
    %855 = arith.addf %852, %854 : vector<8x128xf32>
    %856 = vector.extract_strided_slice %851 {offsets = [0, 128], sizes = [8, 128], strides = [1, 1]} : vector<8x256xf32> to vector<8x128xf32>
    %857 = arith.addf %856, %11 : vector<8x128xf32>
    %858 = vector.extract_strided_slice %855 {offsets = [0, 0], sizes = [8, 96], strides = [1, 1]} : vector<8x128xf32> to vector<8x96xf32>
    %859 = arith.negf %858 : vector<8x96xf32>
    %860 = math.exp %859 : vector<8x96xf32>
    %cst_114 = arith.constant 1.000000e+00 : f32
    %861 = vector.broadcast %cst_114 : f32 to vector<8x96xf32>
    %862 = arith.addf %861, %860 : vector<8x96xf32>
    %863 = arith.divf %861, %862 : vector<8x96xf32>
    %864 = vector.extract_strided_slice %855 {offsets = [0, 96], sizes = [8, 32], strides = [1, 1]} : vector<8x128xf32> to vector<8x32xf32>
    %865 = math.tanh %864 : vector<8x32xf32>
    %866 = vector.extract_strided_slice %863 {offsets = [0, 32], sizes = [8, 32], strides = [1, 1]} : vector<8x96xf32> to vector<8x32xf32>
    %867 = arith.mulf %866, %827 : vector<8x32xf32>
    %868 = vector.extract_strided_slice %863 {offsets = [0, 0], sizes = [8, 32], strides = [1, 1]} : vector<8x96xf32> to vector<8x32xf32>
    %869 = arith.mulf %868, %865 : vector<8x32xf32>
    %870 = arith.addf %867, %869 : vector<8x32xf32>
    %871 = vector.extract_strided_slice %863 {offsets = [0, 64], sizes = [8, 32], strides = [1, 1]} : vector<8x96xf32> to vector<8x32xf32>
    %872 = math.tanh %870 : vector<8x32xf32>
    %873 = arith.mulf %871, %872 : vector<8x32xf32>
    %874 = vector.extract_strided_slice %857 {offsets = [0, 0], sizes = [8, 96], strides = [1, 1]} : vector<8x128xf32> to vector<8x96xf32>
    %875 = arith.negf %874 : vector<8x96xf32>
    %876 = math.exp %875 : vector<8x96xf32>
    %cst_115 = arith.constant 1.000000e+00 : f32
    %877 = vector.broadcast %cst_115 : f32 to vector<8x96xf32>
    %878 = arith.addf %877, %876 : vector<8x96xf32>
    %879 = arith.divf %877, %878 : vector<8x96xf32>
    %880 = vector.extract_strided_slice %857 {offsets = [0, 96], sizes = [8, 32], strides = [1, 1]} : vector<8x128xf32> to vector<8x32xf32>
    %881 = math.tanh %880 : vector<8x32xf32>
    %882 = vector.extract_strided_slice %879 {offsets = [0, 32], sizes = [8, 32], strides = [1, 1]} : vector<8x96xf32> to vector<8x32xf32>
    %883 = arith.mulf %882, %843 : vector<8x32xf32>
    %884 = vector.extract_strided_slice %879 {offsets = [0, 0], sizes = [8, 32], strides = [1, 1]} : vector<8x96xf32> to vector<8x32xf32>
    %885 = arith.mulf %884, %881 : vector<8x32xf32>
    %886 = arith.addf %883, %885 : vector<8x32xf32>
    %887 = vector.extract_strided_slice %879 {offsets = [0, 64], sizes = [8, 32], strides = [1, 1]} : vector<8x96xf32> to vector<8x32xf32>
    %888 = math.tanh %886 : vector<8x32xf32>
    %889 = arith.mulf %887, %888 : vector<8x32xf32>
    %c21_i32 = arith.constant 21 : i32
    %c8_i32_116 = arith.constant 8 : i32
    %890 = arith.muli %c21_i32, %c8_i32_116 : i32
    %891 = tpu.assume_multiple %890, 8 : i32
    %892 = tpu.concatenate %873, %889 in 1 : vector<8x32xf32>, vector<8x32xf32> -> vector<8x64xf32>
    %893 = arith.truncf %892 : vector<8x64xf32> to vector<8x64xbf16>
    %cst_117 = arith.constant dense<0.000000e+00> : vector<8x256xf32>
    %894 = tpu.matmul %893, %8, %cst_117 {dimension_numbers = #tpu.dot_dimension_numbers<[1], [0], [0], [1], [0, 0, 1, 1], [], []>} : vector<8x64xbf16>, vector<64x256xbf16>, vector<8x256xf32> -> vector<8x256xf32>
    %895 = vector.extract_strided_slice %894 {offsets = [0, 0], sizes = [8, 128], strides = [1, 1]} : vector<8x256xf32> to vector<8x128xf32>
    %896 = arith.index_cast %891 : i32 to index
    %c0_118 = arith.constant 0 : index
    %897 = vector.load %arg13[%896, %c0_118] : memref<240x128xf32, #tpu.memory_space<vmem>>, vector<8x128xf32>
    %898 = arith.addf %895, %897 : vector<8x128xf32>
    %899 = vector.extract_strided_slice %894 {offsets = [0, 128], sizes = [8, 128], strides = [1, 1]} : vector<8x256xf32> to vector<8x128xf32>
    %900 = arith.addf %899, %11 : vector<8x128xf32>
    %901 = vector.extract_strided_slice %898 {offsets = [0, 0], sizes = [8, 96], strides = [1, 1]} : vector<8x128xf32> to vector<8x96xf32>
    %902 = arith.negf %901 : vector<8x96xf32>
    %903 = math.exp %902 : vector<8x96xf32>
    %cst_119 = arith.constant 1.000000e+00 : f32
    %904 = vector.broadcast %cst_119 : f32 to vector<8x96xf32>
    %905 = arith.addf %904, %903 : vector<8x96xf32>
    %906 = arith.divf %904, %905 : vector<8x96xf32>
    %907 = vector.extract_strided_slice %898 {offsets = [0, 96], sizes = [8, 32], strides = [1, 1]} : vector<8x128xf32> to vector<8x32xf32>
    %908 = math.tanh %907 : vector<8x32xf32>
    %909 = vector.extract_strided_slice %906 {offsets = [0, 32], sizes = [8, 32], strides = [1, 1]} : vector<8x96xf32> to vector<8x32xf32>
    %910 = arith.mulf %909, %870 : vector<8x32xf32>
    %911 = vector.extract_strided_slice %906 {offsets = [0, 0], sizes = [8, 32], strides = [1, 1]} : vector<8x96xf32> to vector<8x32xf32>
    %912 = arith.mulf %911, %908 : vector<8x32xf32>
    %913 = arith.addf %910, %912 : vector<8x32xf32>
    %914 = vector.extract_strided_slice %906 {offsets = [0, 64], sizes = [8, 32], strides = [1, 1]} : vector<8x96xf32> to vector<8x32xf32>
    %915 = math.tanh %913 : vector<8x32xf32>
    %916 = arith.mulf %914, %915 : vector<8x32xf32>
    %917 = vector.extract_strided_slice %900 {offsets = [0, 0], sizes = [8, 96], strides = [1, 1]} : vector<8x128xf32> to vector<8x96xf32>
    %918 = arith.negf %917 : vector<8x96xf32>
    %919 = math.exp %918 : vector<8x96xf32>
    %cst_120 = arith.constant 1.000000e+00 : f32
    %920 = vector.broadcast %cst_120 : f32 to vector<8x96xf32>
    %921 = arith.addf %920, %919 : vector<8x96xf32>
    %922 = arith.divf %920, %921 : vector<8x96xf32>
    %923 = vector.extract_strided_slice %900 {offsets = [0, 96], sizes = [8, 32], strides = [1, 1]} : vector<8x128xf32> to vector<8x32xf32>
    %924 = math.tanh %923 : vector<8x32xf32>
    %925 = vector.extract_strided_slice %922 {offsets = [0, 32], sizes = [8, 32], strides = [1, 1]} : vector<8x96xf32> to vector<8x32xf32>
    %926 = arith.mulf %925, %886 : vector<8x32xf32>
    %927 = vector.extract_strided_slice %922 {offsets = [0, 0], sizes = [8, 32], strides = [1, 1]} : vector<8x96xf32> to vector<8x32xf32>
    %928 = arith.mulf %927, %924 : vector<8x32xf32>
    %929 = arith.addf %926, %928 : vector<8x32xf32>
    %930 = vector.extract_strided_slice %922 {offsets = [0, 64], sizes = [8, 32], strides = [1, 1]} : vector<8x96xf32> to vector<8x32xf32>
    %931 = math.tanh %929 : vector<8x32xf32>
    %932 = arith.mulf %930, %931 : vector<8x32xf32>
    %c22_i32 = arith.constant 22 : i32
    %c8_i32_121 = arith.constant 8 : i32
    %933 = arith.muli %c22_i32, %c8_i32_121 : i32
    %934 = tpu.assume_multiple %933, 8 : i32
    %935 = tpu.concatenate %916, %932 in 1 : vector<8x32xf32>, vector<8x32xf32> -> vector<8x64xf32>
    %936 = arith.truncf %935 : vector<8x64xf32> to vector<8x64xbf16>
    %cst_122 = arith.constant dense<0.000000e+00> : vector<8x256xf32>
    %937 = tpu.matmul %936, %8, %cst_122 {dimension_numbers = #tpu.dot_dimension_numbers<[1], [0], [0], [1], [0, 0, 1, 1], [], []>} : vector<8x64xbf16>, vector<64x256xbf16>, vector<8x256xf32> -> vector<8x256xf32>
    %938 = vector.extract_strided_slice %937 {offsets = [0, 0], sizes = [8, 128], strides = [1, 1]} : vector<8x256xf32> to vector<8x128xf32>
    %939 = arith.index_cast %934 : i32 to index
    %c0_123 = arith.constant 0 : index
    %940 = vector.load %arg13[%939, %c0_123] : memref<240x128xf32, #tpu.memory_space<vmem>>, vector<8x128xf32>
    %941 = arith.addf %938, %940 : vector<8x128xf32>
    %942 = vector.extract_strided_slice %937 {offsets = [0, 128], sizes = [8, 128], strides = [1, 1]} : vector<8x256xf32> to vector<8x128xf32>
    %943 = arith.addf %942, %11 : vector<8x128xf32>
    %944 = vector.extract_strided_slice %941 {offsets = [0, 0], sizes = [8, 96], strides = [1, 1]} : vector<8x128xf32> to vector<8x96xf32>
    %945 = arith.negf %944 : vector<8x96xf32>
    %946 = math.exp %945 : vector<8x96xf32>
    %cst_124 = arith.constant 1.000000e+00 : f32
    %947 = vector.broadcast %cst_124 : f32 to vector<8x96xf32>
    %948 = arith.addf %947, %946 : vector<8x96xf32>
    %949 = arith.divf %947, %948 : vector<8x96xf32>
    %950 = vector.extract_strided_slice %941 {offsets = [0, 96], sizes = [8, 32], strides = [1, 1]} : vector<8x128xf32> to vector<8x32xf32>
    %951 = math.tanh %950 : vector<8x32xf32>
    %952 = vector.extract_strided_slice %949 {offsets = [0, 32], sizes = [8, 32], strides = [1, 1]} : vector<8x96xf32> to vector<8x32xf32>
    %953 = arith.mulf %952, %913 : vector<8x32xf32>
    %954 = vector.extract_strided_slice %949 {offsets = [0, 0], sizes = [8, 32], strides = [1, 1]} : vector<8x96xf32> to vector<8x32xf32>
    %955 = arith.mulf %954, %951 : vector<8x32xf32>
    %956 = arith.addf %953, %955 : vector<8x32xf32>
    %957 = vector.extract_strided_slice %949 {offsets = [0, 64], sizes = [8, 32], strides = [1, 1]} : vector<8x96xf32> to vector<8x32xf32>
    %958 = math.tanh %956 : vector<8x32xf32>
    %959 = arith.mulf %957, %958 : vector<8x32xf32>
    %960 = vector.extract_strided_slice %943 {offsets = [0, 0], sizes = [8, 96], strides = [1, 1]} : vector<8x128xf32> to vector<8x96xf32>
    %961 = arith.negf %960 : vector<8x96xf32>
    %962 = math.exp %961 : vector<8x96xf32>
    %cst_125 = arith.constant 1.000000e+00 : f32
    %963 = vector.broadcast %cst_125 : f32 to vector<8x96xf32>
    %964 = arith.addf %963, %962 : vector<8x96xf32>
    %965 = arith.divf %963, %964 : vector<8x96xf32>
    %966 = vector.extract_strided_slice %943 {offsets = [0, 96], sizes = [8, 32], strides = [1, 1]} : vector<8x128xf32> to vector<8x32xf32>
    %967 = math.tanh %966 : vector<8x32xf32>
    %968 = vector.extract_strided_slice %965 {offsets = [0, 32], sizes = [8, 32], strides = [1, 1]} : vector<8x96xf32> to vector<8x32xf32>
    %969 = arith.mulf %968, %929 : vector<8x32xf32>
    %970 = vector.extract_strided_slice %965 {offsets = [0, 0], sizes = [8, 32], strides = [1, 1]} : vector<8x96xf32> to vector<8x32xf32>
    %971 = arith.mulf %970, %967 : vector<8x32xf32>
    %972 = arith.addf %969, %971 : vector<8x32xf32>
    %973 = vector.extract_strided_slice %965 {offsets = [0, 64], sizes = [8, 32], strides = [1, 1]} : vector<8x96xf32> to vector<8x32xf32>
    %974 = math.tanh %972 : vector<8x32xf32>
    %975 = arith.mulf %973, %974 : vector<8x32xf32>
    %c23_i32 = arith.constant 23 : i32
    %c8_i32_126 = arith.constant 8 : i32
    %976 = arith.muli %c23_i32, %c8_i32_126 : i32
    %977 = tpu.assume_multiple %976, 8 : i32
    %978 = tpu.concatenate %959, %975 in 1 : vector<8x32xf32>, vector<8x32xf32> -> vector<8x64xf32>
    %979 = arith.truncf %978 : vector<8x64xf32> to vector<8x64xbf16>
    %cst_127 = arith.constant dense<0.000000e+00> : vector<8x256xf32>
    %980 = tpu.matmul %979, %8, %cst_127 {dimension_numbers = #tpu.dot_dimension_numbers<[1], [0], [0], [1], [0, 0, 1, 1], [], []>} : vector<8x64xbf16>, vector<64x256xbf16>, vector<8x256xf32> -> vector<8x256xf32>
    %981 = vector.extract_strided_slice %980 {offsets = [0, 0], sizes = [8, 128], strides = [1, 1]} : vector<8x256xf32> to vector<8x128xf32>
    %982 = arith.index_cast %977 : i32 to index
    %c0_128 = arith.constant 0 : index
    %983 = vector.load %arg13[%982, %c0_128] : memref<240x128xf32, #tpu.memory_space<vmem>>, vector<8x128xf32>
    %984 = arith.addf %981, %983 : vector<8x128xf32>
    %985 = vector.extract_strided_slice %980 {offsets = [0, 128], sizes = [8, 128], strides = [1, 1]} : vector<8x256xf32> to vector<8x128xf32>
    %986 = arith.addf %985, %11 : vector<8x128xf32>
    %987 = vector.extract_strided_slice %984 {offsets = [0, 0], sizes = [8, 96], strides = [1, 1]} : vector<8x128xf32> to vector<8x96xf32>
    %988 = arith.negf %987 : vector<8x96xf32>
    %989 = math.exp %988 : vector<8x96xf32>
    %cst_129 = arith.constant 1.000000e+00 : f32
    %990 = vector.broadcast %cst_129 : f32 to vector<8x96xf32>
    %991 = arith.addf %990, %989 : vector<8x96xf32>
    %992 = arith.divf %990, %991 : vector<8x96xf32>
    %993 = vector.extract_strided_slice %984 {offsets = [0, 96], sizes = [8, 32], strides = [1, 1]} : vector<8x128xf32> to vector<8x32xf32>
    %994 = math.tanh %993 : vector<8x32xf32>
    %995 = vector.extract_strided_slice %992 {offsets = [0, 32], sizes = [8, 32], strides = [1, 1]} : vector<8x96xf32> to vector<8x32xf32>
    %996 = arith.mulf %995, %956 : vector<8x32xf32>
    %997 = vector.extract_strided_slice %992 {offsets = [0, 0], sizes = [8, 32], strides = [1, 1]} : vector<8x96xf32> to vector<8x32xf32>
    %998 = arith.mulf %997, %994 : vector<8x32xf32>
    %999 = arith.addf %996, %998 : vector<8x32xf32>
    %1000 = vector.extract_strided_slice %992 {offsets = [0, 64], sizes = [8, 32], strides = [1, 1]} : vector<8x96xf32> to vector<8x32xf32>
    %1001 = math.tanh %999 : vector<8x32xf32>
    %1002 = arith.mulf %1000, %1001 : vector<8x32xf32>
    %1003 = vector.extract_strided_slice %986 {offsets = [0, 0], sizes = [8, 96], strides = [1, 1]} : vector<8x128xf32> to vector<8x96xf32>
    %1004 = arith.negf %1003 : vector<8x96xf32>
    %1005 = math.exp %1004 : vector<8x96xf32>
    %cst_130 = arith.constant 1.000000e+00 : f32
    %1006 = vector.broadcast %cst_130 : f32 to vector<8x96xf32>
    %1007 = arith.addf %1006, %1005 : vector<8x96xf32>
    %1008 = arith.divf %1006, %1007 : vector<8x96xf32>
    %1009 = vector.extract_strided_slice %986 {offsets = [0, 96], sizes = [8, 32], strides = [1, 1]} : vector<8x128xf32> to vector<8x32xf32>
    %1010 = math.tanh %1009 : vector<8x32xf32>
    %1011 = vector.extract_strided_slice %1008 {offsets = [0, 32], sizes = [8, 32], strides = [1, 1]} : vector<8x96xf32> to vector<8x32xf32>
    %1012 = arith.mulf %1011, %972 : vector<8x32xf32>
    %1013 = vector.extract_strided_slice %1008 {offsets = [0, 0], sizes = [8, 32], strides = [1, 1]} : vector<8x96xf32> to vector<8x32xf32>
    %1014 = arith.mulf %1013, %1010 : vector<8x32xf32>
    %1015 = arith.addf %1012, %1014 : vector<8x32xf32>
    %1016 = vector.extract_strided_slice %1008 {offsets = [0, 64], sizes = [8, 32], strides = [1, 1]} : vector<8x96xf32> to vector<8x32xf32>
    %1017 = math.tanh %1015 : vector<8x32xf32>
    %1018 = arith.mulf %1016, %1017 : vector<8x32xf32>
    %c24_i32 = arith.constant 24 : i32
    %c8_i32_131 = arith.constant 8 : i32
    %1019 = arith.muli %c24_i32, %c8_i32_131 : i32
    %1020 = tpu.assume_multiple %1019, 8 : i32
    %1021 = tpu.concatenate %1002, %1018 in 1 : vector<8x32xf32>, vector<8x32xf32> -> vector<8x64xf32>
    %1022 = arith.truncf %1021 : vector<8x64xf32> to vector<8x64xbf16>
    %cst_132 = arith.constant dense<0.000000e+00> : vector<8x256xf32>
    %1023 = tpu.matmul %1022, %8, %cst_132 {dimension_numbers = #tpu.dot_dimension_numbers<[1], [0], [0], [1], [0, 0, 1, 1], [], []>} : vector<8x64xbf16>, vector<64x256xbf16>, vector<8x256xf32> -> vector<8x256xf32>
    %1024 = vector.extract_strided_slice %1023 {offsets = [0, 0], sizes = [8, 128], strides = [1, 1]} : vector<8x256xf32> to vector<8x128xf32>
    %1025 = arith.index_cast %1020 : i32 to index
    %c0_133 = arith.constant 0 : index
    %1026 = vector.load %arg13[%1025, %c0_133] : memref<240x128xf32, #tpu.memory_space<vmem>>, vector<8x128xf32>
    %1027 = arith.addf %1024, %1026 : vector<8x128xf32>
    %1028 = vector.extract_strided_slice %1023 {offsets = [0, 128], sizes = [8, 128], strides = [1, 1]} : vector<8x256xf32> to vector<8x128xf32>
    %1029 = arith.addf %1028, %11 : vector<8x128xf32>
    %1030 = vector.extract_strided_slice %1027 {offsets = [0, 0], sizes = [8, 96], strides = [1, 1]} : vector<8x128xf32> to vector<8x96xf32>
    %1031 = arith.negf %1030 : vector<8x96xf32>
    %1032 = math.exp %1031 : vector<8x96xf32>
    %cst_134 = arith.constant 1.000000e+00 : f32
    %1033 = vector.broadcast %cst_134 : f32 to vector<8x96xf32>
    %1034 = arith.addf %1033, %1032 : vector<8x96xf32>
    %1035 = arith.divf %1033, %1034 : vector<8x96xf32>
    %1036 = vector.extract_strided_slice %1027 {offsets = [0, 96], sizes = [8, 32], strides = [1, 1]} : vector<8x128xf32> to vector<8x32xf32>
    %1037 = math.tanh %1036 : vector<8x32xf32>
    %1038 = vector.extract_strided_slice %1035 {offsets = [0, 32], sizes = [8, 32], strides = [1, 1]} : vector<8x96xf32> to vector<8x32xf32>
    %1039 = arith.mulf %1038, %999 : vector<8x32xf32>
    %1040 = vector.extract_strided_slice %1035 {offsets = [0, 0], sizes = [8, 32], strides = [1, 1]} : vector<8x96xf32> to vector<8x32xf32>
    %1041 = arith.mulf %1040, %1037 : vector<8x32xf32>
    %1042 = arith.addf %1039, %1041 : vector<8x32xf32>
    %1043 = vector.extract_strided_slice %1035 {offsets = [0, 64], sizes = [8, 32], strides = [1, 1]} : vector<8x96xf32> to vector<8x32xf32>
    %1044 = math.tanh %1042 : vector<8x32xf32>
    %1045 = arith.mulf %1043, %1044 : vector<8x32xf32>
    %1046 = vector.extract_strided_slice %1029 {offsets = [0, 0], sizes = [8, 96], strides = [1, 1]} : vector<8x128xf32> to vector<8x96xf32>
    %1047 = arith.negf %1046 : vector<8x96xf32>
    %1048 = math.exp %1047 : vector<8x96xf32>
    %cst_135 = arith.constant 1.000000e+00 : f32
    %1049 = vector.broadcast %cst_135 : f32 to vector<8x96xf32>
    %1050 = arith.addf %1049, %1048 : vector<8x96xf32>
    %1051 = arith.divf %1049, %1050 : vector<8x96xf32>
    %1052 = vector.extract_strided_slice %1029 {offsets = [0, 96], sizes = [8, 32], strides = [1, 1]} : vector<8x128xf32> to vector<8x32xf32>
    %1053 = math.tanh %1052 : vector<8x32xf32>
    %1054 = vector.extract_strided_slice %1051 {offsets = [0, 32], sizes = [8, 32], strides = [1, 1]} : vector<8x96xf32> to vector<8x32xf32>
    %1055 = arith.mulf %1054, %1015 : vector<8x32xf32>
    %1056 = vector.extract_strided_slice %1051 {offsets = [0, 0], sizes = [8, 32], strides = [1, 1]} : vector<8x96xf32> to vector<8x32xf32>
    %1057 = arith.mulf %1056, %1053 : vector<8x32xf32>
    %1058 = arith.addf %1055, %1057 : vector<8x32xf32>
    %1059 = vector.extract_strided_slice %1051 {offsets = [0, 64], sizes = [8, 32], strides = [1, 1]} : vector<8x96xf32> to vector<8x32xf32>
    %1060 = math.tanh %1058 : vector<8x32xf32>
    %1061 = arith.mulf %1059, %1060 : vector<8x32xf32>
    %c25_i32 = arith.constant 25 : i32
    %c8_i32_136 = arith.constant 8 : i32
    %1062 = arith.muli %c25_i32, %c8_i32_136 : i32
    %1063 = tpu.assume_multiple %1062, 8 : i32
    %1064 = tpu.concatenate %1045, %1061 in 1 : vector<8x32xf32>, vector<8x32xf32> -> vector<8x64xf32>
    %1065 = arith.truncf %1064 : vector<8x64xf32> to vector<8x64xbf16>
    %cst_137 = arith.constant dense<0.000000e+00> : vector<8x256xf32>
    %1066 = tpu.matmul %1065, %8, %cst_137 {dimension_numbers = #tpu.dot_dimension_numbers<[1], [0], [0], [1], [0, 0, 1, 1], [], []>} : vector<8x64xbf16>, vector<64x256xbf16>, vector<8x256xf32> -> vector<8x256xf32>
    %1067 = vector.extract_strided_slice %1066 {offsets = [0, 0], sizes = [8, 128], strides = [1, 1]} : vector<8x256xf32> to vector<8x128xf32>
    %1068 = arith.index_cast %1063 : i32 to index
    %c0_138 = arith.constant 0 : index
    %1069 = vector.load %arg13[%1068, %c0_138] : memref<240x128xf32, #tpu.memory_space<vmem>>, vector<8x128xf32>
    %1070 = arith.addf %1067, %1069 : vector<8x128xf32>
    %1071 = vector.extract_strided_slice %1066 {offsets = [0, 128], sizes = [8, 128], strides = [1, 1]} : vector<8x256xf32> to vector<8x128xf32>
    %1072 = arith.addf %1071, %11 : vector<8x128xf32>
    %1073 = vector.extract_strided_slice %1070 {offsets = [0, 0], sizes = [8, 96], strides = [1, 1]} : vector<8x128xf32> to vector<8x96xf32>
    %1074 = arith.negf %1073 : vector<8x96xf32>
    %1075 = math.exp %1074 : vector<8x96xf32>
    %cst_139 = arith.constant 1.000000e+00 : f32
    %1076 = vector.broadcast %cst_139 : f32 to vector<8x96xf32>
    %1077 = arith.addf %1076, %1075 : vector<8x96xf32>
    %1078 = arith.divf %1076, %1077 : vector<8x96xf32>
    %1079 = vector.extract_strided_slice %1070 {offsets = [0, 96], sizes = [8, 32], strides = [1, 1]} : vector<8x128xf32> to vector<8x32xf32>
    %1080 = math.tanh %1079 : vector<8x32xf32>
    %1081 = vector.extract_strided_slice %1078 {offsets = [0, 32], sizes = [8, 32], strides = [1, 1]} : vector<8x96xf32> to vector<8x32xf32>
    %1082 = arith.mulf %1081, %1042 : vector<8x32xf32>
    %1083 = vector.extract_strided_slice %1078 {offsets = [0, 0], sizes = [8, 32], strides = [1, 1]} : vector<8x96xf32> to vector<8x32xf32>
    %1084 = arith.mulf %1083, %1080 : vector<8x32xf32>
    %1085 = arith.addf %1082, %1084 : vector<8x32xf32>
    %1086 = vector.extract_strided_slice %1078 {offsets = [0, 64], sizes = [8, 32], strides = [1, 1]} : vector<8x96xf32> to vector<8x32xf32>
    %1087 = math.tanh %1085 : vector<8x32xf32>
    %1088 = arith.mulf %1086, %1087 : vector<8x32xf32>
    %1089 = vector.extract_strided_slice %1072 {offsets = [0, 0], sizes = [8, 96], strides = [1, 1]} : vector<8x128xf32> to vector<8x96xf32>
    %1090 = arith.negf %1089 : vector<8x96xf32>
    %1091 = math.exp %1090 : vector<8x96xf32>
    %cst_140 = arith.constant 1.000000e+00 : f32
    %1092 = vector.broadcast %cst_140 : f32 to vector<8x96xf32>
    %1093 = arith.addf %1092, %1091 : vector<8x96xf32>
    %1094 = arith.divf %1092, %1093 : vector<8x96xf32>
    %1095 = vector.extract_strided_slice %1072 {offsets = [0, 96], sizes = [8, 32], strides = [1, 1]} : vector<8x128xf32> to vector<8x32xf32>
    %1096 = math.tanh %1095 : vector<8x32xf32>
    %1097 = vector.extract_strided_slice %1094 {offsets = [0, 32], sizes = [8, 32], strides = [1, 1]} : vector<8x96xf32> to vector<8x32xf32>
    %1098 = arith.mulf %1097, %1058 : vector<8x32xf32>
    %1099 = vector.extract_strided_slice %1094 {offsets = [0, 0], sizes = [8, 32], strides = [1, 1]} : vector<8x96xf32> to vector<8x32xf32>
    %1100 = arith.mulf %1099, %1096 : vector<8x32xf32>
    %1101 = arith.addf %1098, %1100 : vector<8x32xf32>
    %1102 = vector.extract_strided_slice %1094 {offsets = [0, 64], sizes = [8, 32], strides = [1, 1]} : vector<8x96xf32> to vector<8x32xf32>
    %1103 = math.tanh %1101 : vector<8x32xf32>
    %1104 = arith.mulf %1102, %1103 : vector<8x32xf32>
    %c26_i32 = arith.constant 26 : i32
    %c8_i32_141 = arith.constant 8 : i32
    %1105 = arith.muli %c26_i32, %c8_i32_141 : i32
    %1106 = tpu.assume_multiple %1105, 8 : i32
    %1107 = tpu.concatenate %1088, %1104 in 1 : vector<8x32xf32>, vector<8x32xf32> -> vector<8x64xf32>
    %1108 = arith.truncf %1107 : vector<8x64xf32> to vector<8x64xbf16>
    %cst_142 = arith.constant dense<0.000000e+00> : vector<8x256xf32>
    %1109 = tpu.matmul %1108, %8, %cst_142 {dimension_numbers = #tpu.dot_dimension_numbers<[1], [0], [0], [1], [0, 0, 1, 1], [], []>} : vector<8x64xbf16>, vector<64x256xbf16>, vector<8x256xf32> -> vector<8x256xf32>
    %1110 = vector.extract_strided_slice %1109 {offsets = [0, 0], sizes = [8, 128], strides = [1, 1]} : vector<8x256xf32> to vector<8x128xf32>
    %1111 = arith.index_cast %1106 : i32 to index
    %c0_143 = arith.constant 0 : index
    %1112 = vector.load %arg13[%1111, %c0_143] : memref<240x128xf32, #tpu.memory_space<vmem>>, vector<8x128xf32>
    %1113 = arith.addf %1110, %1112 : vector<8x128xf32>
    %1114 = vector.extract_strided_slice %1109 {offsets = [0, 128], sizes = [8, 128], strides = [1, 1]} : vector<8x256xf32> to vector<8x128xf32>
    %1115 = arith.addf %1114, %11 : vector<8x128xf32>
    %1116 = vector.extract_strided_slice %1113 {offsets = [0, 0], sizes = [8, 96], strides = [1, 1]} : vector<8x128xf32> to vector<8x96xf32>
    %1117 = arith.negf %1116 : vector<8x96xf32>
    %1118 = math.exp %1117 : vector<8x96xf32>
    %cst_144 = arith.constant 1.000000e+00 : f32
    %1119 = vector.broadcast %cst_144 : f32 to vector<8x96xf32>
    %1120 = arith.addf %1119, %1118 : vector<8x96xf32>
    %1121 = arith.divf %1119, %1120 : vector<8x96xf32>
    %1122 = vector.extract_strided_slice %1113 {offsets = [0, 96], sizes = [8, 32], strides = [1, 1]} : vector<8x128xf32> to vector<8x32xf32>
    %1123 = math.tanh %1122 : vector<8x32xf32>
    %1124 = vector.extract_strided_slice %1121 {offsets = [0, 32], sizes = [8, 32], strides = [1, 1]} : vector<8x96xf32> to vector<8x32xf32>
    %1125 = arith.mulf %1124, %1085 : vector<8x32xf32>
    %1126 = vector.extract_strided_slice %1121 {offsets = [0, 0], sizes = [8, 32], strides = [1, 1]} : vector<8x96xf32> to vector<8x32xf32>
    %1127 = arith.mulf %1126, %1123 : vector<8x32xf32>
    %1128 = arith.addf %1125, %1127 : vector<8x32xf32>
    %1129 = vector.extract_strided_slice %1121 {offsets = [0, 64], sizes = [8, 32], strides = [1, 1]} : vector<8x96xf32> to vector<8x32xf32>
    %1130 = math.tanh %1128 : vector<8x32xf32>
    %1131 = arith.mulf %1129, %1130 : vector<8x32xf32>
    %1132 = vector.extract_strided_slice %1115 {offsets = [0, 0], sizes = [8, 96], strides = [1, 1]} : vector<8x128xf32> to vector<8x96xf32>
    %1133 = arith.negf %1132 : vector<8x96xf32>
    %1134 = math.exp %1133 : vector<8x96xf32>
    %cst_145 = arith.constant 1.000000e+00 : f32
    %1135 = vector.broadcast %cst_145 : f32 to vector<8x96xf32>
    %1136 = arith.addf %1135, %1134 : vector<8x96xf32>
    %1137 = arith.divf %1135, %1136 : vector<8x96xf32>
    %1138 = vector.extract_strided_slice %1115 {offsets = [0, 96], sizes = [8, 32], strides = [1, 1]} : vector<8x128xf32> to vector<8x32xf32>
    %1139 = math.tanh %1138 : vector<8x32xf32>
    %1140 = vector.extract_strided_slice %1137 {offsets = [0, 32], sizes = [8, 32], strides = [1, 1]} : vector<8x96xf32> to vector<8x32xf32>
    %1141 = arith.mulf %1140, %1101 : vector<8x32xf32>
    %1142 = vector.extract_strided_slice %1137 {offsets = [0, 0], sizes = [8, 32], strides = [1, 1]} : vector<8x96xf32> to vector<8x32xf32>
    %1143 = arith.mulf %1142, %1139 : vector<8x32xf32>
    %1144 = arith.addf %1141, %1143 : vector<8x32xf32>
    %1145 = vector.extract_strided_slice %1137 {offsets = [0, 64], sizes = [8, 32], strides = [1, 1]} : vector<8x96xf32> to vector<8x32xf32>
    %1146 = math.tanh %1144 : vector<8x32xf32>
    %1147 = arith.mulf %1145, %1146 : vector<8x32xf32>
    %c27_i32 = arith.constant 27 : i32
    %c8_i32_146 = arith.constant 8 : i32
    %1148 = arith.muli %c27_i32, %c8_i32_146 : i32
    %1149 = tpu.assume_multiple %1148, 8 : i32
    %1150 = tpu.concatenate %1131, %1147 in 1 : vector<8x32xf32>, vector<8x32xf32> -> vector<8x64xf32>
    %1151 = arith.truncf %1150 : vector<8x64xf32> to vector<8x64xbf16>
    %cst_147 = arith.constant dense<0.000000e+00> : vector<8x256xf32>
    %1152 = tpu.matmul %1151, %8, %cst_147 {dimension_numbers = #tpu.dot_dimension_numbers<[1], [0], [0], [1], [0, 0, 1, 1], [], []>} : vector<8x64xbf16>, vector<64x256xbf16>, vector<8x256xf32> -> vector<8x256xf32>
    %1153 = vector.extract_strided_slice %1152 {offsets = [0, 0], sizes = [8, 128], strides = [1, 1]} : vector<8x256xf32> to vector<8x128xf32>
    %1154 = arith.index_cast %1149 : i32 to index
    %c0_148 = arith.constant 0 : index
    %1155 = vector.load %arg13[%1154, %c0_148] : memref<240x128xf32, #tpu.memory_space<vmem>>, vector<8x128xf32>
    %1156 = arith.addf %1153, %1155 : vector<8x128xf32>
    %1157 = vector.extract_strided_slice %1152 {offsets = [0, 128], sizes = [8, 128], strides = [1, 1]} : vector<8x256xf32> to vector<8x128xf32>
    %1158 = arith.addf %1157, %11 : vector<8x128xf32>
    %1159 = vector.extract_strided_slice %1156 {offsets = [0, 0], sizes = [8, 96], strides = [1, 1]} : vector<8x128xf32> to vector<8x96xf32>
    %1160 = arith.negf %1159 : vector<8x96xf32>
    %1161 = math.exp %1160 : vector<8x96xf32>
    %cst_149 = arith.constant 1.000000e+00 : f32
    %1162 = vector.broadcast %cst_149 : f32 to vector<8x96xf32>
    %1163 = arith.addf %1162, %1161 : vector<8x96xf32>
    %1164 = arith.divf %1162, %1163 : vector<8x96xf32>
    %1165 = vector.extract_strided_slice %1156 {offsets = [0, 96], sizes = [8, 32], strides = [1, 1]} : vector<8x128xf32> to vector<8x32xf32>
    %1166 = math.tanh %1165 : vector<8x32xf32>
    %1167 = vector.extract_strided_slice %1164 {offsets = [0, 32], sizes = [8, 32], strides = [1, 1]} : vector<8x96xf32> to vector<8x32xf32>
    %1168 = arith.mulf %1167, %1128 : vector<8x32xf32>
    %1169 = vector.extract_strided_slice %1164 {offsets = [0, 0], sizes = [8, 32], strides = [1, 1]} : vector<8x96xf32> to vector<8x32xf32>
    %1170 = arith.mulf %1169, %1166 : vector<8x32xf32>
    %1171 = arith.addf %1168, %1170 : vector<8x32xf32>
    %1172 = vector.extract_strided_slice %1164 {offsets = [0, 64], sizes = [8, 32], strides = [1, 1]} : vector<8x96xf32> to vector<8x32xf32>
    %1173 = math.tanh %1171 : vector<8x32xf32>
    %1174 = arith.mulf %1172, %1173 : vector<8x32xf32>
    %1175 = vector.extract_strided_slice %1158 {offsets = [0, 0], sizes = [8, 96], strides = [1, 1]} : vector<8x128xf32> to vector<8x96xf32>
    %1176 = arith.negf %1175 : vector<8x96xf32>
    %1177 = math.exp %1176 : vector<8x96xf32>
    %cst_150 = arith.constant 1.000000e+00 : f32
    %1178 = vector.broadcast %cst_150 : f32 to vector<8x96xf32>
    %1179 = arith.addf %1178, %1177 : vector<8x96xf32>
    %1180 = arith.divf %1178, %1179 : vector<8x96xf32>
    %1181 = vector.extract_strided_slice %1158 {offsets = [0, 96], sizes = [8, 32], strides = [1, 1]} : vector<8x128xf32> to vector<8x32xf32>
    %1182 = math.tanh %1181 : vector<8x32xf32>
    %1183 = vector.extract_strided_slice %1180 {offsets = [0, 32], sizes = [8, 32], strides = [1, 1]} : vector<8x96xf32> to vector<8x32xf32>
    %1184 = arith.mulf %1183, %1144 : vector<8x32xf32>
    %1185 = vector.extract_strided_slice %1180 {offsets = [0, 0], sizes = [8, 32], strides = [1, 1]} : vector<8x96xf32> to vector<8x32xf32>
    %1186 = arith.mulf %1185, %1182 : vector<8x32xf32>
    %1187 = arith.addf %1184, %1186 : vector<8x32xf32>
    %1188 = vector.extract_strided_slice %1180 {offsets = [0, 64], sizes = [8, 32], strides = [1, 1]} : vector<8x96xf32> to vector<8x32xf32>
    %1189 = math.tanh %1187 : vector<8x32xf32>
    %1190 = arith.mulf %1188, %1189 : vector<8x32xf32>
    %c28_i32 = arith.constant 28 : i32
    %c8_i32_151 = arith.constant 8 : i32
    %1191 = arith.muli %c28_i32, %c8_i32_151 : i32
    %1192 = tpu.assume_multiple %1191, 8 : i32
    %1193 = tpu.concatenate %1174, %1190 in 1 : vector<8x32xf32>, vector<8x32xf32> -> vector<8x64xf32>
    %1194 = arith.truncf %1193 : vector<8x64xf32> to vector<8x64xbf16>
    %cst_152 = arith.constant dense<0.000000e+00> : vector<8x256xf32>
    %1195 = tpu.matmul %1194, %8, %cst_152 {dimension_numbers = #tpu.dot_dimension_numbers<[1], [0], [0], [1], [0, 0, 1, 1], [], []>} : vector<8x64xbf16>, vector<64x256xbf16>, vector<8x256xf32> -> vector<8x256xf32>
    %1196 = vector.extract_strided_slice %1195 {offsets = [0, 0], sizes = [8, 128], strides = [1, 1]} : vector<8x256xf32> to vector<8x128xf32>
    %1197 = arith.index_cast %1192 : i32 to index
    %c0_153 = arith.constant 0 : index
    %1198 = vector.load %arg13[%1197, %c0_153] : memref<240x128xf32, #tpu.memory_space<vmem>>, vector<8x128xf32>
    %1199 = arith.addf %1196, %1198 : vector<8x128xf32>
    %1200 = vector.extract_strided_slice %1195 {offsets = [0, 128], sizes = [8, 128], strides = [1, 1]} : vector<8x256xf32> to vector<8x128xf32>
    %1201 = arith.addf %1200, %11 : vector<8x128xf32>
    %1202 = vector.extract_strided_slice %1199 {offsets = [0, 0], sizes = [8, 96], strides = [1, 1]} : vector<8x128xf32> to vector<8x96xf32>
    %1203 = arith.negf %1202 : vector<8x96xf32>
    %1204 = math.exp %1203 : vector<8x96xf32>
    %cst_154 = arith.constant 1.000000e+00 : f32
    %1205 = vector.broadcast %cst_154 : f32 to vector<8x96xf32>
    %1206 = arith.addf %1205, %1204 : vector<8x96xf32>
    %1207 = arith.divf %1205, %1206 : vector<8x96xf32>
    %1208 = vector.extract_strided_slice %1199 {offsets = [0, 96], sizes = [8, 32], strides = [1, 1]} : vector<8x128xf32> to vector<8x32xf32>
    %1209 = math.tanh %1208 : vector<8x32xf32>
    %1210 = vector.extract_strided_slice %1207 {offsets = [0, 32], sizes = [8, 32], strides = [1, 1]} : vector<8x96xf32> to vector<8x32xf32>
    %1211 = arith.mulf %1210, %1171 : vector<8x32xf32>
    %1212 = vector.extract_strided_slice %1207 {offsets = [0, 0], sizes = [8, 32], strides = [1, 1]} : vector<8x96xf32> to vector<8x32xf32>
    %1213 = arith.mulf %1212, %1209 : vector<8x32xf32>
    %1214 = arith.addf %1211, %1213 : vector<8x32xf32>
    %1215 = vector.extract_strided_slice %1207 {offsets = [0, 64], sizes = [8, 32], strides = [1, 1]} : vector<8x96xf32> to vector<8x32xf32>
    %1216 = math.tanh %1214 : vector<8x32xf32>
    %1217 = arith.mulf %1215, %1216 : vector<8x32xf32>
    %1218 = vector.extract_strided_slice %1201 {offsets = [0, 0], sizes = [8, 96], strides = [1, 1]} : vector<8x128xf32> to vector<8x96xf32>
    %1219 = arith.negf %1218 : vector<8x96xf32>
    %1220 = math.exp %1219 : vector<8x96xf32>
    %cst_155 = arith.constant 1.000000e+00 : f32
    %1221 = vector.broadcast %cst_155 : f32 to vector<8x96xf32>
    %1222 = arith.addf %1221, %1220 : vector<8x96xf32>
    %1223 = arith.divf %1221, %1222 : vector<8x96xf32>
    %1224 = vector.extract_strided_slice %1201 {offsets = [0, 96], sizes = [8, 32], strides = [1, 1]} : vector<8x128xf32> to vector<8x32xf32>
    %1225 = math.tanh %1224 : vector<8x32xf32>
    %1226 = vector.extract_strided_slice %1223 {offsets = [0, 32], sizes = [8, 32], strides = [1, 1]} : vector<8x96xf32> to vector<8x32xf32>
    %1227 = arith.mulf %1226, %1187 : vector<8x32xf32>
    %1228 = vector.extract_strided_slice %1223 {offsets = [0, 0], sizes = [8, 32], strides = [1, 1]} : vector<8x96xf32> to vector<8x32xf32>
    %1229 = arith.mulf %1228, %1225 : vector<8x32xf32>
    %1230 = arith.addf %1227, %1229 : vector<8x32xf32>
    %1231 = vector.extract_strided_slice %1223 {offsets = [0, 64], sizes = [8, 32], strides = [1, 1]} : vector<8x96xf32> to vector<8x32xf32>
    %1232 = math.tanh %1230 : vector<8x32xf32>
    %1233 = arith.mulf %1231, %1232 : vector<8x32xf32>
    %c29_i32 = arith.constant 29 : i32
    %c8_i32_156 = arith.constant 8 : i32
    %1234 = arith.muli %c29_i32, %c8_i32_156 : i32
    %1235 = tpu.assume_multiple %1234, 8 : i32
    %1236 = tpu.concatenate %1217, %1233 in 1 : vector<8x32xf32>, vector<8x32xf32> -> vector<8x64xf32>
    %1237 = arith.truncf %1236 : vector<8x64xf32> to vector<8x64xbf16>
    %cst_157 = arith.constant dense<0.000000e+00> : vector<8x256xf32>
    %1238 = tpu.matmul %1237, %8, %cst_157 {dimension_numbers = #tpu.dot_dimension_numbers<[1], [0], [0], [1], [0, 0, 1, 1], [], []>} : vector<8x64xbf16>, vector<64x256xbf16>, vector<8x256xf32> -> vector<8x256xf32>
    %1239 = vector.extract_strided_slice %1238 {offsets = [0, 0], sizes = [8, 128], strides = [1, 1]} : vector<8x256xf32> to vector<8x128xf32>
    %1240 = arith.index_cast %1235 : i32 to index
    %c0_158 = arith.constant 0 : index
    %1241 = vector.load %arg13[%1240, %c0_158] : memref<240x128xf32, #tpu.memory_space<vmem>>, vector<8x128xf32>
    %1242 = arith.addf %1239, %1241 : vector<8x128xf32>
    %1243 = vector.extract_strided_slice %1238 {offsets = [0, 128], sizes = [8, 128], strides = [1, 1]} : vector<8x256xf32> to vector<8x128xf32>
    %1244 = arith.addf %1243, %11 : vector<8x128xf32>
    %1245 = vector.extract_strided_slice %1242 {offsets = [0, 0], sizes = [8, 96], strides = [1, 1]} : vector<8x128xf32> to vector<8x96xf32>
    %1246 = arith.negf %1245 : vector<8x96xf32>
    %1247 = math.exp %1246 : vector<8x96xf32>
    %cst_159 = arith.constant 1.000000e+00 : f32
    %1248 = vector.broadcast %cst_159 : f32 to vector<8x96xf32>
    %1249 = arith.addf %1248, %1247 : vector<8x96xf32>
    %1250 = arith.divf %1248, %1249 : vector<8x96xf32>
    %1251 = vector.extract_strided_slice %1242 {offsets = [0, 96], sizes = [8, 32], strides = [1, 1]} : vector<8x128xf32> to vector<8x32xf32>
    %1252 = math.tanh %1251 : vector<8x32xf32>
    %1253 = vector.extract_strided_slice %1250 {offsets = [0, 32], sizes = [8, 32], strides = [1, 1]} : vector<8x96xf32> to vector<8x32xf32>
    %1254 = arith.mulf %1253, %1214 : vector<8x32xf32>
    %1255 = vector.extract_strided_slice %1250 {offsets = [0, 0], sizes = [8, 32], strides = [1, 1]} : vector<8x96xf32> to vector<8x32xf32>
    %1256 = arith.mulf %1255, %1252 : vector<8x32xf32>
    %1257 = arith.addf %1254, %1256 : vector<8x32xf32>
    %1258 = vector.extract_strided_slice %1250 {offsets = [0, 64], sizes = [8, 32], strides = [1, 1]} : vector<8x96xf32> to vector<8x32xf32>
    %1259 = math.tanh %1257 : vector<8x32xf32>
    %1260 = arith.mulf %1258, %1259 : vector<8x32xf32>
    %1261 = vector.extract_strided_slice %1244 {offsets = [0, 0], sizes = [8, 96], strides = [1, 1]} : vector<8x128xf32> to vector<8x96xf32>
    %1262 = arith.negf %1261 : vector<8x96xf32>
    %1263 = math.exp %1262 : vector<8x96xf32>
    %cst_160 = arith.constant 1.000000e+00 : f32
    %1264 = vector.broadcast %cst_160 : f32 to vector<8x96xf32>
    %1265 = arith.addf %1264, %1263 : vector<8x96xf32>
    %1266 = arith.divf %1264, %1265 : vector<8x96xf32>
    %1267 = vector.extract_strided_slice %1244 {offsets = [0, 96], sizes = [8, 32], strides = [1, 1]} : vector<8x128xf32> to vector<8x32xf32>
    %1268 = math.tanh %1267 : vector<8x32xf32>
    %1269 = vector.extract_strided_slice %1266 {offsets = [0, 32], sizes = [8, 32], strides = [1, 1]} : vector<8x96xf32> to vector<8x32xf32>
    %1270 = arith.mulf %1269, %1230 : vector<8x32xf32>
    %1271 = vector.extract_strided_slice %1266 {offsets = [0, 0], sizes = [8, 32], strides = [1, 1]} : vector<8x96xf32> to vector<8x32xf32>
    %1272 = arith.mulf %1271, %1268 : vector<8x32xf32>
    %1273 = arith.addf %1270, %1272 : vector<8x32xf32>
    %1274 = vector.extract_strided_slice %1266 {offsets = [0, 64], sizes = [8, 32], strides = [1, 1]} : vector<8x96xf32> to vector<8x32xf32>
    %1275 = math.tanh %1273 : vector<8x32xf32>
    %1276 = arith.mulf %1274, %1275 : vector<8x32xf32>
    %c29_i32_161 = arith.constant 29 : i32
    %1277 = tpu.concatenate %1260, %1276 in 1 : vector<8x32xf32>, vector<8x32xf32> -> vector<8x64xf32>
    %1278 = arith.truncf %1277 : vector<8x64xf32> to vector<8x64xbf16>
    %cst_162 = arith.constant dense<0.000000e+00> : vector<8x256xf32>
    %1279 = tpu.matmul %1278, %8, %cst_162 {dimension_numbers = #tpu.dot_dimension_numbers<[1], [0], [0], [1], [0, 0, 1, 1], [], []>} : vector<8x64xbf16>, vector<64x256xbf16>, vector<8x256xf32> -> vector<8x256xf32>
    %1280 = vector.extract_strided_slice %1279 {offsets = [0, 128], sizes = [8, 128], strides = [1, 1]} : vector<8x256xf32> to vector<8x128xf32>
    %1281 = arith.addf %1280, %11 : vector<8x128xf32>
    %1282 = vector.extract_strided_slice %1281 {offsets = [0, 0], sizes = [8, 96], strides = [1, 1]} : vector<8x128xf32> to vector<8x96xf32>
    %1283 = arith.negf %1282 : vector<8x96xf32>
    %1284 = math.exp %1283 : vector<8x96xf32>
    %cst_163 = arith.constant 1.000000e+00 : f32
    %1285 = vector.broadcast %cst_163 : f32 to vector<8x96xf32>
    %1286 = arith.addf %1285, %1284 : vector<8x96xf32>
    %1287 = arith.divf %1285, %1286 : vector<8x96xf32>
    %1288 = vector.extract_strided_slice %1281 {offsets = [0, 96], sizes = [8, 32], strides = [1, 1]} : vector<8x128xf32> to vector<8x32xf32>
    %1289 = math.tanh %1288 : vector<8x32xf32>
    %1290 = vector.extract_strided_slice %1287 {offsets = [0, 32], sizes = [8, 32], strides = [1, 1]} : vector<8x96xf32> to vector<8x32xf32>
    %1291 = arith.mulf %1290, %1273 : vector<8x32xf32>
    %1292 = vector.extract_strided_slice %1287 {offsets = [0, 0], sizes = [8, 32], strides = [1, 1]} : vector<8x96xf32> to vector<8x32xf32>
    %1293 = arith.mulf %1292, %1289 : vector<8x32xf32>
    %1294 = arith.addf %1291, %1293 : vector<8x32xf32>
    %1295 = vector.extract_strided_slice %1287 {offsets = [0, 64], sizes = [8, 32], strides = [1, 1]} : vector<8x96xf32> to vector<8x32xf32>
    %1296 = math.tanh %1294 : vector<8x32xf32>
    %1297 = arith.mulf %1295, %1296 : vector<8x32xf32>
    %1298 = arith.truncf %1297 : vector<8x32xf32> to vector<8x32xbf16>
    %c0_164 = arith.constant 0 : index
    %c0_165 = arith.constant 0 : index
    %1299 = vector.load %arg6[%c0_164, %c0_165] : memref<32x32xbf16, #tpu.memory_space<vmem>>, vector<32x32xbf16>
    %cst_166 = arith.constant dense<0.000000e+00> : vector<8x32xf32>
    %1300 = tpu.matmul %1298, %1299, %cst_166 {dimension_numbers = #tpu.dot_dimension_numbers<[1], [0], [0], [1], [0, 0, 1, 1], [], []>} : vector<8x32xbf16>, vector<32x32xbf16>, vector<8x32xf32> -> vector<8x32xf32>
    %c0_167 = arith.constant 0 : index
    %c0_168 = arith.constant 0 : index
    %1301 = vector.load %arg7[%c0_167, %c0_168] : memref<1x32xf32, #tpu.memory_space<vmem>>, vector<1x32xf32>
    %1302 = vector.broadcast %1301 : vector<1x32xf32> to vector<8x32xf32>
    %1303 = arith.addf %1300, %1302 : vector<8x32xf32>
    %cst_169 = arith.constant 0.000000e+00 : f32
    %1304 = vector.broadcast %cst_169 : f32 to vector<8x32xf32>
    %1305 = arith.maximumf %1303, %1304 : vector<8x32xf32>
    %1306 = arith.truncf %1305 : vector<8x32xf32> to vector<8x32xbf16>
    %c0_170 = arith.constant 0 : index
    %c0_171 = arith.constant 0 : index
    %1307 = vector.load %arg8[%c0_170, %c0_171] : memref<32x32xbf16, #tpu.memory_space<vmem>>, vector<32x32xbf16>
    %cst_172 = arith.constant dense<0.000000e+00> : vector<8x32xf32>
    %1308 = tpu.matmul %1306, %1307, %cst_172 {dimension_numbers = #tpu.dot_dimension_numbers<[1], [0], [0], [1], [0, 0, 1, 1], [], []>} : vector<8x32xbf16>, vector<32x32xbf16>, vector<8x32xf32> -> vector<8x32xf32>
    %c0_173 = arith.constant 0 : index
    %c0_174 = arith.constant 0 : index
    %1309 = vector.load %arg9[%c0_173, %c0_174] : memref<1x32xf32, #tpu.memory_space<vmem>>, vector<1x32xf32>
    %1310 = vector.broadcast %1309 : vector<1x32xf32> to vector<8x32xf32>
    %1311 = arith.addf %1308, %1310 : vector<8x32xf32>
    %cst_175 = arith.constant 0.000000e+00 : f32
    %1312 = vector.broadcast %cst_175 : f32 to vector<8x32xf32>
    %1313 = arith.maximumf %1311, %1312 : vector<8x32xf32>
    %1314 = arith.truncf %1313 : vector<8x32xf32> to vector<8x32xbf16>
    %c0_176 = arith.constant 0 : index
    %c0_177 = arith.constant 0 : index
    %1315 = vector.load %arg10[%c0_176, %c0_177] : memref<32x10xbf16, #tpu.memory_space<vmem>>, vector<32x10xbf16>
    %cst_178 = arith.constant dense<0.000000e+00> : vector<8x10xf32>
    %1316 = tpu.matmul %1314, %1315, %cst_178 {dimension_numbers = #tpu.dot_dimension_numbers<[1], [0], [0], [1], [0, 0, 1, 1], [], []>} : vector<8x32xbf16>, vector<32x10xbf16>, vector<8x10xf32> -> vector<8x10xf32>
    %c0_179 = arith.constant 0 : index
    %c0_180 = arith.constant 0 : index
    %1317 = vector.load %arg11[%c0_179, %c0_180] : memref<1x10xf32, #tpu.memory_space<vmem>>, vector<1x10xf32>
    %1318 = vector.broadcast %1317 : vector<1x10xf32> to vector<8x10xf32>
    %1319 = arith.addf %1316, %1318 : vector<8x10xf32>
    %cst_181 = arith.constant dense<0xFF800000> : vector<8xf32>
    %1320 = vector.multi_reduction <maximumf>, %1319, %cst_181 [1] : vector<8x10xf32> to vector<8xf32>
    %1321 = vector.shape_cast %1320 : vector<8xf32> to vector<8x1xf32>
    %1322 = vector.broadcast %1321 : vector<8x1xf32> to vector<8x10xf32>
    %1323 = arith.subf %1319, %1322 : vector<8x10xf32>
    %1324 = math.exp %1323 : vector<8x10xf32>
    %cst_182 = arith.constant dense<0.000000e+00> : vector<8xf32>
    %1325 = vector.multi_reduction <add>, %1324, %cst_182 [1] : vector<8x10xf32> to vector<8xf32>
    %1326 = vector.shape_cast %1325 : vector<8xf32> to vector<8x1xf32>
    %1327 = vector.broadcast %1326 : vector<8x1xf32> to vector<8x10xf32>
    %1328 = arith.divf %1324, %1327 : vector<8x10xf32>
    %c0_183 = arith.constant 0 : index
    %c0_184 = arith.constant 0 : index
    %1329 = vector.load %arg12[%c0_183, %c0_184] : memref<8x10xf32, #tpu.memory_space<vmem>>, vector<8x10xf32>
    tpu.vector_store %arg12[%c0_183, %c0_184], %1328 {strides = array<i32>} : memref<8x10xf32, #tpu.memory_space<vmem>>, vector<8x10xf32>,
    return
  }
  func.func @transform_0(%arg0: i32) -> (i32, i32, i32) {
    %c0_i32 = arith.constant 0 : i32
    %c0_i32_0 = arith.constant 0 : i32
    %c0_i32_1 = arith.constant 0 : i32
    return %arg0, %c0_i32, %c0_i32_0 : i32, i32, i32
  }
  func.func @transform_1(%arg0: i32) -> (i32, i32) {
    %c0_i32 = arith.constant 0 : i32
    %c0_i32_0 = arith.constant 0 : i32
    %c0_i32_1 = arith.constant 0 : i32
    return %c0_i32, %c0_i32_0 : i32, i32
  }
  func.func @transform_2(%arg0: i32) -> (i32, i32) {
    %c0_i32 = arith.constant 0 : i32
    %c0_i32_0 = arith.constant 0 : i32
    %c0_i32_1 = arith.constant 0 : i32
    return %c0_i32, %c0_i32_0 : i32, i32
  }
  func.func @transform_3(%arg0: i32) -> (i32, i32) {
    %c0_i32 = arith.constant 0 : i32
    %c0_i32_0 = arith.constant 0 : i32
    %c0_i32_1 = arith.constant 0 : i32
    return %c0_i32, %c0_i32_0 : i32, i32
  }
  func.func @transform_4(%arg0: i32) -> (i32, i32) {
    %c0_i32 = arith.constant 0 : i32
    %c0_i32_0 = arith.constant 0 : i32
    %c0_i32_1 = arith.constant 0 : i32
    return %c0_i32, %c0_i32_0 : i32, i32
  }
  func.func @transform_5(%arg0: i32) -> (i32, i32) {
    %c0_i32 = arith.constant 0 : i32
    %c0_i32_0 = arith.constant 0 : i32
    %c0_i32_1 = arith.constant 0 : i32
    return %c0_i32, %c0_i32_0 : i32, i32
  }
  func.func @transform_6(%arg0: i32) -> (i32, i32) {
    %c0_i32 = arith.constant 0 : i32
    %c0_i32_0 = arith.constant 0 : i32
    %c0_i32_1 = arith.constant 0 : i32
    return %c0_i32, %c0_i32_0 : i32, i32
  }
  func.func @transform_7(%arg0: i32) -> (i32, i32) {
    %c0_i32 = arith.constant 0 : i32
    %c0_i32_0 = arith.constant 0 : i32
    %c0_i32_1 = arith.constant 0 : i32
    return %c0_i32, %c0_i32_0 : i32, i32
  }
  func.func @transform_8(%arg0: i32) -> (i32, i32) {
    %c0_i32 = arith.constant 0 : i32
    %c0_i32_0 = arith.constant 0 : i32
    %c0_i32_1 = arith.constant 0 : i32
    return %c0_i32, %c0_i32_0 : i32, i32
  }
  func.func @transform_9(%arg0: i32) -> (i32, i32) {
    %c0_i32 = arith.constant 0 : i32
    %c0_i32_0 = arith.constant 0 : i32
    %c0_i32_1 = arith.constant 0 : i32
    return %c0_i32, %c0_i32_0 : i32, i32
  }
  func.func @transform_10(%arg0: i32) -> (i32, i32) {
    %c0_i32 = arith.constant 0 : i32
    %c0_i32_0 = arith.constant 0 : i32
    %c0_i32_1 = arith.constant 0 : i32
    return %c0_i32, %c0_i32_0 : i32, i32
  }
  func.func @transform_11(%arg0: i32) -> (i32, i32) {
    %c0_i32 = arith.constant 0 : i32
    %c0_i32_0 = arith.constant 0 : i32
    return %arg0, %c0_i32 : i32, i32
  }
}

</mosaic_0001>

<llo_original>
// kernel: forward.1
$region0: #{forward.1}
  #allocation0 [shape = 'u32[]', space=smem, size = 0x4, offset = 0x4, fixed_abs, tag = 'smem constant byte address 0x4 - core index']
  #allocation1 [shape = 'u32[144,128]{1,0:T(1,128)}', space=vmem, size = 0x12000, scoped, tag = 'internal scratch']
  #allocation2 [shape = 'f32[240,128]{1,0:T(8,128)}', space=vmem, size = 0x1e000, scoped, tag = 'scratch operand']
  %s0 = inlined_call_operand.vmem [shape: bf16[1,240,88], index: 0, kind: input, shape index: {}]
  %s1 = inlined_call_operand.vmem [shape: bf16[88,128], index: 1, kind: input, shape index: {}]
  %s2 = inlined_call_operand.vmem [shape: f32[1,128], index: 2, kind: input, shape index: {}]
  %s3 = inlined_call_operand.vmem [shape: bf16[64,256], index: 3, kind: input, shape index: {}]
  %s4 = inlined_call_operand.vmem [shape: f32[1,128], index: 4, kind: input, shape index: {}]
  %s5 = inlined_call_operand.vmem [shape: bf16[32,32], index: 5, kind: input, shape index: {}]
  %s6 = inlined_call_operand.vmem [shape: f32[1,32], index: 6, kind: input, shape index: {}]
  %s7 = inlined_call_operand.vmem [shape: bf16[32,32], index: 7, kind: input, shape index: {}]
  %s8 = inlined_call_operand.vmem [shape: f32[1,32], index: 8, kind: input, shape index: {}]
  %s9 = inlined_call_operand.vmem [shape: bf16[32,10], index: 9, kind: input, shape index: {}]
  %s10 = inlined_call_operand.vmem [shape: f32[1,10], index: 10, kind: input, shape index: {}]
  %s11 = inlined_call_operand.vmem [shape: f32[8,10], index: 11, kind: output, shape index: {}]
  %s12 = sld [smem:[#allocation0]]
  $region54: #{forward.1} parent=0
    _
  %s14 = ssub.s32 1, %s12
  %s15 = scalar_select 0, %s14, %s12
  // Predicated region
  $region2: #{forward.1} parent=0 // pred_check
    _
  $region3: #{forward.1} parent=0 // pred_check_branch
    %17 = sbr.rel (0) target = $region5
  $region4: #{forward.1} parent=0 // pred_region
    _
  $region5: #{forward.1} parent=0 // pred_fallthru
    _
  // Predicated region
  $region6: #{forward.1} parent=0 // pred_check
    _
  $region7: #{forward.1} parent=0 // pred_check_branch
    %19 = sbr.rel (0) target = $region9
  $region8: #{forward.1} parent=0 // pred_region
    _
  $region9: #{forward.1} parent=0 // pred_fallthru
    _
  // Predicated region
  $region10: #{forward.1} parent=0 // pred_check
    _
  $region11: #{forward.1} parent=0 // pred_check_branch
    %21 = sbr.rel (0) target = $region13
  $region12: #{forward.1} parent=0 // pred_region
    _
  $region13: #{forward.1} parent=0 // pred_fallthru
    _
  // Predicated region
  $region14: #{forward.1} parent=0 // pred_check
    _
  $region15: #{forward.1} parent=0 // pred_check_branch
    %23 = sbr.rel (0) target = $region17
  $region16: #{forward.1} parent=0 // pred_region
    _
  $region17: #{forward.1} parent=0 // pred_fallthru
    _
  // Predicated region
  $region18: #{forward.1} parent=0 // pred_check
    _
  $region19: #{forward.1} parent=0 // pred_check_branch
    %25 = sbr.rel (0) target = $region21
  $region20: #{forward.1} parent=0 // pred_region
    _
  $region21: #{forward.1} parent=0 // pred_fallthru
    _
  // Predicated region
  $region22: #{forward.1} parent=0 // pred_check
    _
  $region23: #{forward.1} parent=0 // pred_check_branch
    %27 = sbr.rel (0) target = $region25
  $region24: #{forward.1} parent=0 // pred_region
    _
  $region25: #{forward.1} parent=0 // pred_fallthru
    _
  // Predicated region
  $region26: #{forward.1} parent=0 // pred_check
    _
  $region27: #{forward.1} parent=0 // pred_check_branch
    %29 = sbr.rel (0) target = $region29
  $region28: #{forward.1} parent=0 // pred_region
    _
  $region29: #{forward.1} parent=0 // pred_fallthru
    _
  // Predicated region
  $region30: #{forward.1} parent=0 // pred_check
    _
  $region31: #{forward.1} parent=0 // pred_check_branch
    %31 = sbr.rel (0) target = $region33
  $region32: #{forward.1} parent=0 // pred_region
    _
  $region33: #{forward.1} parent=0 // pred_fallthru
    _
  // Predicated region
  $region34: #{forward.1} parent=0 // pred_check
    _
  $region35: #{forward.1} parent=0 // pred_check_branch
    %33 = sbr.rel (0) target = $region37
  $region36: #{forward.1} parent=0 // pred_region
    _
  $region37: #{forward.1} parent=0 // pred_fallthru
    _
  // Predicated region
  $region38: #{forward.1} parent=0 // pred_check
    _
  $region39: #{forward.1} parent=0 // pred_check_branch
    %35 = sbr.rel (0) target = $region41
  $region40: #{forward.1} parent=0 // pred_region
    _
  $region41: #{forward.1} parent=0 // pred_fallthru
    _
  // Predicated region
  $region42: #{forward.1} parent=0 // pred_check
    _
  $region43: #{forward.1} parent=0 // pred_check_branch
    %37 = sbr.rel (0) target = $region45
  $region44: #{forward.1} parent=0 // pred_region
    _
  $region45: #{forward.1} parent=0 // pred_fallthru
    _
  %v39 = vld [vmem:[%s0] sm:$0xf]
  %v40 = vld [vmem:[%s0 + $0x4] sm:$0xf]
  %v41 = vld [vmem:[%s0 + $0x8] sm:$0xf]
  %v42 = vld [vmem:[%s0 + $0xc] sm:$0xf]
  %v43 = vld [vmem:[%s0 + $0x10] sm:$0xf]
  %v44 = vld [vmem:[%s0 + $0x14] sm:$0xf]
  %v45 = vld [vmem:[%s0 + $0x18] sm:$0xf]
  %v46 = vld [vmem:[%s0 + $0x1c] sm:$0xf]
  %v47 = vld [vmem:[%s0 + $0x20] sm:$0xf]
  %v48 = vld [vmem:[%s0 + $0x24] sm:$0xf]
  %v49 = vld [vmem:[%s0 + $0x28] sm:$0xf]
  %v50 = vld [vmem:[%s0 + $0x2c] sm:$0xf]
  %v51 = vld [vmem:[%s0 + $0x30] sm:$0xf]
  %v52 = vld [vmem:[%s0 + $0x34] sm:$0xf]
  %v53 = vld [vmem:[%s0 + $0x38] sm:$0xf]
  %v54 = vld [vmem:[%s0 + $0x3c] sm:$0xf]
  %v55 = vld [vmem:[%s0 + $0x40] sm:$0xf]
  %v56 = vld [vmem:[%s0 + $0x44] sm:$0xf]
  %v57 = vld [vmem:[%s0 + $0x48] sm:$0xf]
  %v58 = vld [vmem:[%s0 + $0x4c] sm:$0xf]
  %v59 = vld [vmem:[%s0 + $0x50] sm:$0xf]
  %v60 = vld [vmem:[%s0 + $0x54] sm:$0xf]
  %v61 = vld [vmem:[%s0 + $0x58] sm:$0xf]
  %v62 = vld [vmem:[%s0 + $0x5c] sm:$0xf]
  %v63 = vld [vmem:[%s0 + $0x60] sm:$0xf]
  %v64 = vld [vmem:[%s0 + $0x64] sm:$0xf]
  %v65 = vld [vmem:[%s0 + $0x68] sm:$0xf]
  %v66 = vld [vmem:[%s0 + $0x6c] sm:$0xf]
  %v67 = vld [vmem:[%s0 + $0x70] sm:$0xf]
  %v68 = vld [vmem:[%s0 + $0x74] sm:$0xf]
  %v69 = vld [vmem:[%s1] sm:$0xf]
  %v70 = vld [vmem:[%s1 + $0x4] sm:$0xf]
  %v71 = vld [vmem:[%s1 + $0x8] sm:$0xf]
  %v72 = vld [vmem:[%s1 + $0xc] sm:$0xf]
  %v73 = vld [vmem:[%s1 + $0x10] sm:$0xf]
  %v74 = vld [vmem:[%s1 + $0x14] sm:$0xf]
  %v75 = vld [vmem:[%s1 + $0x18] sm:$0xf]
  %v76 = vld [vmem:[%s1 + $0x1c] sm:$0xf]
  %v77 = vld [vmem:[%s1 + $0x20] sm:$0xf]
  %v78 = vld [vmem:[%s1 + $0x24] sm:$0xf]
  %v79 = vld [vmem:[%s1 + $0x28] sm:$0xf]
  %v80 = vld [vmem:[%s2] sm:$0x1]
  %v82 = vlaneseq
  %v83 = vshrl.u32 %v82, 7
  %v84 = vsub.s32 0, %v83
  %v85 = vrot.slane %v80, %v84
  %v117 = vunpack.c.l.b16 %v39
  %v118 = vunpack.c.l.b16 %v40
  %v119 = vunpack.c.l.b16 %v41
  %v120 = vunpack.c.l.b16 %v42
  %v121 = vunpack.c.l.b16 %v43
  %v122 = vunpack.c.l.b16 %v44
  %v123 = vunpack.c.l.b16 %v45
  %v124 = vunpack.c.l.b16 %v46
  %v125 = vunpack.c.l.b16 %v47
  %v126 = vunpack.c.l.b16 %v48
  %v127 = vunpack.c.l.b16 %v49
  %v128 = vunpack.c.l.b16 %v50
  %v129 = vunpack.c.l.b16 %v51
  %v130 = vunpack.c.l.b16 %v52
  %v131 = vunpack.c.l.b16 %v53
  %v132 = vunpack.c.l.b16 %v54
  %v133 = vunpack.c.l.b16 %v55
  %v134 = vunpack.c.l.b16 %v56
  %v135 = vunpack.c.l.b16 %v57
  %v136 = vunpack.c.l.b16 %v58
  %v137 = vunpack.c.l.b16 %v59
  %v138 = vunpack.c.l.b16 %v60
  %v139 = vunpack.c.l.b16 %v61
  %v140 = vunpack.c.l.b16 %v62
  %v141 = vunpack.c.l.b16 %v63
  %v142 = vunpack.c.l.b16 %v64
  %v143 = vunpack.c.l.b16 %v65
  %v144 = vunpack.c.l.b16 %v66
  %v145 = vunpack.c.l.b16 %v67
  %v146 = vunpack.c.l.b16 %v68
  %v147 = vpack.c.b16 %v118, %v117
  %v148 = vpack.c.b16 %v120, %v119
  %v149 = vpack.c.b16 %v122, %v121
  %v150 = vpack.c.b16 %v124, %v123
  %v151 = vpack.c.b16 %v126, %v125
  %v152 = vpack.c.b16 %v128, %v127
  %v153 = vpack.c.b16 %v130, %v129
  %v154 = vpack.c.b16 %v132, %v131
  %v155 = vpack.c.b16 %v134, %v133
  %v156 = vpack.c.b16 %v136, %v135
  %v157 = vpack.c.b16 %v138, %v137
  %v158 = vpack.c.b16 %v140, %v139
  %v159 = vpack.c.b16 %v142, %v141
  %v160 = vpack.c.b16 %v144, %v143
  %v161 = vpack.c.b16 %v146, %v145
  %v173 = vunpack.c.l.b16 %v69
  %v174 = vunpack.c.l.b16 %v70
  %v175 = vunpack.c.l.b16 %v71
  %v176 = vunpack.c.l.b16 %v72
  %v177 = vunpack.c.l.b16 %v73
  %v178 = vunpack.c.l.b16 %v74
  %v179 = vunpack.c.l.b16 %v75
  %v180 = vunpack.c.l.b16 %v76
  %v181 = vunpack.c.l.b16 %v77
  %v182 = vunpack.c.l.b16 %v78
  %v183 = vunpack.c.l.b16 %v79
  %v184 = vpack.c.b16 %v174, %v173
  %v185 = vpack.c.b16 %v176, %v175
  %v186 = vpack.c.b16 %v178, %v177
  %v187 = vpack.c.b16 %v180, %v179
  %v188 = vpack.c.b16 %v182, %v181
  %v189 = vpack.c.b16 %v183, %v183
  %vm195 = vcmask 719872
  %v197 = vsel %vm195, %v147, 0
  %v200 = vsel %vm195, %v148, 0
  %v203 = vsel %vm195, %v149, 0
  %v206 = vsel %vm195, %v150, 0
  %v209 = vsel %vm195, %v151, 0
  %v212 = vsel %vm195, %v152, 0
  %v215 = vsel %vm195, %v153, 0
  %v218 = vsel %vm195, %v154, 0
  %v221 = vsel %vm195, %v155, 0
  %v224 = vsel %vm195, %v156, 0
  %v227 = vsel %vm195, %v157, 0
  %v230 = vsel %vm195, %v158, 0
  %v233 = vsel %vm195, %v159, 0
  %v236 = vsel %vm195, %v160, 0
  %v239 = vsel %vm195, %v161, 0
  %vm241 = vcmask 1043456
  %v243 = vsel %vm241, %v189, 0
  %245 = vmatprep.subr.bf16.mxu0 0
  %246 = vmatpush1.bf16.msra.mxu0 %v184
  %247 = vmatprep.subr.bf16.mxu0 0
  %248 = vmatpush1.bf16.msra.mxu0 %v185
  %249 = vmatprep.subr.bf16.mxu0 0
  %250 = vmatpush1.bf16.msra.mxu0 %v186
  %251 = vmatprep.subr.bf16.mxu0 0
  %252 = vmatpush1.bf16.msra.mxu0 %v187
  %253 = vmatprep.subr.bf16.mxu0 0
  %254 = vmatpush1.bf16.msra.mxu0 %v188
  %255 = vmatprep.subr.bf16.mxu0 0
  %256 = vmatpush1.bf16.msra.mxu0 %v243
  %257 = vmatprep.subr.bf16.mxu0 0
  %258 = vmatpush1.bf16.msra.mxu0 0
  %259 = vmatprep.subr.bf16.mxu0 0
  %260 = vmatpush1.bf16.msra.mxu0 0
  %261 = vmatprep.subr.bf16.mxu0 0
  %262 = vmatpush1.bf16.msra.mxu0 0
  %263 = vmatprep.subr.bf16.mxu0 0
  %264 = vmatpush1.bf16.msra.mxu0 0
  %265 = vmatprep.subr.bf16.mxu0 0
  %266 = vmatpush1.bf16.msra.mxu0 0
  %267 = vmatprep.subr.bf16.mxu0 0
  %268 = vmatpush1.bf16.msra.mxu0 0
  %269 = vmatprep.subr.bf16.mxu0 0
  %270 = vmatpush1.bf16.msra.mxu0 0
  %271 = vmatprep.subr.bf16.mxu0 0
  %272 = vmatpush1.bf16.msra.mxu0 0
  %273 = vmatprep.subr.bf16.mxu0 0
  %274 = vmatpush1.bf16.msra.mxu0 0
  %275 = vmatprep.subr.bf16.mxu0 0
  %276 = vmatpush1.bf16.msra.mxu0 0
  %277 = vmatprep.mubr.bf16.mxu0 0
  %278 = vmatmul.mubr.bf16.gmra.mrb[0].mxu0 %v197
  %v279 = vpop.f32.mrb[0].mxu0
  %v280 = vadd.f32 %v85, %v279
  %v281 = vpop.f32.mrb[0].mxu0
  %v282 = vpop.f32.mrb[0].mxu0
  %v283 = vadd.f32 %v85, %v282
  %v284 = vpop.f32.mrb[0].mxu0
  %285 = vmatprep.mubr.bf16.mxu0 0
  %286 = vmatmul.mubr.bf16.gmra.mrb[0].mxu0 %v200
  %v287 = vpop.f32.mrb[0].mxu0
  %v288 = vadd.f32 %v85, %v287
  %v289 = vpop.f32.mrb[0].mxu0
  %v290 = vpop.f32.mrb[0].mxu0
  %v291 = vadd.f32 %v85, %v290
  %v292 = vpop.f32.mrb[0].mxu0
  %293 = vmatprep.mubr.bf16.mxu0 0
  %294 = vmatmul.mubr.bf16.gmra.mrb[0].mxu0 %v203
  %v295 = vpop.f32.mrb[0].mxu0
  %v296 = vadd.f32 %v85, %v295
  %v297 = vpop.f32.mrb[0].mxu0
  %v298 = vpop.f32.mrb[0].mxu0
  %v299 = vadd.f32 %v85, %v298
  %v300 = vpop.f32.mrb[0].mxu0
  %301 = vmatprep.mubr.bf16.mxu0 0
  %302 = vmatmul.mubr.bf16.gmra.mrb[0].mxu0 %v206
  %v303 = vpop.f32.mrb[0].mxu0
  %v304 = vadd.f32 %v85, %v303
  %v305 = vpop.f32.mrb[0].mxu0
  %v306 = vpop.f32.mrb[0].mxu0
  %v307 = vadd.f32 %v85, %v306
  %v308 = vpop.f32.mrb[0].mxu0
  %309 = vmatprep.mubr.bf16.mxu0 0
  %310 = vmatmul.mubr.bf16.gmra.mrb[0].mxu0 %v209
  %v311 = vpop.f32.mrb[0].mxu0
  %v312 = vadd.f32 %v85, %v311
  %v313 = vpop.f32.mrb[0].mxu0
  %v314 = vpop.f32.mrb[0].mxu0
  %v315 = vadd.f32 %v85, %v314
  %v316 = vpop.f32.mrb[0].mxu0
  %317 = vmatprep.mubr.bf16.mxu0 0
  %318 = vmatmul.mubr.bf16.gmra.mrb[0].mxu0 %v212
  %v319 = vpop.f32.mrb[0].mxu0
  %v320 = vadd.f32 %v85, %v319
  %v321 = vpop.f32.mrb[0].mxu0
  %v322 = vpop.f32.mrb[0].mxu0
  %v323 = vadd.f32 %v85, %v322
  %v324 = vpop.f32.mrb[0].mxu0
  %325 = vmatprep.mubr.bf16.mxu0 0
  %326 = vmatmul.mubr.bf16.gmra.mrb[0].mxu0 %v215
  %v327 = vpop.f32.mrb[0].mxu0
  %v328 = vadd.f32 %v85, %v327
  %v329 = vpop.f32.mrb[0].mxu0
  %v330 = vpop.f32.mrb[0].mxu0
  %v331 = vadd.f32 %v85, %v330
  %v332 = vpop.f32.mrb[0].mxu0
  %333 = vmatprep.mubr.bf16.mxu0 0
  %334 = vmatmul.mubr.bf16.gmra.mrb[0].mxu0 %v218
  %v335 = vpop.f32.mrb[0].mxu0
  %v336 = vadd.f32 %v85, %v335
  %v337 = vpop.f32.mrb[0].mxu0
  %v338 = vpop.f32.mrb[0].mxu0
  %v339 = vadd.f32 %v85, %v338
  %v340 = vpop.f32.mrb[0].mxu0
  %341 = vmatprep.mubr.bf16.mxu0 0
  %342 = vmatmul.mubr.bf16.gmra.mrb[0].mxu0 %v221
  %v343 = vpop.f32.mrb[0].mxu0
  %v344 = vadd.f32 %v85, %v343
  %v345 = vpop.f32.mrb[0].mxu0
  %v346 = vpop.f32.mrb[0].mxu0
  %v347 = vadd.f32 %v85, %v346
  %v348 = vpop.f32.mrb[0].mxu0
  %349 = vmatprep.mubr.bf16.mxu0 0
  %350 = vmatmul.mubr.bf16.gmra.mrb[0].mxu0 %v224
  %v351 = vpop.f32.mrb[0].mxu0
  %v352 = vadd.f32 %v85, %v351
  %v353 = vpop.f32.mrb[0].mxu0
  %v354 = vpop.f32.mrb[0].mxu0
  %v355 = vadd.f32 %v85, %v354
  %v356 = vpop.f32.mrb[0].mxu0
  %357 = vmatprep.mubr.bf16.mxu0 0
  %358 = vmatmul.mubr.bf16.gmra.mrb[0].mxu0 %v227
  %v359 = vpop.f32.mrb[0].mxu0
  %v360 = vadd.f32 %v85, %v359
  %v361 = vpop.f32.mrb[0].mxu0
  %v362 = vpop.f32.mrb[0].mxu0
  %v363 = vadd.f32 %v85, %v362
  %v364 = vpop.f32.mrb[0].mxu0
  %365 = vmatprep.mubr.bf16.mxu0 0
  %366 = vmatmul.mubr.bf16.gmra.mrb[0].mxu0 %v230
  %v367 = vpop.f32.mrb[0].mxu0
  %v368 = vadd.f32 %v85, %v367
  %v369 = vpop.f32.mrb[0].mxu0
  %v370 = vpop.f32.mrb[0].mxu0
  %v371 = vadd.f32 %v85, %v370
  %v372 = vpop.f32.mrb[0].mxu0
  %373 = vmatprep.mubr.bf16.mxu0 0
  %374 = vmatmul.mubr.bf16.gmra.mrb[0].mxu0 %v233
  %v375 = vpop.f32.mrb[0].mxu0
  %v376 = vadd.f32 %v85, %v375
  %v377 = vpop.f32.mrb[0].mxu0
  %v378 = vpop.f32.mrb[0].mxu0
  %v379 = vadd.f32 %v85, %v378
  %v380 = vpop.f32.mrb[0].mxu0
  %381 = vmatprep.mubr.bf16.mxu0 0
  %382 = vmatmul.mubr.bf16.gmra.mrb[0].mxu0 %v236
  %v383 = vpop.f32.mrb[0].mxu0
  %v384 = vadd.f32 %v85, %v383
  %v385 = vpop.f32.mrb[0].mxu0
  %v386 = vpop.f32.mrb[0].mxu0
  %v387 = vadd.f32 %v85, %v386
  %v388 = vpop.f32.mrb[0].mxu0
  %389 = vmatprep.mubr.bf16.mxu0 0
  %390 = vmatmul.mubr.bf16.gmra.mrb[0].mxu0 %v239
  %v391 = vpop.f32.mrb[0].mxu0
  %v392 = vadd.f32 %v85, %v391
  %v393 = vpop.f32.mrb[0].mxu0
  %v394 = vpop.f32.mrb[0].mxu0
  %v395 = vadd.f32 %v85, %v394
  %v396 = vpop.f32.mrb[0].mxu0
  %397 = vdwg.mxu0
  %398 = vst [vmem:[#allocation2] sm:$0xff] %v280
  %399 = vst [vmem:[#allocation2 + $0x8] sm:$0xff] %v283
  %400 = vst [vmem:[#allocation2 + $0x10] sm:$0xff] %v288
  %401 = vst [vmem:[#allocation2 + $0x18] sm:$0xff] %v291
  %402 = vst [vmem:[#allocation2 + $0x20] sm:$0xff] %v296
  %403 = vst [vmem:[#allocation2 + $0x28] sm:$0xff] %v299
  %404 = vst [vmem:[#allocation2 + $0x30] sm:$0xff] %v304
  %405 = vst [vmem:[#allocation2 + $0x38] sm:$0xff] %v307
  %406 = vst [vmem:[#allocation2 + $0x40] sm:$0xff] %v312
  %407 = vst [vmem:[#allocation2 + $0x48] sm:$0xff] %v315
  %408 = vst [vmem:[#allocation2 + $0x50] sm:$0xff] %v320
  %409 = vst [vmem:[#allocation2 + $0x58] sm:$0xff] %v323
  %410 = vst [vmem:[#allocation2 + $0x60] sm:$0xff] %v328
  %411 = vst [vmem:[#allocation2 + $0x68] sm:$0xff] %v331
  %412 = vst [vmem:[#allocation2 + $0x70] sm:$0xff] %v336
  %413 = vst [vmem:[#allocation2 + $0x78] sm:$0xff] %v339
  %414 = vst [vmem:[#allocation2 + $0x80] sm:$0xff] %v344
  %415 = vst [vmem:[#allocation2 + $0x88] sm:$0xff] %v347
  %416 = vst [vmem:[#allocation2 + $0x90] sm:$0xff] %v352
  %417 = vst [vmem:[#allocation2 + $0x98] sm:$0xff] %v355
  %418 = vst [vmem:[#allocation2 + $0xa0] sm:$0xff] %v360
  %419 = vst [vmem:[#allocation2 + $0xa8] sm:$0xff] %v363
  %420 = vst [vmem:[#allocation2 + $0xb0] sm:$0xff] %v368
  %421 = vst [vmem:[#allocation2 + $0xb8] sm:$0xff] %v371
  %422 = vst [vmem:[#allocation2 + $0xc0] sm:$0xff] %v376
  %423 = vst [vmem:[#allocation2 + $0xc8] sm:$0xff] %v379
  %424 = vst [vmem:[#allocation2 + $0xd0] sm:$0xff] %v384
  %425 = vst [vmem:[#allocation2 + $0xd8] sm:$0xff] %v387
  %426 = vst [vmem:[#allocation2 + $0xe0] sm:$0xff] %v392
  %427 = vst [vmem:[#allocation2 + $0xe8] sm:$0xff] %v395
  %v428 = vld [vmem:[%s3] sm:$0xff]
  %v429 = vld [vmem:[%s3 + $0x8] sm:$0xff]
  %v430 = vld [vmem:[%s3 + $0x10] sm:$0xff]
  %v431 = vld [vmem:[%s3 + $0x18] sm:$0xff]
  %v432 = vld [vmem:[%s3 + $0x20] sm:$0xff]
  %v433 = vld [vmem:[%s3 + $0x28] sm:$0xff]
  %v434 = vld [vmem:[%s3 + $0x30] sm:$0xff]
  %v435 = vld [vmem:[%s3 + $0x38] sm:$0xff]
  %v436 = vld [vmem:[%s4] sm:$0x1]
  %v438 = vlaneseq
  %v439 = vshrl.u32 %v438, 7
  %v440 = vsub.s32 0, %v439
  %v441 = vrot.slane %v436, %v440
  %v443 = vld [vmem:[#allocation2] sm:$0xff]
  %v444 = vxor.u32 %v443, 2147483648
  %v445 = vmul.f32 %v444, 1.442695
  %v446 = vpow.pop %v445
  %v447 = vadd.f32 %v446, 1.0
  %v448 = vrcp.pop %v447
  %v449 = vmul.f32 1.0, %v448
  %v450 = vtanh.pop %v443
  %v451 = vmul.f32 %v449, 0.0
  %453 = vrot.lane.b32.xlu0 %v450, 32
  %v454 = vpop.permute.xlu0 %453
  %v456 = vmul.f32 %v449, %v454
  %458 = vrot.lane.b32.xlu0 %v456, 32
  %v459 = vpop.permute.xlu0 %458
  %v461 = vadd.f32 %v451, %v459
  %v462 = vtanh.pop %v461
  %464 = vrot.lane.b32.xlu0 %v462, 32
  %v465 = vpop.permute.xlu0 %464
  %v467 = vmul.f32 %v449, %v465
  %469 = vrot.lane.b32.xlu0 %v467, 64
  %v470 = vpop.permute.xlu0 %469
  %vm472 = vcmask 261120
  %v473 = vsel %vm472, %v470, 0.0
  %v474 = vpack.c.bf16 %v473, %v473
  %v483 = vunpack.c.l.b16 %v428
  %v484 = vunpack.c.h.b16 %v428
  %v485 = vunpack.c.l.b16 %v429
  %v486 = vunpack.c.h.b16 %v429
  %v487 = vunpack.c.l.b16 %v430
  %v488 = vunpack.c.h.b16 %v430
  %v489 = vunpack.c.l.b16 %v431
  %v490 = vunpack.c.h.b16 %v431
  %v491 = vunpack.c.l.b16 %v432
  %v492 = vunpack.c.h.b16 %v432
  %v493 = vunpack.c.l.b16 %v433
  %v494 = vunpack.c.h.b16 %v433
  %v495 = vunpack.c.l.b16 %v434
  %v496 = vunpack.c.h.b16 %v434
  %v497 = vunpack.c.l.b16 %v435
  %v498 = vunpack.c.h.b16 %v435
  %v499 = vpack.c.b16 %v485, %v483
  %v500 = vpack.c.b16 %v486, %v484
  %v501 = vpack.c.b16 %v489, %v487
  %v502 = vpack.c.b16 %v490, %v488
  %v503 = vpack.c.b16 %v493, %v491
  %v504 = vpack.c.b16 %v494, %v492
  %v505 = vpack.c.b16 %v497, %v495
  %v506 = vpack.c.b16 %v498, %v496
  %vm515 = vcmask 523264
  %v517 = vsel %vm515, %v474, 0
  %519 = vmatprep.subr.bf16.mxu0 %v500
  %520 = vmatpush1.bf16.msra.mxu0 %v499
  %521 = vmatprep.subr.bf16.mxu0 %v502
  %522 = vmatpush1.bf16.msra.mxu0 %v501
  %523 = vmatprep.subr.bf16.mxu0 %v504
  %524 = vmatpush1.bf16.msra.mxu0 %v503
  %525 = vmatprep.subr.bf16.mxu0 %v506
  %526 = vmatpush1.bf16.msra.mxu0 %v505
  %527 = vmatprep.subr.bf16.mxu0 0
  %528 = vmatpush1.bf16.msra.mxu0 0
  %529 = vmatprep.subr.bf16.mxu0 0
  %530 = vmatpush1.bf16.msra.mxu0 0
  %531 = vmatprep.subr.bf16.mxu0 0
  %532 = vmatpush1.bf16.msra.mxu0 0
  %533 = vmatprep.subr.bf16.mxu0 0
  %534 = vmatpush1.bf16.msra.mxu0 0
  %535 = vmatprep.subr.bf16.mxu0 0
  %536 = vmatpush1.bf16.msra.mxu0 0
  %537 = vmatprep.subr.bf16.mxu0 0
  %538 = vmatpush1.bf16.msra.mxu0 0
  %539 = vmatprep.subr.bf16.mxu0 0
  %540 = vmatpush1.bf16.msra.mxu0 0
  %541 = vmatprep.subr.bf16.mxu0 0
  %542 = vmatpush1.bf16.msra.mxu0 0
  %543 = vmatprep.subr.bf16.mxu0 0
  %544 = vmatpush1.bf16.msra.mxu0 0
  %545 = vmatprep.subr.bf16.mxu0 0
  %546 = vmatpush1.bf16.msra.mxu0 0
  %547 = vmatprep.subr.bf16.mxu0 0
  %548 = vmatpush1.bf16.msra.mxu0 0
  %549 = vmatprep.subr.bf16.mxu0 0
  %550 = vmatpush1.bf16.msra.mxu0 0
  %551 = vmatprep.mubr.bf16.mxu0 0
  %552 = vmatmul.mubr.bf16.gmra.mrb[0].mxu0 %v517
  %v553 = vpop.f32.mrb[0].mxu0
  %v554 = vadd.f32 0.0, %v553
  %v555 = vpop.f32.mrb[0].mxu0
  %v556 = vadd.f32 0.0, %v555
  %v557 = vpop.f32.mrb[0].mxu0
  %v558 = vpop.f32.mrb[0].mxu0
  %559 = vdwg.mxu0
  %s560 = scalar_lea.vmem [#allocation2], 8
  %v561 = vld [vmem:[%s560] sm:$0xff]
  %v562 = vadd.f32 %v554, %v561
  %v563 = vadd.f32 %v556, %v441
  %v564 = vxor.u32 %v562, 2147483648
  %v565 = vmul.f32 %v564, 1.442695
  %v566 = vpow.pop %v565
  %v567 = vadd.f32 %v566, 1.0
  %v568 = vrcp.pop %v567
  %v569 = vmul.f32 1.0, %v568
  %v570 = vtanh.pop %v562
  %v571 = vmul.f32 %v569, %v461
  %573 = vrot.lane.b32.xlu0 %v570, 32
  %v574 = vpop.permute.xlu0 %573
  %v576 = vmul.f32 %v569, %v574
  %578 = vrot.lane.b32.xlu0 %v576, 32
  %v579 = vpop.permute.xlu0 %578
  %v581 = vadd.f32 %v571, %v579
  %v582 = vtanh.pop %v581
  %584 = vrot.lane.b32.xlu0 %v582, 32
  %v585 = vpop.permute.xlu0 %584
  %v587 = vmul.f32 %v569, %v585
  %v588 = vxor.u32 %v563, 2147483648
  %v589 = vmul.f32 %v588, 1.442695
  %v590 = vpow.pop %v589
  %v591 = vadd.f32 %v590, 1.0
  %v592 = vrcp.pop %v591
  %v593 = vmul.f32 1.0, %v592
  %v594 = vtanh.pop %v563
  %v595 = vmul.f32 %v593, 0.0
  %597 = vrot.lane.b32.xlu0 %v594, 32
  %v598 = vpop.permute.xlu0 %597
  %v600 = vmul.f32 %v593, %v598
  %602 = vrot.lane.b32.xlu0 %v600, 32
  %v603 = vpop.permute.xlu0 %602
  %v605 = vadd.f32 %v595, %v603
  %v606 = vtanh.pop %v605
  %608 = vrot.lane.b32.xlu0 %v606, 32
  %v609 = vpop.permute.xlu0 %608
  %v611 = vmul.f32 %v593, %v609
  %613 = vrot.lane.b32.xlu0 %v587, 64
  %v614 = vpop.permute.xlu0 %613
  %617 = vrot.lane.b32.xlu0 %v611, 96
  %v618 = vpop.permute.xlu0 %617
  %v620 = vsel %vm472, %v614, %v618
  %v621 = vpack.c.bf16 %v620, %v620
  %v623 = vsel %vm515, %v621, 0
  %625 = vmatprep.subr.bf16.mxu0 %v500
  %626 = vmatpush1.bf16.msra.mxu0 %v499
  %627 = vmatprep.subr.bf16.mxu0 %v502
  %628 = vmatpush1.bf16.msra.mxu0 %v501
  %629 = vmatprep.subr.bf16.mxu0 %v504
  %630 = vmatpush1.bf16.msra.mxu0 %v503
  %631 = vmatprep.subr.bf16.mxu0 %v506
  %632 = vmatpush1.bf16.msra.mxu0 %v505
  %633 = vmatprep.subr.bf16.mxu0 0
  %634 = vmatpush1.bf16.msra.mxu0 0
  %635 = vmatprep.subr.bf16.mxu0 0
  %636 = vmatpush1.bf16.msra.mxu0 0
  %637 = vmatprep.subr.bf16.mxu0 0
  %638 = vmatpush1.bf16.msra.mxu0 0
  %639 = vmatprep.subr.bf16.mxu0 0
  %640 = vmatpush1.bf16.msra.mxu0 0
  %641 = vmatprep.subr.bf16.mxu0 0
  %642 = vmatpush1.bf16.msra.mxu0 0
  %643 = vmatprep.subr.bf16.mxu0 0
  %644 = vmatpush1.bf16.msra.mxu0 0
  %645 = vmatprep.subr.bf16.mxu0 0
  %646 = vmatpush1.bf16.msra.mxu0 0
  %647 = vmatprep.subr.bf16.mxu0 0
  %648 = vmatpush1.bf16.msra.mxu0 0
  %649 = vmatprep.subr.bf16.mxu0 0
  %650 = vmatpush1.bf16.msra.mxu0 0
  %651 = vmatprep.subr.bf16.mxu0 0
  %652 = vmatpush1.bf16.msra.mxu0 0
  %653 = vmatprep.subr.bf16.mxu0 0
  %654 = vmatpush1.bf16.msra.mxu0 0
  %655 = vmatprep.subr.bf16.mxu0 0
  %656 = vmatpush1.bf16.msra.mxu0 0
  %657 = vmatprep.mubr.bf16.mxu0 0
  %658 = vmatmul.mubr.bf16.gmra.mrb[0].mxu0 %v623
  %v659 = vpop.f32.mrb[0].mxu0
  %v660 = vadd.f32 0.0, %v659
  %v661 = vpop.f32.mrb[0].mxu0
  %v662 = vadd.f32 0.0, %v661
  %v663 = vpop.f32.mrb[0].mxu0
  %v664 = vpop.f32.mrb[0].mxu0
  %665 = vdwg.mxu0
  %s666 = scalar_lea.vmem [#allocation2], 16
  %v667 = vld [vmem:[%s666] sm:$0xff]
  %v668 = vadd.f32 %v660, %v667
  %v669 = vadd.f32 %v662, %v441
  %v670 = vxor.u32 %v668, 2147483648
  %v671 = vmul.f32 %v670, 1.442695
  %v672 = vpow.pop %v671
  %v673 = vadd.f32 %v672, 1.0
  %v674 = vrcp.pop %v673
  %v675 = vmul.f32 1.0, %v674
  %v676 = vtanh.pop %v668
  %v677 = vmul.f32 %v675, %v581
  %679 = vrot.lane.b32.xlu0 %v676, 32
  %v680 = vpop.permute.xlu0 %679
  %v682 = vmul.f32 %v675, %v680
  %684 = vrot.lane.b32.xlu0 %v682, 32
  %v685 = vpop.permute.xlu0 %684
  %v687 = vadd.f32 %v677, %v685
  %v688 = vtanh.pop %v687
  %690 = vrot.lane.b32.xlu0 %v688, 32
  %v691 = vpop.permute.xlu0 %690
  %v693 = vmul.f32 %v675, %v691
  %v694 = vxor.u32 %v669, 2147483648
  %v695 = vmul.f32 %v694, 1.442695
  %v696 = vpow.pop %v695
  %v697 = vadd.f32 %v696, 1.0
  %v698 = vrcp.pop %v697
  %v699 = vmul.f32 1.0, %v698
  %v700 = vtanh.pop %v669
  %v701 = vmul.f32 %v699, %v605
  %703 = vrot.lane.b32.xlu0 %v700, 32
  %v704 = vpop.permute.xlu0 %703
  %v706 = vmul.f32 %v699, %v704
  %708 = vrot.lane.b32.xlu0 %v706, 32
  %v709 = vpop.permute.xlu0 %708
  %v711 = vadd.f32 %v701, %v709
  %v712 = vtanh.pop %v711
  %714 = vrot.lane.b32.xlu0 %v712, 32
  %v715 = vpop.permute.xlu0 %714
  %v717 = vmul.f32 %v699, %v715
  %719 = vrot.lane.b32.xlu0 %v693, 64
  %v720 = vpop.permute.xlu0 %719
  %723 = vrot.lane.b32.xlu0 %v717, 96
  %v724 = vpop.permute.xlu0 %723
  %v726 = vsel %vm472, %v720, %v724
  %v727 = vpack.c.bf16 %v726, %v726
  %v729 = vsel %vm515, %v727, 0
  %731 = vmatprep.subr.bf16.mxu0 %v500
  %732 = vmatpush1.bf16.msra.mxu0 %v499
  %733 = vmatprep.subr.bf16.mxu0 %v502
  %734 = vmatpush1.bf16.msra.mxu0 %v501
  %735 = vmatprep.subr.bf16.mxu0 %v504
  %736 = vmatpush1.bf16.msra.mxu0 %v503
  %737 = vmatprep.subr.bf16.mxu0 %v506
  %738 = vmatpush1.bf16.msra.mxu0 %v505
  %739 = vmatprep.subr.bf16.mxu0 0
  %740 = vmatpush1.bf16.msra.mxu0 0
  %741 = vmatprep.subr.bf16.mxu0 0
  %742 = vmatpush1.bf16.msra.mxu0 0
  %743 = vmatprep.subr.bf16.mxu0 0
  %744 = vmatpush1.bf16.msra.mxu0 0
  %745 = vmatprep.subr.bf16.mxu0 0
  %746 = vmatpush1.bf16.msra.mxu0 0
  %747 = vmatprep.subr.bf16.mxu0 0
  %748 = vmatpush1.bf16.msra.mxu0 0
  %749 = vmatprep.subr.bf16.mxu0 0
  %750 = vmatpush1.bf16.msra.mxu0 0
  %751 = vmatprep.subr.bf16.mxu0 0
  %752 = vmatpush1.bf16.msra.mxu0 0
  %753 = vmatprep.subr.bf16.mxu0 0
  %754 = vmatpush1.bf16.msra.mxu0 0
  %755 = vmatprep.subr.bf16.mxu0 0
  %756 = vmatpush1.bf16.msra.mxu0 0
  %757 = vmatprep.subr.bf16.mxu0 0
  %758 = vmatpush1.bf16.msra.mxu0 0
  %759 = vmatprep.subr.bf16.mxu0 0
  %760 = vmatpush1.bf16.msra.mxu0 0
  %761 = vmatprep.subr.bf16.mxu0 0
  %762 = vmatpush1.bf16.msra.mxu0 0
  %763 = vmatprep.mubr.bf16.mxu0 0
  %764 = vmatmul.mubr.bf16.gmra.mrb[0].mxu0 %v729
  %v765 = vpop.f32.mrb[0].mxu0
  %v766 = vadd.f32 0.0, %v765
  %v767 = vpop.f32.mrb[0].mxu0
  %v768 = vadd.f32 0.0, %v767
  %v769 = vpop.f32.mrb[0].mxu0
  %v770 = vpop.f32.mrb[0].mxu0
  %771 = vdwg.mxu0
  %s772 = scalar_lea.vmem [#allocation2], 24
  %v773 = vld [vmem:[%s772] sm:$0xff]
  %v774 = vadd.f32 %v766, %v773
  %v775 = vadd.f32 %v768, %v441
  %v776 = vxor.u32 %v774, 2147483648
  %v777 = vmul.f32 %v776, 1.442695
  %v778 = vpow.pop %v777
  %v779 = vadd.f32 %v778, 1.0
  %v780 = vrcp.pop %v779
  %v781 = vmul.f32 1.0, %v780
  %v782 = vtanh.pop %v774
  %v783 = vmul.f32 %v781, %v687
  %785 = vrot.lane.b32.xlu0 %v782, 32
  %v786 = vpop.permute.xlu0 %785
  %v788 = vmul.f32 %v781, %v786
  %790 = vrot.lane.b32.xlu0 %v788, 32
  %v791 = vpop.permute.xlu0 %790
  %v793 = vadd.f32 %v783, %v791
  %v794 = vtanh.pop %v793
  %796 = vrot.lane.b32.xlu0 %v794, 32
  %v797 = vpop.permute.xlu0 %796
  %v799 = vmul.f32 %v781, %v797
  %v800 = vxor.u32 %v775, 2147483648
  %v801 = vmul.f32 %v800, 1.442695
  %v802 = vpow.pop %v801
  %v803 = vadd.f32 %v802, 1.0
  %v804 = vrcp.pop %v803
  %v805 = vmul.f32 1.0, %v804
  %v806 = vtanh.pop %v775
  %v807 = vmul.f32 %v805, %v711
  %809 = vrot.lane.b32.xlu0 %v806, 32
  %v810 = vpop.permute.xlu0 %809
  %v812 = vmul.f32 %v805, %v810
  %814 = vrot.lane.b32.xlu0 %v812, 32
  %v815 = vpop.permute.xlu0 %814
  %v817 = vadd.f32 %v807, %v815
  %v818 = vtanh.pop %v817
  %820 = vrot.lane.b32.xlu0 %v818, 32
  %v821 = vpop.permute.xlu0 %820
  %v823 = vmul.f32 %v805, %v821
  %825 = vrot.lane.b32.xlu0 %v799, 64
  %v826 = vpop.permute.xlu0 %825
  %829 = vrot.lane.b32.xlu0 %v823, 96
  %v830 = vpop.permute.xlu0 %829
  %v832 = vsel %vm472, %v826, %v830
  %v833 = vpack.c.bf16 %v832, %v832
  %v835 = vsel %vm515, %v833, 0
  %837 = vmatprep.subr.bf16.mxu0 %v500
  %838 = vmatpush1.bf16.msra.mxu0 %v499
  %839 = vmatprep.subr.bf16.mxu0 %v502
  %840 = vmatpush1.bf16.msra.mxu0 %v501
  %841 = vmatprep.subr.bf16.mxu0 %v504
  %842 = vmatpush1.bf16.msra.mxu0 %v503
  %843 = vmatprep.subr.bf16.mxu0 %v506
  %844 = vmatpush1.bf16.msra.mxu0 %v505
  %845 = vmatprep.subr.bf16.mxu0 0
  %846 = vmatpush1.bf16.msra.mxu0 0
  %847 = vmatprep.subr.bf16.mxu0 0
  %848 = vmatpush1.bf16.msra.mxu0 0
  %849 = vmatprep.subr.bf16.mxu0 0
  %850 = vmatpush1.bf16.msra.mxu0 0
  %851 = vmatprep.subr.bf16.mxu0 0
  %852 = vmatpush1.bf16.msra.mxu0 0
  %853 = vmatprep.subr.bf16.mxu0 0
  %854 = vmatpush1.bf16.msra.mxu0 0
  %855 = vmatprep.subr.bf16.mxu0 0
  %856 = vmatpush1.bf16.msra.mxu0 0
  %857 = vmatprep.subr.bf16.mxu0 0
  %858 = vmatpush1.bf16.msra.mxu0 0
  %859 = vmatprep.subr.bf16.mxu0 0
  %860 = vmatpush1.bf16.msra.mxu0 0
  %861 = vmatprep.subr.bf16.mxu0 0
  %862 = vmatpush1.bf16.msra.mxu0 0
  %863 = vmatprep.subr.bf16.mxu0 0
  %864 = vmatpush1.bf16.msra.mxu0 0
  %865 = vmatprep.subr.bf16.mxu0 0
  %866 = vmatpush1.bf16.msra.mxu0 0
  %867 = vmatprep.subr.bf16.mxu0 0
  %868 = vmatpush1.bf16.msra.mxu0 0
  %869 = vmatprep.mubr.bf16.mxu0 0
  %870 = vmatmul.mubr.bf16.gmra.mrb[0].mxu0 %v835
  %v871 = vpop.f32.mrb[0].mxu0
  %v872 = vadd.f32 0.0, %v871
  %v873 = vpop.f32.mrb[0].mxu0
  %v874 = vadd.f32 0.0, %v873
  %v875 = vpop.f32.mrb[0].mxu0
  %v876 = vpop.f32.mrb[0].mxu0
  %877 = vdwg.mxu0
  %s878 = scalar_lea.vmem [#allocation2], 32
  %v879 = vld [vmem:[%s878] sm:$0xff]
  %v880 = vadd.f32 %v872, %v879
  %v881 = vadd.f32 %v874, %v441
  %v882 = vxor.u32 %v880, 2147483648
  %v883 = vmul.f32 %v882, 1.442695
  %v884 = vpow.pop %v883
  %v885 = vadd.f32 %v884, 1.0
  %v886 = vrcp.pop %v885
  %v887 = vmul.f32 1.0, %v886
  %v888 = vtanh.pop %v880
  %v889 = vmul.f32 %v887, %v793
  %891 = vrot.lane.b32.xlu0 %v888, 32
  %v892 = vpop.permute.xlu0 %891
  %v894 = vmul.f32 %v887, %v892
  %896 = vrot.lane.b32.xlu0 %v894, 32
  %v897 = vpop.permute.xlu0 %896
  %v899 = vadd.f32 %v889, %v897
  %v900 = vtanh.pop %v899
  %902 = vrot.lane.b32.xlu0 %v900, 32
  %v903 = vpop.permute.xlu0 %902
  %v905 = vmul.f32 %v887, %v903
  %v906 = vxor.u32 %v881, 2147483648
  %v907 = vmul.f32 %v906, 1.442695
  %v908 = vpow.pop %v907
  %v909 = vadd.f32 %v908, 1.0
  %v910 = vrcp.pop %v909
  %v911 = vmul.f32 1.0, %v910
  %v912 = vtanh.pop %v881
  %v913 = vmul.f32 %v911, %v817
  %915 = vrot.lane.b32.xlu0 %v912, 32
  %v916 = vpop.permute.xlu0 %915
  %v918 = vmul.f32 %v911, %v916
  %920 = vrot.lane.b32.xlu0 %v918, 32
  %v921 = vpop.permute.xlu0 %920
  %v923 = vadd.f32 %v913, %v921
  %v924 = vtanh.pop %v923
  %926 = vrot.lane.b32.xlu0 %v924, 32
  %v927 = vpop.permute.xlu0 %926
  %v929 = vmul.f32 %v911, %v927
  %931 = vrot.lane.b32.xlu0 %v905, 64
  %v932 = vpop.permute.xlu0 %931
  %935 = vrot.lane.b32.xlu0 %v929, 96
  %v936 = vpop.permute.xlu0 %935
  %v938 = vsel %vm472, %v932, %v936
  %v939 = vpack.c.bf16 %v938, %v938
  %v941 = vsel %vm515, %v939, 0
  %943 = vmatprep.subr.bf16.mxu0 %v500
  %944 = vmatpush1.bf16.msra.mxu0 %v499
  %945 = vmatprep.subr.bf16.mxu0 %v502
  %946 = vmatpush1.bf16.msra.mxu0 %v501
  %947 = vmatprep.subr.bf16.mxu0 %v504
  %948 = vmatpush1.bf16.msra.mxu0 %v503
  %949 = vmatprep.subr.bf16.mxu0 %v506
  %950 = vmatpush1.bf16.msra.mxu0 %v505
  %951 = vmatprep.subr.bf16.mxu0 0
  %952 = vmatpush1.bf16.msra.mxu0 0
  %953 = vmatprep.subr.bf16.mxu0 0
  %954 = vmatpush1.bf16.msra.mxu0 0
  %955 = vmatprep.subr.bf16.mxu0 0
  %956 = vmatpush1.bf16.msra.mxu0 0
  %957 = vmatprep.subr.bf16.mxu0 0
  %958 = vmatpush1.bf16.msra.mxu0 0
  %959 = vmatprep.subr.bf16.mxu0 0
  %960 = vmatpush1.bf16.msra.mxu0 0
  %961 = vmatprep.subr.bf16.mxu0 0
  %962 = vmatpush1.bf16.msra.mxu0 0
  %963 = vmatprep.subr.bf16.mxu0 0
  %964 = vmatpush1.bf16.msra.mxu0 0
  %965 = vmatprep.subr.bf16.mxu0 0
  %966 = vmatpush1.bf16.msra.mxu0 0
  %967 = vmatprep.subr.bf16.mxu0 0
  %968 = vmatpush1.bf16.msra.mxu0 0
  %969 = vmatprep.subr.bf16.mxu0 0
  %970 = vmatpush1.bf16.msra.mxu0 0
  %971 = vmatprep.subr.bf16.mxu0 0
  %972 = vmatpush1.bf16.msra.mxu0 0
  %973 = vmatprep.subr.bf16.mxu0 0
  %974 = vmatpush1.bf16.msra.mxu0 0
  %975 = vmatprep.mubr.bf16.mxu0 0
  %976 = vmatmul.mubr.bf16.gmra.mrb[0].mxu0 %v941
  %v977 = vpop.f32.mrb[0].mxu0
  %v978 = vadd.f32 0.0, %v977
  %v979 = vpop.f32.mrb[0].mxu0
  %v980 = vadd.f32 0.0, %v979
  %v981 = vpop.f32.mrb[0].mxu0
  %v982 = vpop.f32.mrb[0].mxu0
  %983 = vdwg.mxu0
  %s984 = scalar_lea.vmem [#allocation2], 40
  %v985 = vld [vmem:[%s984] sm:$0xff]
  %v986 = vadd.f32 %v978, %v985
  %v987 = vadd.f32 %v980, %v441
  %v988 = vxor.u32 %v986, 2147483648
  %v989 = vmul.f32 %v988, 1.442695
  %v990 = vpow.pop %v989
  %v991 = vadd.f32 %v990, 1.0
  %v992 = vrcp.pop %v991
  %v993 = vmul.f32 1.0, %v992
  %v994 = vtanh.pop %v986
  %v995 = vmul.f32 %v993, %v899
  %997 = vrot.lane.b32.xlu0 %v994, 32
  %v998 = vpop.permute.xlu0 %997
  %v1000 = vmul.f32 %v993, %v998
  %1002 = vrot.lane.b32.xlu0 %v1000, 32
  %v1003 = vpop.permute.xlu0 %1002
  %v1005 = vadd.f32 %v995, %v1003
  %v1006 = vtanh.pop %v1005
  %1008 = vrot.lane.b32.xlu0 %v1006, 32
  %v1009 = vpop.permute.xlu0 %1008
  %v1011 = vmul.f32 %v993, %v1009
  %v1012 = vxor.u32 %v987, 2147483648
  %v1013 = vmul.f32 %v1012, 1.442695
  %v1014 = vpow.pop %v1013
  %v1015 = vadd.f32 %v1014, 1.0
  %v1016 = vrcp.pop %v1015
  %v1017 = vmul.f32 1.0, %v1016
  %v1018 = vtanh.pop %v987
  %v1019 = vmul.f32 %v1017, %v923
  %1021 = vrot.lane.b32.xlu0 %v1018, 32
  %v1022 = vpop.permute.xlu0 %1021
  %v1024 = vmul.f32 %v1017, %v1022
  %1026 = vrot.lane.b32.xlu0 %v1024, 32
  %v1027 = vpop.permute.xlu0 %1026
  %v1029 = vadd.f32 %v1019, %v1027
  %v1030 = vtanh.pop %v1029
  %1032 = vrot.lane.b32.xlu0 %v1030, 32
  %v1033 = vpop.permute.xlu0 %1032
  %v1035 = vmul.f32 %v1017, %v1033
  %1037 = vrot.lane.b32.xlu0 %v1011, 64
  %v1038 = vpop.permute.xlu0 %1037
  %1041 = vrot.lane.b32.xlu0 %v1035, 96
  %v1042 = vpop.permute.xlu0 %1041
  %v1044 = vsel %vm472, %v1038, %v1042
  %v1045 = vpack.c.bf16 %v1044, %v1044
  %v1047 = vsel %vm515, %v1045, 0
  %1049 = vmatprep.subr.bf16.mxu0 %v500
  %1050 = vmatpush1.bf16.msra.mxu0 %v499
  %1051 = vmatprep.subr.bf16.mxu0 %v502
  %1052 = vmatpush1.bf16.msra.mxu0 %v501
  %1053 = vmatprep.subr.bf16.mxu0 %v504
  %1054 = vmatpush1.bf16.msra.mxu0 %v503
  %1055 = vmatprep.subr.bf16.mxu0 %v506
  %1056 = vmatpush1.bf16.msra.mxu0 %v505
  %1057 = vmatprep.subr.bf16.mxu0 0
  %1058 = vmatpush1.bf16.msra.mxu0 0
  %1059 = vmatprep.subr.bf16.mxu0 0
  %1060 = vmatpush1.bf16.msra.mxu0 0
  %1061 = vmatprep.subr.bf16.mxu0 0
  %1062 = vmatpush1.bf16.msra.mxu0 0
  %1063 = vmatprep.subr.bf16.mxu0 0
  %1064 = vmatpush1.bf16.msra.mxu0 0
  %1065 = vmatprep.subr.bf16.mxu0 0
  %1066 = vmatpush1.bf16.msra.mxu0 0
  %1067 = vmatprep.subr.bf16.mxu0 0
  %1068 = vmatpush1.bf16.msra.mxu0 0
  %1069 = vmatprep.subr.bf16.mxu0 0
  %1070 = vmatpush1.bf16.msra.mxu0 0
  %1071 = vmatprep.subr.bf16.mxu0 0
  %1072 = vmatpush1.bf16.msra.mxu0 0
  %1073 = vmatprep.subr.bf16.mxu0 0
  %1074 = vmatpush1.bf16.msra.mxu0 0
  %1075 = vmatprep.subr.bf16.mxu0 0
  %1076 = vmatpush1.bf16.msra.mxu0 0
  %1077 = vmatprep.subr.bf16.mxu0 0
  %1078 = vmatpush1.bf16.msra.mxu0 0
  %1079 = vmatprep.subr.bf16.mxu0 0
  %1080 = vmatpush1.bf16.msra.mxu0 0
  %1081 = vmatprep.mubr.bf16.mxu0 0
  %1082 = vmatmul.mubr.bf16.gmra.mrb[0].mxu0 %v1047
  %v1083 = vpop.f32.mrb[0].mxu0
  %v1084 = vadd.f32 0.0, %v1083
  %v1085 = vpop.f32.mrb[0].mxu0
  %v1086 = vadd.f32 0.0, %v1085
  %v1087 = vpop.f32.mrb[0].mxu0
  %v1088 = vpop.f32.mrb[0].mxu0
  %1089 = vdwg.mxu0
  %s1090 = scalar_lea.vmem [#allocation2], 48
  %v1091 = vld [vmem:[%s1090] sm:$0xff]
  %v1092 = vadd.f32 %v1084, %v1091
  %v1093 = vadd.f32 %v1086, %v441
  %v1094 = vxor.u32 %v1092, 2147483648
  %v1095 = vmul.f32 %v1094, 1.442695
  %v1096 = vpow.pop %v1095
  %v1097 = vadd.f32 %v1096, 1.0
  %v1098 = vrcp.pop %v1097
  %v1099 = vmul.f32 1.0, %v1098
  %v1100 = vtanh.pop %v1092
  %v1101 = vmul.f32 %v1099, %v1005
  %1103 = vrot.lane.b32.xlu0 %v1100, 32
  %v1104 = vpop.permute.xlu0 %1103
  %v1106 = vmul.f32 %v1099, %v1104
  %1108 = vrot.lane.b32.xlu0 %v1106, 32
  %v1109 = vpop.permute.xlu0 %1108
  %v1111 = vadd.f32 %v1101, %v1109
  %v1112 = vtanh.pop %v1111
  %1114 = vrot.lane.b32.xlu0 %v1112, 32
  %v1115 = vpop.permute.xlu0 %1114
  %v1117 = vmul.f32 %v1099, %v1115
  %v1118 = vxor.u32 %v1093, 2147483648
  %v1119 = vmul.f32 %v1118, 1.442695
  %v1120 = vpow.pop %v1119
  %v1121 = vadd.f32 %v1120, 1.0
  %v1122 = vrcp.pop %v1121
  %v1123 = vmul.f32 1.0, %v1122
  %v1124 = vtanh.pop %v1093
  %v1125 = vmul.f32 %v1123, %v1029
  %1127 = vrot.lane.b32.xlu0 %v1124, 32
  %v1128 = vpop.permute.xlu0 %1127
  %v1130 = vmul.f32 %v1123, %v1128
  %1132 = vrot.lane.b32.xlu0 %v1130, 32
  %v1133 = vpop.permute.xlu0 %1132
  %v1135 = vadd.f32 %v1125, %v1133
  %v1136 = vtanh.pop %v1135
  %1138 = vrot.lane.b32.xlu0 %v1136, 32
  %v1139 = vpop.permute.xlu0 %1138
  %v1141 = vmul.f32 %v1123, %v1139
  %1143 = vrot.lane.b32.xlu0 %v1117, 64
  %v1144 = vpop.permute.xlu0 %1143
  %1147 = vrot.lane.b32.xlu0 %v1141, 96
  %v1148 = vpop.permute.xlu0 %1147
  %v1150 = vsel %vm472, %v1144, %v1148
  %v1151 = vpack.c.bf16 %v1150, %v1150
  %v1153 = vsel %vm515, %v1151, 0
  %1155 = vmatprep.subr.bf16.mxu0 %v500
  %1156 = vmatpush1.bf16.msra.mxu0 %v499
  %1157 = vmatprep.subr.bf16.mxu0 %v502
  %1158 = vmatpush1.bf16.msra.mxu0 %v501
  %1159 = vmatprep.subr.bf16.mxu0 %v504
  %1160 = vmatpush1.bf16.msra.mxu0 %v503
  %1161 = vmatprep.subr.bf16.mxu0 %v506
  %1162 = vmatpush1.bf16.msra.mxu0 %v505
  %1163 = vmatprep.subr.bf16.mxu0 0
  %1164 = vmatpush1.bf16.msra.mxu0 0
  %1165 = vmatprep.subr.bf16.mxu0 0
  %1166 = vmatpush1.bf16.msra.mxu0 0
  %1167 = vmatprep.subr.bf16.mxu0 0
  %1168 = vmatpush1.bf16.msra.mxu0 0
  %1169 = vmatprep.subr.bf16.mxu0 0
  %1170 = vmatpush1.bf16.msra.mxu0 0
  %1171 = vmatprep.subr.bf16.mxu0 0
  %1172 = vmatpush1.bf16.msra.mxu0 0
  %1173 = vmatprep.subr.bf16.mxu0 0
  %1174 = vmatpush1.bf16.msra.mxu0 0
  %1175 = vmatprep.subr.bf16.mxu0 0
  %1176 = vmatpush1.bf16.msra.mxu0 0
  %1177 = vmatprep.subr.bf16.mxu0 0
  %1178 = vmatpush1.bf16.msra.mxu0 0
  %1179 = vmatprep.subr.bf16.mxu0 0
  %1180 = vmatpush1.bf16.msra.mxu0 0
  %1181 = vmatprep.subr.bf16.mxu0 0
  %1182 = vmatpush1.bf16.msra.mxu0 0
  %1183 = vmatprep.subr.bf16.mxu0 0
  %1184 = vmatpush1.bf16.msra.mxu0 0
  %1185 = vmatprep.subr.bf16.mxu0 0
  %1186 = vmatpush1.bf16.msra.mxu0 0
  %1187 = vmatprep.mubr.bf16.mxu0 0
  %1188 = vmatmul.mubr.bf16.gmra.mrb[0].mxu0 %v1153
  %v1189 = vpop.f32.mrb[0].mxu0
  %v1190 = vadd.f32 0.0, %v1189
  %v1191 = vpop.f32.mrb[0].mxu0
  %v1192 = vadd.f32 0.0, %v1191
  %v1193 = vpop.f32.mrb[0].mxu0
  %v1194 = vpop.f32.mrb[0].mxu0
  %1195 = vdwg.mxu0
  %s1196 = scalar_lea.vmem [#allocation2], 56
  %v1197 = vld [vmem:[%s1196] sm:$0xff]
  %v1198 = vadd.f32 %v1190, %v1197
  %v1199 = vadd.f32 %v1192, %v441
  %v1200 = vxor.u32 %v1198, 2147483648
  %v1201 = vmul.f32 %v1200, 1.442695
  %v1202 = vpow.pop %v1201
  %v1203 = vadd.f32 %v1202, 1.0
  %v1204 = vrcp.pop %v1203
  %v1205 = vmul.f32 1.0, %v1204
  %v1206 = vtanh.pop %v1198
  %v1207 = vmul.f32 %v1205, %v1111
  %1209 = vrot.lane.b32.xlu0 %v1206, 32
  %v1210 = vpop.permute.xlu0 %1209
  %v1212 = vmul.f32 %v1205, %v1210
  %1214 = vrot.lane.b32.xlu0 %v1212, 32
  %v1215 = vpop.permute.xlu0 %1214
  %v1217 = vadd.f32 %v1207, %v1215
  %v1218 = vtanh.pop %v1217
  %1220 = vrot.lane.b32.xlu0 %v1218, 32
  %v1221 = vpop.permute.xlu0 %1220
  %v1223 = vmul.f32 %v1205, %v1221
  %v1224 = vxor.u32 %v1199, 2147483648
  %v1225 = vmul.f32 %v1224, 1.442695
  %v1226 = vpow.pop %v1225
  %v1227 = vadd.f32 %v1226, 1.0
  %v1228 = vrcp.pop %v1227
  %v1229 = vmul.f32 1.0, %v1228
  %v1230 = vtanh.pop %v1199
  %v1231 = vmul.f32 %v1229, %v1135
  %1233 = vrot.lane.b32.xlu0 %v1230, 32
  %v1234 = vpop.permute.xlu0 %1233
  %v1236 = vmul.f32 %v1229, %v1234
  %1238 = vrot.lane.b32.xlu0 %v1236, 32
  %v1239 = vpop.permute.xlu0 %1238
  %v1241 = vadd.f32 %v1231, %v1239
  %v1242 = vtanh.pop %v1241
  %1244 = vrot.lane.b32.xlu0 %v1242, 32
  %v1245 = vpop.permute.xlu0 %1244
  %v1247 = vmul.f32 %v1229, %v1245
  %1249 = vrot.lane.b32.xlu0 %v1223, 64
  %v1250 = vpop.permute.xlu0 %1249
  %1253 = vrot.lane.b32.xlu0 %v1247, 96
  %v1254 = vpop.permute.xlu0 %1253
  %v1256 = vsel %vm472, %v1250, %v1254
  %v1257 = vpack.c.bf16 %v1256, %v1256
  %v1259 = vsel %vm515, %v1257, 0
  %1261 = vmatprep.subr.bf16.mxu0 %v500
  %1262 = vmatpush1.bf16.msra.mxu0 %v499
  %1263 = vmatprep.subr.bf16.mxu0 %v502
  %1264 = vmatpush1.bf16.msra.mxu0 %v501
  %1265 = vmatprep.subr.bf16.mxu0 %v504
  %1266 = vmatpush1.bf16.msra.mxu0 %v503
  %1267 = vmatprep.subr.bf16.mxu0 %v506
  %1268 = vmatpush1.bf16.msra.mxu0 %v505
  %1269 = vmatprep.subr.bf16.mxu0 0
  %1270 = vmatpush1.bf16.msra.mxu0 0
  %1271 = vmatprep.subr.bf16.mxu0 0
  %1272 = vmatpush1.bf16.msra.mxu0 0
  %1273 = vmatprep.subr.bf16.mxu0 0
  %1274 = vmatpush1.bf16.msra.mxu0 0
  %1275 = vmatprep.subr.bf16.mxu0 0
  %1276 = vmatpush1.bf16.msra.mxu0 0
  %1277 = vmatprep.subr.bf16.mxu0 0
  %1278 = vmatpush1.bf16.msra.mxu0 0
  %1279 = vmatprep.subr.bf16.mxu0 0
  %1280 = vmatpush1.bf16.msra.mxu0 0
  %1281 = vmatprep.subr.bf16.mxu0 0
  %1282 = vmatpush1.bf16.msra.mxu0 0
  %1283 = vmatprep.subr.bf16.mxu0 0
  %1284 = vmatpush1.bf16.msra.mxu0 0
  %1285 = vmatprep.subr.bf16.mxu0 0
  %1286 = vmatpush1.bf16.msra.mxu0 0
  %1287 = vmatprep.subr.bf16.mxu0 0
  %1288 = vmatpush1.bf16.msra.mxu0 0
  %1289 = vmatprep.subr.bf16.mxu0 0
  %1290 = vmatpush1.bf16.msra.mxu0 0
  %1291 = vmatprep.subr.bf16.mxu0 0
  %1292 = vmatpush1.bf16.msra.mxu0 0
  %1293 = vmatprep.mubr.bf16.mxu0 0
  %1294 = vmatmul.mubr.bf16.gmra.mrb[0].mxu0 %v1259
  %v1295 = vpop.f32.mrb[0].mxu0
  %v1296 = vadd.f32 0.0, %v1295
  %v1297 = vpop.f32.mrb[0].mxu0
  %v1298 = vadd.f32 0.0, %v1297
  %v1299 = vpop.f32.mrb[0].mxu0
  %v1300 = vpop.f32.mrb[0].mxu0
  %1301 = vdwg.mxu0
  %s1302 = scalar_lea.vmem [#allocation2], 64
  %v1303 = vld [vmem:[%s1302] sm:$0xff]
  %v1304 = vadd.f32 %v1296, %v1303
  %v1305 = vadd.f32 %v1298, %v441
  %v1306 = vxor.u32 %v1304, 2147483648
  %v1307 = vmul.f32 %v1306, 1.442695
  %v1308 = vpow.pop %v1307
  %v1309 = vadd.f32 %v1308, 1.0
  %v1310 = vrcp.pop %v1309
  %v1311 = vmul.f32 1.0, %v1310
  %v1312 = vtanh.pop %v1304
  %v1313 = vmul.f32 %v1311, %v1217
  %1315 = vrot.lane.b32.xlu0 %v1312, 32
  %v1316 = vpop.permute.xlu0 %1315
  %v1318 = vmul.f32 %v1311, %v1316
  %1320 = vrot.lane.b32.xlu0 %v1318, 32
  %v1321 = vpop.permute.xlu0 %1320
  %v1323 = vadd.f32 %v1313, %v1321
  %v1324 = vtanh.pop %v1323
  %1326 = vrot.lane.b32.xlu0 %v1324, 32
  %v1327 = vpop.permute.xlu0 %1326
  %v1329 = vmul.f32 %v1311, %v1327
  %v1330 = vxor.u32 %v1305, 2147483648
  %v1331 = vmul.f32 %v1330, 1.442695
  %v1332 = vpow.pop %v1331
  %v1333 = vadd.f32 %v1332, 1.0
  %v1334 = vrcp.pop %v1333
  %v1335 = vmul.f32 1.0, %v1334
  %v1336 = vtanh.pop %v1305
  %v1337 = vmul.f32 %v1335, %v1241
  %1339 = vrot.lane.b32.xlu0 %v1336, 32
  %v1340 = vpop.permute.xlu0 %1339
  %v1342 = vmul.f32 %v1335, %v1340
  %1344 = vrot.lane.b32.xlu0 %v1342, 32
  %v1345 = vpop.permute.xlu0 %1344
  %v1347 = vadd.f32 %v1337, %v1345
  %v1348 = vtanh.pop %v1347
  %1350 = vrot.lane.b32.xlu0 %v1348, 32
  %v1351 = vpop.permute.xlu0 %1350
  %v1353 = vmul.f32 %v1335, %v1351
  %1355 = vrot.lane.b32.xlu0 %v1329, 64
  %v1356 = vpop.permute.xlu0 %1355
  %1359 = vrot.lane.b32.xlu0 %v1353, 96
  %v1360 = vpop.permute.xlu0 %1359
  %v1362 = vsel %vm472, %v1356, %v1360
  %v1363 = vpack.c.bf16 %v1362, %v1362
  %v1365 = vsel %vm515, %v1363, 0
  %1367 = vmatprep.subr.bf16.mxu0 %v500
  %1368 = vmatpush1.bf16.msra.mxu0 %v499
  %1369 = vmatprep.subr.bf16.mxu0 %v502
  %1370 = vmatpush1.bf16.msra.mxu0 %v501
  %1371 = vmatprep.subr.bf16.mxu0 %v504
  %1372 = vmatpush1.bf16.msra.mxu0 %v503
  %1373 = vmatprep.subr.bf16.mxu0 %v506
  %1374 = vmatpush1.bf16.msra.mxu0 %v505
  %1375 = vmatprep.subr.bf16.mxu0 0
  %1376 = vmatpush1.bf16.msra.mxu0 0
  %1377 = vmatprep.subr.bf16.mxu0 0
  %1378 = vmatpush1.bf16.msra.mxu0 0
  %1379 = vmatprep.subr.bf16.mxu0 0
  %1380 = vmatpush1.bf16.msra.mxu0 0
  %1381 = vmatprep.subr.bf16.mxu0 0
  %1382 = vmatpush1.bf16.msra.mxu0 0
  %1383 = vmatprep.subr.bf16.mxu0 0
  %1384 = vmatpush1.bf16.msra.mxu0 0
  %1385 = vmatprep.subr.bf16.mxu0 0
  %1386 = vmatpush1.bf16.msra.mxu0 0
  %1387 = vmatprep.subr.bf16.mxu0 0
  %1388 = vmatpush1.bf16.msra.mxu0 0
  %1389 = vmatprep.subr.bf16.mxu0 0
  %1390 = vmatpush1.bf16.msra.mxu0 0
  %1391 = vmatprep.subr.bf16.mxu0 0
  %1392 = vmatpush1.bf16.msra.mxu0 0
  %1393 = vmatprep.subr.bf16.mxu0 0
  %1394 = vmatpush1.bf16.msra.mxu0 0
  %1395 = vmatprep.subr.bf16.mxu0 0
  %1396 = vmatpush1.bf16.msra.mxu0 0
  %1397 = vmatprep.subr.bf16.mxu0 0
  %1398 = vmatpush1.bf16.msra.mxu0 0
  %1399 = vmatprep.mubr.bf16.mxu0 0
  %1400 = vmatmul.mubr.bf16.gmra.mrb[0].mxu0 %v1365
  %v1401 = vpop.f32.mrb[0].mxu0
  %v1402 = vadd.f32 0.0, %v1401
  %v1403 = vpop.f32.mrb[0].mxu0
  %v1404 = vadd.f32 0.0, %v1403
  %v1405 = vpop.f32.mrb[0].mxu0
  %v1406 = vpop.f32.mrb[0].mxu0
  %1407 = vdwg.mxu0
  %s1408 = scalar_lea.vmem [#allocation2], 72
  %v1409 = vld [vmem:[%s1408] sm:$0xff]
  %v1410 = vadd.f32 %v1402, %v1409
  %v1411 = vadd.f32 %v1404, %v441
  %v1412 = vxor.u32 %v1410, 2147483648
  %v1413 = vmul.f32 %v1412, 1.442695
  %v1414 = vpow.pop %v1413
  %v1415 = vadd.f32 %v1414, 1.0
  %v1416 = vrcp.pop %v1415
  %v1417 = vmul.f32 1.0, %v1416
  %v1418 = vtanh.pop %v1410
  %v1419 = vmul.f32 %v1417, %v1323
  %1421 = vrot.lane.b32.xlu0 %v1418, 32
  %v1422 = vpop.permute.xlu0 %1421
  %v1424 = vmul.f32 %v1417, %v1422
  %1426 = vrot.lane.b32.xlu0 %v1424, 32
  %v1427 = vpop.permute.xlu0 %1426
  %v1429 = vadd.f32 %v1419, %v1427
  %v1430 = vtanh.pop %v1429
  %1432 = vrot.lane.b32.xlu0 %v1430, 32
  %v1433 = vpop.permute.xlu0 %1432
  %v1435 = vmul.f32 %v1417, %v1433
  %v1436 = vxor.u32 %v1411, 2147483648
  %v1437 = vmul.f32 %v1436, 1.442695
  %v1438 = vpow.pop %v1437
  %v1439 = vadd.f32 %v1438, 1.0
  %v1440 = vrcp.pop %v1439
  %v1441 = vmul.f32 1.0, %v1440
  %v1442 = vtanh.pop %v1411
  %v1443 = vmul.f32 %v1441, %v1347
  %1445 = vrot.lane.b32.xlu0 %v1442, 32
  %v1446 = vpop.permute.xlu0 %1445
  %v1448 = vmul.f32 %v1441, %v1446
  %1450 = vrot.lane.b32.xlu0 %v1448, 32
  %v1451 = vpop.permute.xlu0 %1450
  %v1453 = vadd.f32 %v1443, %v1451
  %v1454 = vtanh.pop %v1453
  %1456 = vrot.lane.b32.xlu0 %v1454, 32
  %v1457 = vpop.permute.xlu0 %1456
  %v1459 = vmul.f32 %v1441, %v1457
  %1461 = vrot.lane.b32.xlu0 %v1435, 64
  %v1462 = vpop.permute.xlu0 %1461
  %1465 = vrot.lane.b32.xlu0 %v1459, 96
  %v1466 = vpop.permute.xlu0 %1465
  %v1468 = vsel %vm472, %v1462, %v1466
  %v1469 = vpack.c.bf16 %v1468, %v1468
  %v1471 = vsel %vm515, %v1469, 0
  %1473 = vmatprep.subr.bf16.mxu0 %v500
  %1474 = vmatpush1.bf16.msra.mxu0 %v499
  %1475 = vmatprep.subr.bf16.mxu0 %v502
  %1476 = vmatpush1.bf16.msra.mxu0 %v501
  %1477 = vmatprep.subr.bf16.mxu0 %v504
  %1478 = vmatpush1.bf16.msra.mxu0 %v503
  %1479 = vmatprep.subr.bf16.mxu0 %v506
  %1480 = vmatpush1.bf16.msra.mxu0 %v505
  %1481 = vmatprep.subr.bf16.mxu0 0
  %1482 = vmatpush1.bf16.msra.mxu0 0
  %1483 = vmatprep.subr.bf16.mxu0 0
  %1484 = vmatpush1.bf16.msra.mxu0 0
  %1485 = vmatprep.subr.bf16.mxu0 0
  %1486 = vmatpush1.bf16.msra.mxu0 0
  %1487 = vmatprep.subr.bf16.mxu0 0
  %1488 = vmatpush1.bf16.msra.mxu0 0
  %1489 = vmatprep.subr.bf16.mxu0 0
  %1490 = vmatpush1.bf16.msra.mxu0 0
  %1491 = vmatprep.subr.bf16.mxu0 0
  %1492 = vmatpush1.bf16.msra.mxu0 0
  %1493 = vmatprep.subr.bf16.mxu0 0
  %1494 = vmatpush1.bf16.msra.mxu0 0
  %1495 = vmatprep.subr.bf16.mxu0 0
  %1496 = vmatpush1.bf16.msra.mxu0 0
  %1497 = vmatprep.subr.bf16.mxu0 0
  %1498 = vmatpush1.bf16.msra.mxu0 0
  %1499 = vmatprep.subr.bf16.mxu0 0
  %1500 = vmatpush1.bf16.msra.mxu0 0
  %1501 = vmatprep.subr.bf16.mxu0 0
  %1502 = vmatpush1.bf16.msra.mxu0 0
  %1503 = vmatprep.subr.bf16.mxu0 0
  %1504 = vmatpush1.bf16.msra.mxu0 0
  %1505 = vmatprep.mubr.bf16.mxu0 0
  %1506 = vmatmul.mubr.bf16.gmra.mrb[0].mxu0 %v1471
  %v1507 = vpop.f32.mrb[0].mxu0
  %v1508 = vadd.f32 0.0, %v1507
  %v1509 = vpop.f32.mrb[0].mxu0
  %v1510 = vadd.f32 0.0, %v1509
  %v1511 = vpop.f32.mrb[0].mxu0
  %v1512 = vpop.f32.mrb[0].mxu0
  %1513 = vdwg.mxu0
  %s1514 = scalar_lea.vmem [#allocation2], 80
  %v1515 = vld [vmem:[%s1514] sm:$0xff]
  %v1516 = vadd.f32 %v1508, %v1515
  %v1517 = vadd.f32 %v1510, %v441
  %v1518 = vxor.u32 %v1516, 2147483648
  %v1519 = vmul.f32 %v1518, 1.442695
  %v1520 = vpow.pop %v1519
  %v1521 = vadd.f32 %v1520, 1.0
  %v1522 = vrcp.pop %v1521
  %v1523 = vmul.f32 1.0, %v1522
  %v1524 = vtanh.pop %v1516
  %v1525 = vmul.f32 %v1523, %v1429
  %1527 = vrot.lane.b32.xlu0 %v1524, 32
  %v1528 = vpop.permute.xlu0 %1527
  %v1530 = vmul.f32 %v1523, %v1528
  %1532 = vrot.lane.b32.xlu0 %v1530, 32
  %v1533 = vpop.permute.xlu0 %1532
  %v1535 = vadd.f32 %v1525, %v1533
  %v1536 = vtanh.pop %v1535
  %1538 = vrot.lane.b32.xlu0 %v1536, 32
  %v1539 = vpop.permute.xlu0 %1538
  %v1541 = vmul.f32 %v1523, %v1539
  %v1542 = vxor.u32 %v1517, 2147483648
  %v1543 = vmul.f32 %v1542, 1.442695
  %v1544 = vpow.pop %v1543
  %v1545 = vadd.f32 %v1544, 1.0
  %v1546 = vrcp.pop %v1545
  %v1547 = vmul.f32 1.0, %v1546
  %v1548 = vtanh.pop %v1517
  %v1549 = vmul.f32 %v1547, %v1453
  %1551 = vrot.lane.b32.xlu0 %v1548, 32
  %v1552 = vpop.permute.xlu0 %1551
  %v1554 = vmul.f32 %v1547, %v1552
  %1556 = vrot.lane.b32.xlu0 %v1554, 32
  %v1557 = vpop.permute.xlu0 %1556
  %v1559 = vadd.f32 %v1549, %v1557
  %v1560 = vtanh.pop %v1559
  %1562 = vrot.lane.b32.xlu0 %v1560, 32
  %v1563 = vpop.permute.xlu0 %1562
  %v1565 = vmul.f32 %v1547, %v1563
  %1567 = vrot.lane.b32.xlu0 %v1541, 64
  %v1568 = vpop.permute.xlu0 %1567
  %1571 = vrot.lane.b32.xlu0 %v1565, 96
  %v1572 = vpop.permute.xlu0 %1571
  %v1574 = vsel %vm472, %v1568, %v1572
  %v1575 = vpack.c.bf16 %v1574, %v1574
  %v1577 = vsel %vm515, %v1575, 0
  %1579 = vmatprep.subr.bf16.mxu0 %v500
  %1580 = vmatpush1.bf16.msra.mxu0 %v499
  %1581 = vmatprep.subr.bf16.mxu0 %v502
  %1582 = vmatpush1.bf16.msra.mxu0 %v501
  %1583 = vmatprep.subr.bf16.mxu0 %v504
  %1584 = vmatpush1.bf16.msra.mxu0 %v503
  %1585 = vmatprep.subr.bf16.mxu0 %v506
  %1586 = vmatpush1.bf16.msra.mxu0 %v505
  %1587 = vmatprep.subr.bf16.mxu0 0
  %1588 = vmatpush1.bf16.msra.mxu0 0
  %1589 = vmatprep.subr.bf16.mxu0 0
  %1590 = vmatpush1.bf16.msra.mxu0 0
  %1591 = vmatprep.subr.bf16.mxu0 0
  %1592 = vmatpush1.bf16.msra.mxu0 0
  %1593 = vmatprep.subr.bf16.mxu0 0
  %1594 = vmatpush1.bf16.msra.mxu0 0
  %1595 = vmatprep.subr.bf16.mxu0 0
  %1596 = vmatpush1.bf16.msra.mxu0 0
  %1597 = vmatprep.subr.bf16.mxu0 0
  %1598 = vmatpush1.bf16.msra.mxu0 0
  %1599 = vmatprep.subr.bf16.mxu0 0
  %1600 = vmatpush1.bf16.msra.mxu0 0
  %1601 = vmatprep.subr.bf16.mxu0 0
  %1602 = vmatpush1.bf16.msra.mxu0 0
  %1603 = vmatprep.subr.bf16.mxu0 0
  %1604 = vmatpush1.bf16.msra.mxu0 0
  %1605 = vmatprep.subr.bf16.mxu0 0
  %1606 = vmatpush1.bf16.msra.mxu0 0
  %1607 = vmatprep.subr.bf16.mxu0 0
  %1608 = vmatpush1.bf16.msra.mxu0 0
  %1609 = vmatprep.subr.bf16.mxu0 0
  %1610 = vmatpush1.bf16.msra.mxu0 0
  %1611 = vmatprep.mubr.bf16.mxu0 0
  %1612 = vmatmul.mubr.bf16.gmra.mrb[0].mxu0 %v1577
  %v1613 = vpop.f32.mrb[0].mxu0
  %v1614 = vadd.f32 0.0, %v1613
  %v1615 = vpop.f32.mrb[0].mxu0
  %v1616 = vadd.f32 0.0, %v1615
  %v1617 = vpop.f32.mrb[0].mxu0
  %v1618 = vpop.f32.mrb[0].mxu0
  %1619 = vdwg.mxu0
  %s1620 = scalar_lea.vmem [#allocation2], 88
  %v1621 = vld [vmem:[%s1620] sm:$0xff]
  %v1622 = vadd.f32 %v1614, %v1621
  %v1623 = vadd.f32 %v1616, %v441
  %v1624 = vxor.u32 %v1622, 2147483648
  %v1625 = vmul.f32 %v1624, 1.442695
  %v1626 = vpow.pop %v1625
  %v1627 = vadd.f32 %v1626, 1.0
  %v1628 = vrcp.pop %v1627
  %v1629 = vmul.f32 1.0, %v1628
  %v1630 = vtanh.pop %v1622
  %v1631 = vmul.f32 %v1629, %v1535
  %1633 = vrot.lane.b32.xlu0 %v1630, 32
  %v1634 = vpop.permute.xlu0 %1633
  %v1636 = vmul.f32 %v1629, %v1634
  %1638 = vrot.lane.b32.xlu0 %v1636, 32
  %v1639 = vpop.permute.xlu0 %1638
  %v1641 = vadd.f32 %v1631, %v1639
  %v1642 = vtanh.pop %v1641
  %1644 = vrot.lane.b32.xlu0 %v1642, 32
  %v1645 = vpop.permute.xlu0 %1644
  %v1647 = vmul.f32 %v1629, %v1645
  %v1648 = vxor.u32 %v1623, 2147483648
  %v1649 = vmul.f32 %v1648, 1.442695
  %v1650 = vpow.pop %v1649
  %v1651 = vadd.f32 %v1650, 1.0
  %v1652 = vrcp.pop %v1651
  %v1653 = vmul.f32 1.0, %v1652
  %v1654 = vtanh.pop %v1623
  %v1655 = vmul.f32 %v1653, %v1559
  %1657 = vrot.lane.b32.xlu0 %v1654, 32
  %v1658 = vpop.permute.xlu0 %1657
  %v1660 = vmul.f32 %v1653, %v1658
  %1662 = vrot.lane.b32.xlu0 %v1660, 32
  %v1663 = vpop.permute.xlu0 %1662
  %v1665 = vadd.f32 %v1655, %v1663
  %v1666 = vtanh.pop %v1665
  %1668 = vrot.lane.b32.xlu0 %v1666, 32
  %v1669 = vpop.permute.xlu0 %1668
  %v1671 = vmul.f32 %v1653, %v1669
  %1673 = vrot.lane.b32.xlu0 %v1647, 64
  %v1674 = vpop.permute.xlu0 %1673
  %1677 = vrot.lane.b32.xlu0 %v1671, 96
  %v1678 = vpop.permute.xlu0 %1677
  %v1680 = vsel %vm472, %v1674, %v1678
  %v1681 = vpack.c.bf16 %v1680, %v1680
  %v1683 = vsel %vm515, %v1681, 0
  %1685 = vmatprep.subr.bf16.mxu0 %v500
  %1686 = vmatpush1.bf16.msra.mxu0 %v499
  %1687 = vmatprep.subr.bf16.mxu0 %v502
  %1688 = vmatpush1.bf16.msra.mxu0 %v501
  %1689 = vmatprep.subr.bf16.mxu0 %v504
  %1690 = vmatpush1.bf16.msra.mxu0 %v503
  %1691 = vmatprep.subr.bf16.mxu0 %v506
  %1692 = vmatpush1.bf16.msra.mxu0 %v505
  %1693 = vmatprep.subr.bf16.mxu0 0
  %1694 = vmatpush1.bf16.msra.mxu0 0
  %1695 = vmatprep.subr.bf16.mxu0 0
  %1696 = vmatpush1.bf16.msra.mxu0 0
  %1697 = vmatprep.subr.bf16.mxu0 0
  %1698 = vmatpush1.bf16.msra.mxu0 0
  %1699 = vmatprep.subr.bf16.mxu0 0
  %1700 = vmatpush1.bf16.msra.mxu0 0
  %1701 = vmatprep.subr.bf16.mxu0 0
  %1702 = vmatpush1.bf16.msra.mxu0 0
  %1703 = vmatprep.subr.bf16.mxu0 0
  %1704 = vmatpush1.bf16.msra.mxu0 0
  %1705 = vmatprep.subr.bf16.mxu0 0
  %1706 = vmatpush1.bf16.msra.mxu0 0
  %1707 = vmatprep.subr.bf16.mxu0 0
  %1708 = vmatpush1.bf16.msra.mxu0 0
  %1709 = vmatprep.subr.bf16.mxu0 0
  %1710 = vmatpush1.bf16.msra.mxu0 0
  %1711 = vmatprep.subr.bf16.mxu0 0
  %1712 = vmatpush1.bf16.msra.mxu0 0
  %1713 = vmatprep.subr.bf16.mxu0 0
  %1714 = vmatpush1.bf16.msra.mxu0 0
  %1715 = vmatprep.subr.bf16.mxu0 0
  %1716 = vmatpush1.bf16.msra.mxu0 0
  %1717 = vmatprep.mubr.bf16.mxu0 0
  %1718 = vmatmul.mubr.bf16.gmra.mrb[0].mxu0 %v1683
  %v1719 = vpop.f32.mrb[0].mxu0
  %v1720 = vadd.f32 0.0, %v1719
  %v1721 = vpop.f32.mrb[0].mxu0
  %v1722 = vadd.f32 0.0, %v1721
  %v1723 = vpop.f32.mrb[0].mxu0
  %v1724 = vpop.f32.mrb[0].mxu0
  %1725 = vdwg.mxu0
  %s1726 = scalar_lea.vmem [#allocation2], 96
  %v1727 = vld [vmem:[%s1726] sm:$0xff]
  %v1728 = vadd.f32 %v1720, %v1727
  %v1729 = vadd.f32 %v1722, %v441
  %v1730 = vxor.u32 %v1728, 2147483648
  %v1731 = vmul.f32 %v1730, 1.442695
  %v1732 = vpow.pop %v1731
  %v1733 = vadd.f32 %v1732, 1.0
  %v1734 = vrcp.pop %v1733
  %v1735 = vmul.f32 1.0, %v1734
  %v1736 = vtanh.pop %v1728
  %v1737 = vmul.f32 %v1735, %v1641
  %1739 = vrot.lane.b32.xlu0 %v1736, 32
  %v1740 = vpop.permute.xlu0 %1739
  %v1742 = vmul.f32 %v1735, %v1740
  %1744 = vrot.lane.b32.xlu0 %v1742, 32
  %v1745 = vpop.permute.xlu0 %1744
  %v1747 = vadd.f32 %v1737, %v1745
  %v1748 = vtanh.pop %v1747
  %1750 = vrot.lane.b32.xlu0 %v1748, 32
  %v1751 = vpop.permute.xlu0 %1750
  %v1753 = vmul.f32 %v1735, %v1751
  %v1754 = vxor.u32 %v1729, 2147483648
  %v1755 = vmul.f32 %v1754, 1.442695
  %v1756 = vpow.pop %v1755
  %v1757 = vadd.f32 %v1756, 1.0
  %v1758 = vrcp.pop %v1757
  %v1759 = vmul.f32 1.0, %v1758
  %v1760 = vtanh.pop %v1729
  %v1761 = vmul.f32 %v1759, %v1665
  %1763 = vrot.lane.b32.xlu0 %v1760, 32
  %v1764 = vpop.permute.xlu0 %1763
  %v1766 = vmul.f32 %v1759, %v1764
  %1768 = vrot.lane.b32.xlu0 %v1766, 32
  %v1769 = vpop.permute.xlu0 %1768
  %v1771 = vadd.f32 %v1761, %v1769
  %v1772 = vtanh.pop %v1771
  %1774 = vrot.lane.b32.xlu0 %v1772, 32
  %v1775 = vpop.permute.xlu0 %1774
  %v1777 = vmul.f32 %v1759, %v1775
  %1779 = vrot.lane.b32.xlu0 %v1753, 64
  %v1780 = vpop.permute.xlu0 %1779
  %1783 = vrot.lane.b32.xlu0 %v1777, 96
  %v1784 = vpop.permute.xlu0 %1783
  %v1786 = vsel %vm472, %v1780, %v1784
  %v1787 = vpack.c.bf16 %v1786, %v1786
  %v1789 = vsel %vm515, %v1787, 0
  %1791 = vmatprep.subr.bf16.mxu0 %v500
  %1792 = vmatpush1.bf16.msra.mxu0 %v499
  %1793 = vmatprep.subr.bf16.mxu0 %v502
  %1794 = vmatpush1.bf16.msra.mxu0 %v501
  %1795 = vmatprep.subr.bf16.mxu0 %v504
  %1796 = vmatpush1.bf16.msra.mxu0 %v503
  %1797 = vmatprep.subr.bf16.mxu0 %v506
  %1798 = vmatpush1.bf16.msra.mxu0 %v505
  %1799 = vmatprep.subr.bf16.mxu0 0
  %1800 = vmatpush1.bf16.msra.mxu0 0
  %1801 = vmatprep.subr.bf16.mxu0 0
  %1802 = vmatpush1.bf16.msra.mxu0 0
  %1803 = vmatprep.subr.bf16.mxu0 0
  %1804 = vmatpush1.bf16.msra.mxu0 0
  %1805 = vmatprep.subr.bf16.mxu0 0
  %1806 = vmatpush1.bf16.msra.mxu0 0
  %1807 = vmatprep.subr.bf16.mxu0 0
  %1808 = vmatpush1.bf16.msra.mxu0 0
  %1809 = vmatprep.subr.bf16.mxu0 0
  %1810 = vmatpush1.bf16.msra.mxu0 0
  %1811 = vmatprep.subr.bf16.mxu0 0
  %1812 = vmatpush1.bf16.msra.mxu0 0
  %1813 = vmatprep.subr.bf16.mxu0 0
  %1814 = vmatpush1.bf16.msra.mxu0 0
  %1815 = vmatprep.subr.bf16.mxu0 0
  %1816 = vmatpush1.bf16.msra.mxu0 0
  %1817 = vmatprep.subr.bf16.mxu0 0
  %1818 = vmatpush1.bf16.msra.mxu0 0
  %1819 = vmatprep.subr.bf16.mxu0 0
  %1820 = vmatpush1.bf16.msra.mxu0 0
  %1821 = vmatprep.subr.bf16.mxu0 0
  %1822 = vmatpush1.bf16.msra.mxu0 0
  %1823 = vmatprep.mubr.bf16.mxu0 0
  %1824 = vmatmul.mubr.bf16.gmra.mrb[0].mxu0 %v1789
  %v1825 = vpop.f32.mrb[0].mxu0
  %v1826 = vadd.f32 0.0, %v1825
  %v1827 = vpop.f32.mrb[0].mxu0
  %v1828 = vadd.f32 0.0, %v1827
  %v1829 = vpop.f32.mrb[0].mxu0
  %v1830 = vpop.f32.mrb[0].mxu0
  %1831 = vdwg.mxu0
  %s1832 = scalar_lea.vmem [#allocation2], 104
  %v1833 = vld [vmem:[%s1832] sm:$0xff]
  %v1834 = vadd.f32 %v1826, %v1833
  %v1835 = vadd.f32 %v1828, %v441
  %v1836 = vxor.u32 %v1834, 2147483648
  %v1837 = vmul.f32 %v1836, 1.442695
  %v1838 = vpow.pop %v1837
  %v1839 = vadd.f32 %v1838, 1.0
  %v1840 = vrcp.pop %v1839
  %v1841 = vmul.f32 1.0, %v1840
  %v1842 = vtanh.pop %v1834
  %v1843 = vmul.f32 %v1841, %v1747
  %1845 = vrot.lane.b32.xlu0 %v1842, 32
  %v1846 = vpop.permute.xlu0 %1845
  %v1848 = vmul.f32 %v1841, %v1846
  %1850 = vrot.lane.b32.xlu0 %v1848, 32
  %v1851 = vpop.permute.xlu0 %1850
  %v1853 = vadd.f32 %v1843, %v1851
  %v1854 = vtanh.pop %v1853
  %1856 = vrot.lane.b32.xlu0 %v1854, 32
  %v1857 = vpop.permute.xlu0 %1856
  %v1859 = vmul.f32 %v1841, %v1857
  %v1860 = vxor.u32 %v1835, 2147483648
  %v1861 = vmul.f32 %v1860, 1.442695
  %v1862 = vpow.pop %v1861
  %v1863 = vadd.f32 %v1862, 1.0
  %v1864 = vrcp.pop %v1863
  %v1865 = vmul.f32 1.0, %v1864
  %v1866 = vtanh.pop %v1835
  %v1867 = vmul.f32 %v1865, %v1771
  %1869 = vrot.lane.b32.xlu0 %v1866, 32
  %v1870 = vpop.permute.xlu0 %1869
  %v1872 = vmul.f32 %v1865, %v1870
  %1874 = vrot.lane.b32.xlu0 %v1872, 32
  %v1875 = vpop.permute.xlu0 %1874
  %v1877 = vadd.f32 %v1867, %v1875
  %v1878 = vtanh.pop %v1877
  %1880 = vrot.lane.b32.xlu0 %v1878, 32
  %v1881 = vpop.permute.xlu0 %1880
  %v1883 = vmul.f32 %v1865, %v1881
  %1885 = vrot.lane.b32.xlu0 %v1859, 64
  %v1886 = vpop.permute.xlu0 %1885
  %1889 = vrot.lane.b32.xlu0 %v1883, 96
  %v1890 = vpop.permute.xlu0 %1889
  %v1892 = vsel %vm472, %v1886, %v1890
  %v1893 = vpack.c.bf16 %v1892, %v1892
  %v1895 = vsel %vm515, %v1893, 0
  %1897 = vmatprep.subr.bf16.mxu0 %v500
  %1898 = vmatpush1.bf16.msra.mxu0 %v499
  %1899 = vmatprep.subr.bf16.mxu0 %v502
  %1900 = vmatpush1.bf16.msra.mxu0 %v501
  %1901 = vmatprep.subr.bf16.mxu0 %v504
  %1902 = vmatpush1.bf16.msra.mxu0 %v503
  %1903 = vmatprep.subr.bf16.mxu0 %v506
  %1904 = vmatpush1.bf16.msra.mxu0 %v505
  %1905 = vmatprep.subr.bf16.mxu0 0
  %1906 = vmatpush1.bf16.msra.mxu0 0
  %1907 = vmatprep.subr.bf16.mxu0 0
  %1908 = vmatpush1.bf16.msra.mxu0 0
  %1909 = vmatprep.subr.bf16.mxu0 0
  %1910 = vmatpush1.bf16.msra.mxu0 0
  %1911 = vmatprep.subr.bf16.mxu0 0
  %1912 = vmatpush1.bf16.msra.mxu0 0
  %1913 = vmatprep.subr.bf16.mxu0 0
  %1914 = vmatpush1.bf16.msra.mxu0 0
  %1915 = vmatprep.subr.bf16.mxu0 0
  %1916 = vmatpush1.bf16.msra.mxu0 0
  %1917 = vmatprep.subr.bf16.mxu0 0
  %1918 = vmatpush1.bf16.msra.mxu0 0
  %1919 = vmatprep.subr.bf16.mxu0 0
  %1920 = vmatpush1.bf16.msra.mxu0 0
  %1921 = vmatprep.subr.bf16.mxu0 0
  %1922 = vmatpush1.bf16.msra.mxu0 0
  %1923 = vmatprep.subr.bf16.mxu0 0
  %1924 = vmatpush1.bf16.msra.mxu0 0
  %1925 = vmatprep.subr.bf16.mxu0 0
  %1926 = vmatpush1.bf16.msra.mxu0 0
  %1927 = vmatprep.subr.bf16.mxu0 0
  %1928 = vmatpush1.bf16.msra.mxu0 0
  %1929 = vmatprep.mubr.bf16.mxu0 0
  %1930 = vmatmul.mubr.bf16.gmra.mrb[0].mxu0 %v1895
  %v1931 = vpop.f32.mrb[0].mxu0
  %v1932 = vadd.f32 0.0, %v1931
  %v1933 = vpop.f32.mrb[0].mxu0
  %v1934 = vadd.f32 0.0, %v1933
  %v1935 = vpop.f32.mrb[0].mxu0
  %v1936 = vpop.f32.mrb[0].mxu0
  %1937 = vdwg.mxu0
  %s1938 = scalar_lea.vmem [#allocation2], 112
  %v1939 = vld [vmem:[%s1938] sm:$0xff]
  %v1940 = vadd.f32 %v1932, %v1939
  %v1941 = vadd.f32 %v1934, %v441
  %v1942 = vxor.u32 %v1940, 2147483648
  %v1943 = vmul.f32 %v1942, 1.442695
  %v1944 = vpow.pop %v1943
  %v1945 = vadd.f32 %v1944, 1.0
  %v1946 = vrcp.pop %v1945
  %v1947 = vmul.f32 1.0, %v1946
  %v1948 = vtanh.pop %v1940
  %v1949 = vmul.f32 %v1947, %v1853
  %1951 = vrot.lane.b32.xlu0 %v1948, 32
  %v1952 = vpop.permute.xlu0 %1951
  %v1954 = vmul.f32 %v1947, %v1952
  %1956 = vrot.lane.b32.xlu0 %v1954, 32
  %v1957 = vpop.permute.xlu0 %1956
  %v1959 = vadd.f32 %v1949, %v1957
  %v1960 = vtanh.pop %v1959
  %1962 = vrot.lane.b32.xlu0 %v1960, 32
  %v1963 = vpop.permute.xlu0 %1962
  %v1965 = vmul.f32 %v1947, %v1963
  %v1966 = vxor.u32 %v1941, 2147483648
  %v1967 = vmul.f32 %v1966, 1.442695
  %v1968 = vpow.pop %v1967
  %v1969 = vadd.f32 %v1968, 1.0
  %v1970 = vrcp.pop %v1969
  %v1971 = vmul.f32 1.0, %v1970
  %v1972 = vtanh.pop %v1941
  %v1973 = vmul.f32 %v1971, %v1877
  %1975 = vrot.lane.b32.xlu0 %v1972, 32
  %v1976 = vpop.permute.xlu0 %1975
  %v1978 = vmul.f32 %v1971, %v1976
  %1980 = vrot.lane.b32.xlu0 %v1978, 32
  %v1981 = vpop.permute.xlu0 %1980
  %v1983 = vadd.f32 %v1973, %v1981
  %v1984 = vtanh.pop %v1983
  %1986 = vrot.lane.b32.xlu0 %v1984, 32
  %v1987 = vpop.permute.xlu0 %1986
  %v1989 = vmul.f32 %v1971, %v1987
  %1991 = vrot.lane.b32.xlu0 %v1965, 64
  %v1992 = vpop.permute.xlu0 %1991
  %1995 = vrot.lane.b32.xlu0 %v1989, 96
  %v1996 = vpop.permute.xlu0 %1995
  %v1998 = vsel %vm472, %v1992, %v1996
  %v1999 = vpack.c.bf16 %v1998, %v1998
  %v2001 = vsel %vm515, %v1999, 0
  %2003 = vmatprep.subr.bf16.mxu0 %v500
  %2004 = vmatpush1.bf16.msra.mxu0 %v499
  %2005 = vmatprep.subr.bf16.mxu0 %v502
  %2006 = vmatpush1.bf16.msra.mxu0 %v501
  %2007 = vmatprep.subr.bf16.mxu0 %v504
  %2008 = vmatpush1.bf16.msra.mxu0 %v503
  %2009 = vmatprep.subr.bf16.mxu0 %v506
  %2010 = vmatpush1.bf16.msra.mxu0 %v505
  %2011 = vmatprep.subr.bf16.mxu0 0
  %2012 = vmatpush1.bf16.msra.mxu0 0
  %2013 = vmatprep.subr.bf16.mxu0 0
  %2014 = vmatpush1.bf16.msra.mxu0 0
  %2015 = vmatprep.subr.bf16.mxu0 0
  %2016 = vmatpush1.bf16.msra.mxu0 0
  %2017 = vmatprep.subr.bf16.mxu0 0
  %2018 = vmatpush1.bf16.msra.mxu0 0
  %2019 = vmatprep.subr.bf16.mxu0 0
  %2020 = vmatpush1.bf16.msra.mxu0 0
  %2021 = vmatprep.subr.bf16.mxu0 0
  %2022 = vmatpush1.bf16.msra.mxu0 0
  %2023 = vmatprep.subr.bf16.mxu0 0
  %2024 = vmatpush1.bf16.msra.mxu0 0
  %2025 = vmatprep.subr.bf16.mxu0 0
  %2026 = vmatpush1.bf16.msra.mxu0 0
  %2027 = vmatprep.subr.bf16.mxu0 0
  %2028 = vmatpush1.bf16.msra.mxu0 0
  %2029 = vmatprep.subr.bf16.mxu0 0
  %2030 = vmatpush1.bf16.msra.mxu0 0
  %2031 = vmatprep.subr.bf16.mxu0 0
  %2032 = vmatpush1.bf16.msra.mxu0 0
  %2033 = vmatprep.subr.bf16.mxu0 0
  %2034 = vmatpush1.bf16.msra.mxu0 0
  %2035 = vmatprep.mubr.bf16.mxu0 0
  %2036 = vmatmul.mubr.bf16.gmra.mrb[0].mxu0 %v2001
  %v2037 = vpop.f32.mrb[0].mxu0
  %v2038 = vadd.f32 0.0, %v2037
  %v2039 = vpop.f32.mrb[0].mxu0
  %v2040 = vadd.f32 0.0, %v2039
  %v2041 = vpop.f32.mrb[0].mxu0
  %v2042 = vpop.f32.mrb[0].mxu0
  %2043 = vdwg.mxu0
  %s2044 = scalar_lea.vmem [#allocation2], 120
  %v2045 = vld [vmem:[%s2044] sm:$0xff]
  %v2046 = vadd.f32 %v2038, %v2045
  %v2047 = vadd.f32 %v2040, %v441
  %v2048 = vxor.u32 %v2046, 2147483648
  %v2049 = vmul.f32 %v2048, 1.442695
  %v2050 = vpow.pop %v2049
  %v2051 = vadd.f32 %v2050, 1.0
  %v2052 = vrcp.pop %v2051
  %v2053 = vmul.f32 1.0, %v2052
  %v2054 = vtanh.pop %v2046
  %v2055 = vmul.f32 %v2053, %v1959
  %2057 = vrot.lane.b32.xlu0 %v2054, 32
  %v2058 = vpop.permute.xlu0 %2057
  %v2060 = vmul.f32 %v2053, %v2058
  %2062 = vrot.lane.b32.xlu0 %v2060, 32
  %v2063 = vpop.permute.xlu0 %2062
  %v2065 = vadd.f32 %v2055, %v2063
  %v2066 = vtanh.pop %v2065
  %2068 = vrot.lane.b32.xlu0 %v2066, 32
  %v2069 = vpop.permute.xlu0 %2068
  %v2071 = vmul.f32 %v2053, %v2069
  %v2072 = vxor.u32 %v2047, 2147483648
  %v2073 = vmul.f32 %v2072, 1.442695
  %v2074 = vpow.pop %v2073
  %v2075 = vadd.f32 %v2074, 1.0
  %v2076 = vrcp.pop %v2075
  %v2077 = vmul.f32 1.0, %v2076
  %v2078 = vtanh.pop %v2047
  %v2079 = vmul.f32 %v2077, %v1983
  %2081 = vrot.lane.b32.xlu0 %v2078, 32
  %v2082 = vpop.permute.xlu0 %2081
  %v2084 = vmul.f32 %v2077, %v2082
  %2086 = vrot.lane.b32.xlu0 %v2084, 32
  %v2087 = vpop.permute.xlu0 %2086
  %v2089 = vadd.f32 %v2079, %v2087
  %v2090 = vtanh.pop %v2089
  %2092 = vrot.lane.b32.xlu0 %v2090, 32
  %v2093 = vpop.permute.xlu0 %2092
  %v2095 = vmul.f32 %v2077, %v2093
  %2097 = vrot.lane.b32.xlu0 %v2071, 64
  %v2098 = vpop.permute.xlu0 %2097
  %2101 = vrot.lane.b32.xlu0 %v2095, 96
  %v2102 = vpop.permute.xlu0 %2101
  %v2104 = vsel %vm472, %v2098, %v2102
  %v2105 = vpack.c.bf16 %v2104, %v2104
  %v2107 = vsel %vm515, %v2105, 0
  %2109 = vmatprep.subr.bf16.mxu0 %v500
  %2110 = vmatpush1.bf16.msra.mxu0 %v499
  %2111 = vmatprep.subr.bf16.mxu0 %v502
  %2112 = vmatpush1.bf16.msra.mxu0 %v501
  %2113 = vmatprep.subr.bf16.mxu0 %v504
  %2114 = vmatpush1.bf16.msra.mxu0 %v503
  %2115 = vmatprep.subr.bf16.mxu0 %v506
  %2116 = vmatpush1.bf16.msra.mxu0 %v505
  %2117 = vmatprep.subr.bf16.mxu0 0
  %2118 = vmatpush1.bf16.msra.mxu0 0
  %2119 = vmatprep.subr.bf16.mxu0 0
  %2120 = vmatpush1.bf16.msra.mxu0 0
  %2121 = vmatprep.subr.bf16.mxu0 0
  %2122 = vmatpush1.bf16.msra.mxu0 0
  %2123 = vmatprep.subr.bf16.mxu0 0
  %2124 = vmatpush1.bf16.msra.mxu0 0
  %2125 = vmatprep.subr.bf16.mxu0 0
  %2126 = vmatpush1.bf16.msra.mxu0 0
  %2127 = vmatprep.subr.bf16.mxu0 0
  %2128 = vmatpush1.bf16.msra.mxu0 0
  %2129 = vmatprep.subr.bf16.mxu0 0
  %2130 = vmatpush1.bf16.msra.mxu0 0
  %2131 = vmatprep.subr.bf16.mxu0 0
  %2132 = vmatpush1.bf16.msra.mxu0 0
  %2133 = vmatprep.subr.bf16.mxu0 0
  %2134 = vmatpush1.bf16.msra.mxu0 0
  %2135 = vmatprep.subr.bf16.mxu0 0
  %2136 = vmatpush1.bf16.msra.mxu0 0
  %2137 = vmatprep.subr.bf16.mxu0 0
  %2138 = vmatpush1.bf16.msra.mxu0 0
  %2139 = vmatprep.subr.bf16.mxu0 0
  %2140 = vmatpush1.bf16.msra.mxu0 0
  %2141 = vmatprep.mubr.bf16.mxu0 0
  %2142 = vmatmul.mubr.bf16.gmra.mrb[0].mxu0 %v2107
  %v2143 = vpop.f32.mrb[0].mxu0
  %v2144 = vadd.f32 0.0, %v2143
  %v2145 = vpop.f32.mrb[0].mxu0
  %v2146 = vadd.f32 0.0, %v2145
  %v2147 = vpop.f32.mrb[0].mxu0
  %v2148 = vpop.f32.mrb[0].mxu0
  %2149 = vdwg.mxu0
  %s2150 = scalar_lea.vmem [#allocation2], 128
  %v2151 = vld [vmem:[%s2150] sm:$0xff]
  %v2152 = vadd.f32 %v2144, %v2151
  %v2153 = vadd.f32 %v2146, %v441
  %v2154 = vxor.u32 %v2152, 2147483648
  %v2155 = vmul.f32 %v2154, 1.442695
  %v2156 = vpow.pop %v2155
  %v2157 = vadd.f32 %v2156, 1.0
  %v2158 = vrcp.pop %v2157
  %v2159 = vmul.f32 1.0, %v2158
  %v2160 = vtanh.pop %v2152
  %v2161 = vmul.f32 %v2159, %v2065
  %2163 = vrot.lane.b32.xlu0 %v2160, 32
  %v2164 = vpop.permute.xlu0 %2163
  %v2166 = vmul.f32 %v2159, %v2164
  %2168 = vrot.lane.b32.xlu0 %v2166, 32
  %v2169 = vpop.permute.xlu0 %2168
  %v2171 = vadd.f32 %v2161, %v2169
  %v2172 = vtanh.pop %v2171
  %2174 = vrot.lane.b32.xlu0 %v2172, 32
  %v2175 = vpop.permute.xlu0 %2174
  %v2177 = vmul.f32 %v2159, %v2175
  %v2178 = vxor.u32 %v2153, 2147483648
  %v2179 = vmul.f32 %v2178, 1.442695
  %v2180 = vpow.pop %v2179
  %v2181 = vadd.f32 %v2180, 1.0
  %v2182 = vrcp.pop %v2181
  %v2183 = vmul.f32 1.0, %v2182
  %v2184 = vtanh.pop %v2153
  %v2185 = vmul.f32 %v2183, %v2089
  %2187 = vrot.lane.b32.xlu0 %v2184, 32
  %v2188 = vpop.permute.xlu0 %2187
  %v2190 = vmul.f32 %v2183, %v2188
  %2192 = vrot.lane.b32.xlu0 %v2190, 32
  %v2193 = vpop.permute.xlu0 %2192
  %v2195 = vadd.f32 %v2185, %v2193
  %v2196 = vtanh.pop %v2195
  %2198 = vrot.lane.b32.xlu0 %v2196, 32
  %v2199 = vpop.permute.xlu0 %2198
  %v2201 = vmul.f32 %v2183, %v2199
  %2203 = vrot.lane.b32.xlu0 %v2177, 64
  %v2204 = vpop.permute.xlu0 %2203
  %2207 = vrot.lane.b32.xlu0 %v2201, 96
  %v2208 = vpop.permute.xlu0 %2207
  %v2210 = vsel %vm472, %v2204, %v2208
  %v2211 = vpack.c.bf16 %v2210, %v2210
  %v2213 = vsel %vm515, %v2211, 0
  %2215 = vmatprep.subr.bf16.mxu0 %v500
  %2216 = vmatpush1.bf16.msra.mxu0 %v499
  %2217 = vmatprep.subr.bf16.mxu0 %v502
  %2218 = vmatpush1.bf16.msra.mxu0 %v501
  %2219 = vmatprep.subr.bf16.mxu0 %v504
  %2220 = vmatpush1.bf16.msra.mxu0 %v503
  %2221 = vmatprep.subr.bf16.mxu0 %v506
  %2222 = vmatpush1.bf16.msra.mxu0 %v505
  %2223 = vmatprep.subr.bf16.mxu0 0
  %2224 = vmatpush1.bf16.msra.mxu0 0
  %2225 = vmatprep.subr.bf16.mxu0 0
  %2226 = vmatpush1.bf16.msra.mxu0 0
  %2227 = vmatprep.subr.bf16.mxu0 0
  %2228 = vmatpush1.bf16.msra.mxu0 0
  %2229 = vmatprep.subr.bf16.mxu0 0
  %2230 = vmatpush1.bf16.msra.mxu0 0
  %2231 = vmatprep.subr.bf16.mxu0 0
  %2232 = vmatpush1.bf16.msra.mxu0 0
  %2233 = vmatprep.subr.bf16.mxu0 0
  %2234 = vmatpush1.bf16.msra.mxu0 0
  %2235 = vmatprep.subr.bf16.mxu0 0
  %2236 = vmatpush1.bf16.msra.mxu0 0
  %2237 = vmatprep.subr.bf16.mxu0 0
  %2238 = vmatpush1.bf16.msra.mxu0 0
  %2239 = vmatprep.subr.bf16.mxu0 0
  %2240 = vmatpush1.bf16.msra.mxu0 0
  %2241 = vmatprep.subr.bf16.mxu0 0
  %2242 = vmatpush1.bf16.msra.mxu0 0
  %2243 = vmatprep.subr.bf16.mxu0 0
  %2244 = vmatpush1.bf16.msra.mxu0 0
  %2245 = vmatprep.subr.bf16.mxu0 0
  %2246 = vmatpush1.bf16.msra.mxu0 0
  %2247 = vmatprep.mubr.bf16.mxu0 0
  %2248 = vmatmul.mubr.bf16.gmra.mrb[0].mxu0 %v2213
  %v2249 = vpop.f32.mrb[0].mxu0
  %v2250 = vadd.f32 0.0, %v2249
  %v2251 = vpop.f32.mrb[0].mxu0
  %v2252 = vadd.f32 0.0, %v2251
  %v2253 = vpop.f32.mrb[0].mxu0
  %v2254 = vpop.f32.mrb[0].mxu0
  %2255 = vdwg.mxu0
  %s2256 = scalar_lea.vmem [#allocation2], 136
  %v2257 = vld [vmem:[%s2256] sm:$0xff]
  %v2258 = vadd.f32 %v2250, %v2257
  %v2259 = vadd.f32 %v2252, %v441
  %v2260 = vxor.u32 %v2258, 2147483648
  %v2261 = vmul.f32 %v2260, 1.442695
  %v2262 = vpow.pop %v2261
  %v2263 = vadd.f32 %v2262, 1.0
  %v2264 = vrcp.pop %v2263
  %v2265 = vmul.f32 1.0, %v2264
  %v2266 = vtanh.pop %v2258
  %v2267 = vmul.f32 %v2265, %v2171
  %2269 = vrot.lane.b32.xlu0 %v2266, 32
  %v2270 = vpop.permute.xlu0 %2269
  %v2272 = vmul.f32 %v2265, %v2270
  %2274 = vrot.lane.b32.xlu0 %v2272, 32
  %v2275 = vpop.permute.xlu0 %2274
  %v2277 = vadd.f32 %v2267, %v2275
  %v2278 = vtanh.pop %v2277
  %2280 = vrot.lane.b32.xlu0 %v2278, 32
  %v2281 = vpop.permute.xlu0 %2280
  %v2283 = vmul.f32 %v2265, %v2281
  %v2284 = vxor.u32 %v2259, 2147483648
  %v2285 = vmul.f32 %v2284, 1.442695
  %v2286 = vpow.pop %v2285
  %v2287 = vadd.f32 %v2286, 1.0
  %v2288 = vrcp.pop %v2287
  %v2289 = vmul.f32 1.0, %v2288
  %v2290 = vtanh.pop %v2259
  %v2291 = vmul.f32 %v2289, %v2195
  %2293 = vrot.lane.b32.xlu0 %v2290, 32
  %v2294 = vpop.permute.xlu0 %2293
  %v2296 = vmul.f32 %v2289, %v2294
  %2298 = vrot.lane.b32.xlu0 %v2296, 32
  %v2299 = vpop.permute.xlu0 %2298
  %v2301 = vadd.f32 %v2291, %v2299
  %v2302 = vtanh.pop %v2301
  %2304 = vrot.lane.b32.xlu0 %v2302, 32
  %v2305 = vpop.permute.xlu0 %2304
  %v2307 = vmul.f32 %v2289, %v2305
  %2309 = vrot.lane.b32.xlu0 %v2283, 64
  %v2310 = vpop.permute.xlu0 %2309
  %2313 = vrot.lane.b32.xlu0 %v2307, 96
  %v2314 = vpop.permute.xlu0 %2313
  %v2316 = vsel %vm472, %v2310, %v2314
  %v2317 = vpack.c.bf16 %v2316, %v2316
  %v2319 = vsel %vm515, %v2317, 0
  %2321 = vmatprep.subr.bf16.mxu0 %v500
  %2322 = vmatpush1.bf16.msra.mxu0 %v499
  %2323 = vmatprep.subr.bf16.mxu0 %v502
  %2324 = vmatpush1.bf16.msra.mxu0 %v501
  %2325 = vmatprep.subr.bf16.mxu0 %v504
  %2326 = vmatpush1.bf16.msra.mxu0 %v503
  %2327 = vmatprep.subr.bf16.mxu0 %v506
  %2328 = vmatpush1.bf16.msra.mxu0 %v505
  %2329 = vmatprep.subr.bf16.mxu0 0
  %2330 = vmatpush1.bf16.msra.mxu0 0
  %2331 = vmatprep.subr.bf16.mxu0 0
  %2332 = vmatpush1.bf16.msra.mxu0 0
  %2333 = vmatprep.subr.bf16.mxu0 0
  %2334 = vmatpush1.bf16.msra.mxu0 0
  %2335 = vmatprep.subr.bf16.mxu0 0
  %2336 = vmatpush1.bf16.msra.mxu0 0
  %2337 = vmatprep.subr.bf16.mxu0 0
  %2338 = vmatpush1.bf16.msra.mxu0 0
  %2339 = vmatprep.subr.bf16.mxu0 0
  %2340 = vmatpush1.bf16.msra.mxu0 0
  %2341 = vmatprep.subr.bf16.mxu0 0
  %2342 = vmatpush1.bf16.msra.mxu0 0
  %2343 = vmatprep.subr.bf16.mxu0 0
  %2344 = vmatpush1.bf16.msra.mxu0 0
  %2345 = vmatprep.subr.bf16.mxu0 0
  %2346 = vmatpush1.bf16.msra.mxu0 0
  %2347 = vmatprep.subr.bf16.mxu0 0
  %2348 = vmatpush1.bf16.msra.mxu0 0
  %2349 = vmatprep.subr.bf16.mxu0 0
  %2350 = vmatpush1.bf16.msra.mxu0 0
  %2351 = vmatprep.subr.bf16.mxu0 0
  %2352 = vmatpush1.bf16.msra.mxu0 0
  %2353 = vmatprep.mubr.bf16.mxu0 0
  %2354 = vmatmul.mubr.bf16.gmra.mrb[0].mxu0 %v2319
  %v2355 = vpop.f32.mrb[0].mxu0
  %v2356 = vadd.f32 0.0, %v2355
  %v2357 = vpop.f32.mrb[0].mxu0
  %v2358 = vadd.f32 0.0, %v2357
  %v2359 = vpop.f32.mrb[0].mxu0
  %v2360 = vpop.f32.mrb[0].mxu0
  %2361 = vdwg.mxu0
  %s2362 = scalar_lea.vmem [#allocation2], 144
  %v2363 = vld [vmem:[%s2362] sm:$0xff]
  %v2364 = vadd.f32 %v2356, %v2363
  %v2365 = vadd.f32 %v2358, %v441
  %v2366 = vxor.u32 %v2364, 2147483648
  %v2367 = vmul.f32 %v2366, 1.442695
  %v2368 = vpow.pop %v2367
  %v2369 = vadd.f32 %v2368, 1.0
  %v2370 = vrcp.pop %v2369
  %v2371 = vmul.f32 1.0, %v2370
  %v2372 = vtanh.pop %v2364
  %v2373 = vmul.f32 %v2371, %v2277
  %2375 = vrot.lane.b32.xlu0 %v2372, 32
  %v2376 = vpop.permute.xlu0 %2375
  %v2378 = vmul.f32 %v2371, %v2376
  %2380 = vrot.lane.b32.xlu0 %v2378, 32
  %v2381 = vpop.permute.xlu0 %2380
  %v2383 = vadd.f32 %v2373, %v2381
  %v2384 = vtanh.pop %v2383
  %2386 = vrot.lane.b32.xlu0 %v2384, 32
  %v2387 = vpop.permute.xlu0 %2386
  %v2389 = vmul.f32 %v2371, %v2387
  %v2390 = vxor.u32 %v2365, 2147483648
  %v2391 = vmul.f32 %v2390, 1.442695
  %v2392 = vpow.pop %v2391
  %v2393 = vadd.f32 %v2392, 1.0
  %v2394 = vrcp.pop %v2393
  %v2395 = vmul.f32 1.0, %v2394
  %v2396 = vtanh.pop %v2365
  %v2397 = vmul.f32 %v2395, %v2301
  %2399 = vrot.lane.b32.xlu0 %v2396, 32
  %v2400 = vpop.permute.xlu0 %2399
  %v2402 = vmul.f32 %v2395, %v2400
  %2404 = vrot.lane.b32.xlu0 %v2402, 32
  %v2405 = vpop.permute.xlu0 %2404
  %v2407 = vadd.f32 %v2397, %v2405
  %v2408 = vtanh.pop %v2407
  %2410 = vrot.lane.b32.xlu0 %v2408, 32
  %v2411 = vpop.permute.xlu0 %2410
  %v2413 = vmul.f32 %v2395, %v2411
  %2415 = vrot.lane.b32.xlu0 %v2389, 64
  %v2416 = vpop.permute.xlu0 %2415
  %2419 = vrot.lane.b32.xlu0 %v2413, 96
  %v2420 = vpop.permute.xlu0 %2419
  %v2422 = vsel %vm472, %v2416, %v2420
  %v2423 = vpack.c.bf16 %v2422, %v2422
  %v2425 = vsel %vm515, %v2423, 0
  %2427 = vmatprep.subr.bf16.mxu0 %v500
  %2428 = vmatpush1.bf16.msra.mxu0 %v499
  %2429 = vmatprep.subr.bf16.mxu0 %v502
  %2430 = vmatpush1.bf16.msra.mxu0 %v501
  %2431 = vmatprep.subr.bf16.mxu0 %v504
  %2432 = vmatpush1.bf16.msra.mxu0 %v503
  %2433 = vmatprep.subr.bf16.mxu0 %v506
  %2434 = vmatpush1.bf16.msra.mxu0 %v505
  %2435 = vmatprep.subr.bf16.mxu0 0
  %2436 = vmatpush1.bf16.msra.mxu0 0
  %2437 = vmatprep.subr.bf16.mxu0 0
  %2438 = vmatpush1.bf16.msra.mxu0 0
  %2439 = vmatprep.subr.bf16.mxu0 0
  %2440 = vmatpush1.bf16.msra.mxu0 0
  %2441 = vmatprep.subr.bf16.mxu0 0
  %2442 = vmatpush1.bf16.msra.mxu0 0
  %2443 = vmatprep.subr.bf16.mxu0 0
  %2444 = vmatpush1.bf16.msra.mxu0 0
  %2445 = vmatprep.subr.bf16.mxu0 0
  %2446 = vmatpush1.bf16.msra.mxu0 0
  %2447 = vmatprep.subr.bf16.mxu0 0
  %2448 = vmatpush1.bf16.msra.mxu0 0
  %2449 = vmatprep.subr.bf16.mxu0 0
  %2450 = vmatpush1.bf16.msra.mxu0 0
  %2451 = vmatprep.subr.bf16.mxu0 0
  %2452 = vmatpush1.bf16.msra.mxu0 0
  %2453 = vmatprep.subr.bf16.mxu0 0
  %2454 = vmatpush1.bf16.msra.mxu0 0
  %2455 = vmatprep.subr.bf16.mxu0 0
  %2456 = vmatpush1.bf16.msra.mxu0 0
  %2457 = vmatprep.subr.bf16.mxu0 0
  %2458 = vmatpush1.bf16.msra.mxu0 0
  %2459 = vmatprep.mubr.bf16.mxu0 0
  %2460 = vmatmul.mubr.bf16.gmra.mrb[0].mxu0 %v2425
  %v2461 = vpop.f32.mrb[0].mxu0
  %v2462 = vadd.f32 0.0, %v2461
  %v2463 = vpop.f32.mrb[0].mxu0
  %v2464 = vadd.f32 0.0, %v2463
  %v2465 = vpop.f32.mrb[0].mxu0
  %v2466 = vpop.f32.mrb[0].mxu0
  %2467 = vdwg.mxu0
  %s2468 = scalar_lea.vmem [#allocation2], 152
  %v2469 = vld [vmem:[%s2468] sm:$0xff]
  %v2470 = vadd.f32 %v2462, %v2469
  %v2471 = vadd.f32 %v2464, %v441
  %v2472 = vxor.u32 %v2470, 2147483648
  %v2473 = vmul.f32 %v2472, 1.442695
  %v2474 = vpow.pop %v2473
  %v2475 = vadd.f32 %v2474, 1.0
  %v2476 = vrcp.pop %v2475
  %v2477 = vmul.f32 1.0, %v2476
  %v2478 = vtanh.pop %v2470
  %v2479 = vmul.f32 %v2477, %v2383
  %2481 = vrot.lane.b32.xlu0 %v2478, 32
  %v2482 = vpop.permute.xlu0 %2481
  %v2484 = vmul.f32 %v2477, %v2482
  %2486 = vrot.lane.b32.xlu0 %v2484, 32
  %v2487 = vpop.permute.xlu0 %2486
  %v2489 = vadd.f32 %v2479, %v2487
  %v2490 = vtanh.pop %v2489
  %2492 = vrot.lane.b32.xlu0 %v2490, 32
  %v2493 = vpop.permute.xlu0 %2492
  %v2495 = vmul.f32 %v2477, %v2493
  %v2496 = vxor.u32 %v2471, 2147483648
  %v2497 = vmul.f32 %v2496, 1.442695
  %v2498 = vpow.pop %v2497
  %v2499 = vadd.f32 %v2498, 1.0
  %v2500 = vrcp.pop %v2499
  %v2501 = vmul.f32 1.0, %v2500
  %v2502 = vtanh.pop %v2471
  %v2503 = vmul.f32 %v2501, %v2407
  %2505 = vrot.lane.b32.xlu0 %v2502, 32
  %v2506 = vpop.permute.xlu0 %2505
  %v2508 = vmul.f32 %v2501, %v2506
  %2510 = vrot.lane.b32.xlu0 %v2508, 32
  %v2511 = vpop.permute.xlu0 %2510
  %v2513 = vadd.f32 %v2503, %v2511
  %v2514 = vtanh.pop %v2513
  %2516 = vrot.lane.b32.xlu0 %v2514, 32
  %v2517 = vpop.permute.xlu0 %2516
  %v2519 = vmul.f32 %v2501, %v2517
  %2521 = vrot.lane.b32.xlu0 %v2495, 64
  %v2522 = vpop.permute.xlu0 %2521
  %2525 = vrot.lane.b32.xlu0 %v2519, 96
  %v2526 = vpop.permute.xlu0 %2525
  %v2528 = vsel %vm472, %v2522, %v2526
  %v2529 = vpack.c.bf16 %v2528, %v2528
  %v2531 = vsel %vm515, %v2529, 0
  %2533 = vmatprep.subr.bf16.mxu0 %v500
  %2534 = vmatpush1.bf16.msra.mxu0 %v499
  %2535 = vmatprep.subr.bf16.mxu0 %v502
  %2536 = vmatpush1.bf16.msra.mxu0 %v501
  %2537 = vmatprep.subr.bf16.mxu0 %v504
  %2538 = vmatpush1.bf16.msra.mxu0 %v503
  %2539 = vmatprep.subr.bf16.mxu0 %v506
  %2540 = vmatpush1.bf16.msra.mxu0 %v505
  %2541 = vmatprep.subr.bf16.mxu0 0
  %2542 = vmatpush1.bf16.msra.mxu0 0
  %2543 = vmatprep.subr.bf16.mxu0 0
  %2544 = vmatpush1.bf16.msra.mxu0 0
  %2545 = vmatprep.subr.bf16.mxu0 0
  %2546 = vmatpush1.bf16.msra.mxu0 0
  %2547 = vmatprep.subr.bf16.mxu0 0
  %2548 = vmatpush1.bf16.msra.mxu0 0
  %2549 = vmatprep.subr.bf16.mxu0 0
  %2550 = vmatpush1.bf16.msra.mxu0 0
  %2551 = vmatprep.subr.bf16.mxu0 0
  %2552 = vmatpush1.bf16.msra.mxu0 0
  %2553 = vmatprep.subr.bf16.mxu0 0
  %2554 = vmatpush1.bf16.msra.mxu0 0
  %2555 = vmatprep.subr.bf16.mxu0 0
  %2556 = vmatpush1.bf16.msra.mxu0 0
  %2557 = vmatprep.subr.bf16.mxu0 0
  %2558 = vmatpush1.bf16.msra.mxu0 0
  %2559 = vmatprep.subr.bf16.mxu0 0
  %2560 = vmatpush1.bf16.msra.mxu0 0
  %2561 = vmatprep.subr.bf16.mxu0 0
  %2562 = vmatpush1.bf16.msra.mxu0 0
  %2563 = vmatprep.subr.bf16.mxu0 0
  %2564 = vmatpush1.bf16.msra.mxu0 0
  %2565 = vmatprep.mubr.bf16.mxu0 0
  %2566 = vmatmul.mubr.bf16.gmra.mrb[0].mxu0 %v2531
  %v2567 = vpop.f32.mrb[0].mxu0
  %v2568 = vadd.f32 0.0, %v2567
  %v2569 = vpop.f32.mrb[0].mxu0
  %v2570 = vadd.f32 0.0, %v2569
  %v2571 = vpop.f32.mrb[0].mxu0
  %v2572 = vpop.f32.mrb[0].mxu0
  %2573 = vdwg.mxu0
  %s2574 = scalar_lea.vmem [#allocation2], 160
  %v2575 = vld [vmem:[%s2574] sm:$0xff]
  %v2576 = vadd.f32 %v2568, %v2575
  %v2577 = vadd.f32 %v2570, %v441
  %v2578 = vxor.u32 %v2576, 2147483648
  %v2579 = vmul.f32 %v2578, 1.442695
  %v2580 = vpow.pop %v2579
  %v2581 = vadd.f32 %v2580, 1.0
  %v2582 = vrcp.pop %v2581
  %v2583 = vmul.f32 1.0, %v2582
  %v2584 = vtanh.pop %v2576
  %v2585 = vmul.f32 %v2583, %v2489
  %2587 = vrot.lane.b32.xlu0 %v2584, 32
  %v2588 = vpop.permute.xlu0 %2587
  %v2590 = vmul.f32 %v2583, %v2588
  %2592 = vrot.lane.b32.xlu0 %v2590, 32
  %v2593 = vpop.permute.xlu0 %2592
  %v2595 = vadd.f32 %v2585, %v2593
  %v2596 = vtanh.pop %v2595
  %2598 = vrot.lane.b32.xlu0 %v2596, 32
  %v2599 = vpop.permute.xlu0 %2598
  %v2601 = vmul.f32 %v2583, %v2599
  %v2602 = vxor.u32 %v2577, 2147483648
  %v2603 = vmul.f32 %v2602, 1.442695
  %v2604 = vpow.pop %v2603
  %v2605 = vadd.f32 %v2604, 1.0
  %v2606 = vrcp.pop %v2605
  %v2607 = vmul.f32 1.0, %v2606
  %v2608 = vtanh.pop %v2577
  %v2609 = vmul.f32 %v2607, %v2513
  %2611 = vrot.lane.b32.xlu0 %v2608, 32
  %v2612 = vpop.permute.xlu0 %2611
  %v2614 = vmul.f32 %v2607, %v2612
  %2616 = vrot.lane.b32.xlu0 %v2614, 32
  %v2617 = vpop.permute.xlu0 %2616
  %v2619 = vadd.f32 %v2609, %v2617
  %v2620 = vtanh.pop %v2619
  %2622 = vrot.lane.b32.xlu0 %v2620, 32
  %v2623 = vpop.permute.xlu0 %2622
  %v2625 = vmul.f32 %v2607, %v2623
  %2627 = vrot.lane.b32.xlu0 %v2601, 64
  %v2628 = vpop.permute.xlu0 %2627
  %2631 = vrot.lane.b32.xlu0 %v2625, 96
  %v2632 = vpop.permute.xlu0 %2631
  %v2634 = vsel %vm472, %v2628, %v2632
  %v2635 = vpack.c.bf16 %v2634, %v2634
  %v2637 = vsel %vm515, %v2635, 0
  %2639 = vmatprep.subr.bf16.mxu0 %v500
  %2640 = vmatpush1.bf16.msra.mxu0 %v499
  %2641 = vmatprep.subr.bf16.mxu0 %v502
  %2642 = vmatpush1.bf16.msra.mxu0 %v501
  %2643 = vmatprep.subr.bf16.mxu0 %v504
  %2644 = vmatpush1.bf16.msra.mxu0 %v503
  %2645 = vmatprep.subr.bf16.mxu0 %v506
  %2646 = vmatpush1.bf16.msra.mxu0 %v505
  %2647 = vmatprep.subr.bf16.mxu0 0
  %2648 = vmatpush1.bf16.msra.mxu0 0
  %2649 = vmatprep.subr.bf16.mxu0 0
  %2650 = vmatpush1.bf16.msra.mxu0 0
  %2651 = vmatprep.subr.bf16.mxu0 0
  %2652 = vmatpush1.bf16.msra.mxu0 0
  %2653 = vmatprep.subr.bf16.mxu0 0
  %2654 = vmatpush1.bf16.msra.mxu0 0
  %2655 = vmatprep.subr.bf16.mxu0 0
  %2656 = vmatpush1.bf16.msra.mxu0 0
  %2657 = vmatprep.subr.bf16.mxu0 0
  %2658 = vmatpush1.bf16.msra.mxu0 0
  %2659 = vmatprep.subr.bf16.mxu0 0
  %2660 = vmatpush1.bf16.msra.mxu0 0
  %2661 = vmatprep.subr.bf16.mxu0 0
  %2662 = vmatpush1.bf16.msra.mxu0 0
  %2663 = vmatprep.subr.bf16.mxu0 0
  %2664 = vmatpush1.bf16.msra.mxu0 0
  %2665 = vmatprep.subr.bf16.mxu0 0
  %2666 = vmatpush1.bf16.msra.mxu0 0
  %2667 = vmatprep.subr.bf16.mxu0 0
  %2668 = vmatpush1.bf16.msra.mxu0 0
  %2669 = vmatprep.subr.bf16.mxu0 0
  %2670 = vmatpush1.bf16.msra.mxu0 0
  %2671 = vmatprep.mubr.bf16.mxu0 0
  %2672 = vmatmul.mubr.bf16.gmra.mrb[0].mxu0 %v2637
  %v2673 = vpop.f32.mrb[0].mxu0
  %v2674 = vadd.f32 0.0, %v2673
  %v2675 = vpop.f32.mrb[0].mxu0
  %v2676 = vadd.f32 0.0, %v2675
  %v2677 = vpop.f32.mrb[0].mxu0
  %v2678 = vpop.f32.mrb[0].mxu0
  %2679 = vdwg.mxu0
  %s2680 = scalar_lea.vmem [#allocation2], 168
  %v2681 = vld [vmem:[%s2680] sm:$0xff]
  %v2682 = vadd.f32 %v2674, %v2681
  %v2683 = vadd.f32 %v2676, %v441
  %v2684 = vxor.u32 %v2682, 2147483648
  %v2685 = vmul.f32 %v2684, 1.442695
  %v2686 = vpow.pop %v2685
  %v2687 = vadd.f32 %v2686, 1.0
  %v2688 = vrcp.pop %v2687
  %v2689 = vmul.f32 1.0, %v2688
  %v2690 = vtanh.pop %v2682
  %v2691 = vmul.f32 %v2689, %v2595
  %2693 = vrot.lane.b32.xlu0 %v2690, 32
  %v2694 = vpop.permute.xlu0 %2693
  %v2696 = vmul.f32 %v2689, %v2694
  %2698 = vrot.lane.b32.xlu0 %v2696, 32
  %v2699 = vpop.permute.xlu0 %2698
  %v2701 = vadd.f32 %v2691, %v2699
  %v2702 = vtanh.pop %v2701
  %2704 = vrot.lane.b32.xlu0 %v2702, 32
  %v2705 = vpop.permute.xlu0 %2704
  %v2707 = vmul.f32 %v2689, %v2705
  %v2708 = vxor.u32 %v2683, 2147483648
  %v2709 = vmul.f32 %v2708, 1.442695
  %v2710 = vpow.pop %v2709
  %v2711 = vadd.f32 %v2710, 1.0
  %v2712 = vrcp.pop %v2711
  %v2713 = vmul.f32 1.0, %v2712
  %v2714 = vtanh.pop %v2683
  %v2715 = vmul.f32 %v2713, %v2619
  %2717 = vrot.lane.b32.xlu0 %v2714, 32
  %v2718 = vpop.permute.xlu0 %2717
  %v2720 = vmul.f32 %v2713, %v2718
  %2722 = vrot.lane.b32.xlu0 %v2720, 32
  %v2723 = vpop.permute.xlu0 %2722
  %v2725 = vadd.f32 %v2715, %v2723
  %v2726 = vtanh.pop %v2725
  %2728 = vrot.lane.b32.xlu0 %v2726, 32
  %v2729 = vpop.permute.xlu0 %2728
  %v2731 = vmul.f32 %v2713, %v2729
  %2733 = vrot.lane.b32.xlu0 %v2707, 64
  %v2734 = vpop.permute.xlu0 %2733
  %2737 = vrot.lane.b32.xlu0 %v2731, 96
  %v2738 = vpop.permute.xlu0 %2737
  %v2740 = vsel %vm472, %v2734, %v2738
  %v2741 = vpack.c.bf16 %v2740, %v2740
  %v2743 = vsel %vm515, %v2741, 0
  %2745 = vmatprep.subr.bf16.mxu0 %v500
  %2746 = vmatpush1.bf16.msra.mxu0 %v499
  %2747 = vmatprep.subr.bf16.mxu0 %v502
  %2748 = vmatpush1.bf16.msra.mxu0 %v501
  %2749 = vmatprep.subr.bf16.mxu0 %v504
  %2750 = vmatpush1.bf16.msra.mxu0 %v503
  %2751 = vmatprep.subr.bf16.mxu0 %v506
  %2752 = vmatpush1.bf16.msra.mxu0 %v505
  %2753 = vmatprep.subr.bf16.mxu0 0
  %2754 = vmatpush1.bf16.msra.mxu0 0
  %2755 = vmatprep.subr.bf16.mxu0 0
  %2756 = vmatpush1.bf16.msra.mxu0 0
  %2757 = vmatprep.subr.bf16.mxu0 0
  %2758 = vmatpush1.bf16.msra.mxu0 0
  %2759 = vmatprep.subr.bf16.mxu0 0
  %2760 = vmatpush1.bf16.msra.mxu0 0
  %2761 = vmatprep.subr.bf16.mxu0 0
  %2762 = vmatpush1.bf16.msra.mxu0 0
  %2763 = vmatprep.subr.bf16.mxu0 0
  %2764 = vmatpush1.bf16.msra.mxu0 0
  %2765 = vmatprep.subr.bf16.mxu0 0
  %2766 = vmatpush1.bf16.msra.mxu0 0
  %2767 = vmatprep.subr.bf16.mxu0 0
  %2768 = vmatpush1.bf16.msra.mxu0 0
  %2769 = vmatprep.subr.bf16.mxu0 0
  %2770 = vmatpush1.bf16.msra.mxu0 0
  %2771 = vmatprep.subr.bf16.mxu0 0
  %2772 = vmatpush1.bf16.msra.mxu0 0
  %2773 = vmatprep.subr.bf16.mxu0 0
  %2774 = vmatpush1.bf16.msra.mxu0 0
  %2775 = vmatprep.subr.bf16.mxu0 0
  %2776 = vmatpush1.bf16.msra.mxu0 0
  %2777 = vmatprep.mubr.bf16.mxu0 0
  %2778 = vmatmul.mubr.bf16.gmra.mrb[0].mxu0 %v2743
  %v2779 = vpop.f32.mrb[0].mxu0
  %v2780 = vadd.f32 0.0, %v2779
  %v2781 = vpop.f32.mrb[0].mxu0
  %v2782 = vadd.f32 0.0, %v2781
  %v2783 = vpop.f32.mrb[0].mxu0
  %v2784 = vpop.f32.mrb[0].mxu0
  %2785 = vdwg.mxu0
  %s2786 = scalar_lea.vmem [#allocation2], 176
  %v2787 = vld [vmem:[%s2786] sm:$0xff]
  %v2788 = vadd.f32 %v2780, %v2787
  %v2789 = vadd.f32 %v2782, %v441
  %v2790 = vxor.u32 %v2788, 2147483648
  %v2791 = vmul.f32 %v2790, 1.442695
  %v2792 = vpow.pop %v2791
  %v2793 = vadd.f32 %v2792, 1.0
  %v2794 = vrcp.pop %v2793
  %v2795 = vmul.f32 1.0, %v2794
  %v2796 = vtanh.pop %v2788
  %v2797 = vmul.f32 %v2795, %v2701
  %2799 = vrot.lane.b32.xlu0 %v2796, 32
  %v2800 = vpop.permute.xlu0 %2799
  %v2802 = vmul.f32 %v2795, %v2800
  %2804 = vrot.lane.b32.xlu0 %v2802, 32
  %v2805 = vpop.permute.xlu0 %2804
  %v2807 = vadd.f32 %v2797, %v2805
  %v2808 = vtanh.pop %v2807
  %2810 = vrot.lane.b32.xlu0 %v2808, 32
  %v2811 = vpop.permute.xlu0 %2810
  %v2813 = vmul.f32 %v2795, %v2811
  %v2814 = vxor.u32 %v2789, 2147483648
  %v2815 = vmul.f32 %v2814, 1.442695
  %v2816 = vpow.pop %v2815
  %v2817 = vadd.f32 %v2816, 1.0
  %v2818 = vrcp.pop %v2817
  %v2819 = vmul.f32 1.0, %v2818
  %v2820 = vtanh.pop %v2789
  %v2821 = vmul.f32 %v2819, %v2725
  %2823 = vrot.lane.b32.xlu0 %v2820, 32
  %v2824 = vpop.permute.xlu0 %2823
  %v2826 = vmul.f32 %v2819, %v2824
  %2828 = vrot.lane.b32.xlu0 %v2826, 32
  %v2829 = vpop.permute.xlu0 %2828
  %v2831 = vadd.f32 %v2821, %v2829
  %v2832 = vtanh.pop %v2831
  %2834 = vrot.lane.b32.xlu0 %v2832, 32
  %v2835 = vpop.permute.xlu0 %2834
  %v2837 = vmul.f32 %v2819, %v2835
  %2839 = vrot.lane.b32.xlu0 %v2813, 64
  %v2840 = vpop.permute.xlu0 %2839
  %2843 = vrot.lane.b32.xlu0 %v2837, 96
  %v2844 = vpop.permute.xlu0 %2843
  %v2846 = vsel %vm472, %v2840, %v2844
  %v2847 = vpack.c.bf16 %v2846, %v2846
  %v2849 = vsel %vm515, %v2847, 0
  %2851 = vmatprep.subr.bf16.mxu0 %v500
  %2852 = vmatpush1.bf16.msra.mxu0 %v499
  %2853 = vmatprep.subr.bf16.mxu0 %v502
  %2854 = vmatpush1.bf16.msra.mxu0 %v501
  %2855 = vmatprep.subr.bf16.mxu0 %v504
  %2856 = vmatpush1.bf16.msra.mxu0 %v503
  %2857 = vmatprep.subr.bf16.mxu0 %v506
  %2858 = vmatpush1.bf16.msra.mxu0 %v505
  %2859 = vmatprep.subr.bf16.mxu0 0
  %2860 = vmatpush1.bf16.msra.mxu0 0
  %2861 = vmatprep.subr.bf16.mxu0 0
  %2862 = vmatpush1.bf16.msra.mxu0 0
  %2863 = vmatprep.subr.bf16.mxu0 0
  %2864 = vmatpush1.bf16.msra.mxu0 0
  %2865 = vmatprep.subr.bf16.mxu0 0
  %2866 = vmatpush1.bf16.msra.mxu0 0
  %2867 = vmatprep.subr.bf16.mxu0 0
  %2868 = vmatpush1.bf16.msra.mxu0 0
  %2869 = vmatprep.subr.bf16.mxu0 0
  %2870 = vmatpush1.bf16.msra.mxu0 0
  %2871 = vmatprep.subr.bf16.mxu0 0
  %2872 = vmatpush1.bf16.msra.mxu0 0
  %2873 = vmatprep.subr.bf16.mxu0 0
  %2874 = vmatpush1.bf16.msra.mxu0 0
  %2875 = vmatprep.subr.bf16.mxu0 0
  %2876 = vmatpush1.bf16.msra.mxu0 0
  %2877 = vmatprep.subr.bf16.mxu0 0
  %2878 = vmatpush1.bf16.msra.mxu0 0
  %2879 = vmatprep.subr.bf16.mxu0 0
  %2880 = vmatpush1.bf16.msra.mxu0 0
  %2881 = vmatprep.subr.bf16.mxu0 0
  %2882 = vmatpush1.bf16.msra.mxu0 0
  %2883 = vmatprep.mubr.bf16.mxu0 0
  %2884 = vmatmul.mubr.bf16.gmra.mrb[0].mxu0 %v2849
  %v2885 = vpop.f32.mrb[0].mxu0
  %v2886 = vadd.f32 0.0, %v2885
  %v2887 = vpop.f32.mrb[0].mxu0
  %v2888 = vadd.f32 0.0, %v2887
  %v2889 = vpop.f32.mrb[0].mxu0
  %v2890 = vpop.f32.mrb[0].mxu0
  %2891 = vdwg.mxu0
  %s2892 = scalar_lea.vmem [#allocation2], 184
  %v2893 = vld [vmem:[%s2892] sm:$0xff]
  %v2894 = vadd.f32 %v2886, %v2893
  %v2895 = vadd.f32 %v2888, %v441
  %v2896 = vxor.u32 %v2894, 2147483648
  %v2897 = vmul.f32 %v2896, 1.442695
  %v2898 = vpow.pop %v2897
  %v2899 = vadd.f32 %v2898, 1.0
  %v2900 = vrcp.pop %v2899
  %v2901 = vmul.f32 1.0, %v2900
  %v2902 = vtanh.pop %v2894
  %v2903 = vmul.f32 %v2901, %v2807
  %2905 = vrot.lane.b32.xlu0 %v2902, 32
  %v2906 = vpop.permute.xlu0 %2905
  %v2908 = vmul.f32 %v2901, %v2906
  %2910 = vrot.lane.b32.xlu0 %v2908, 32
  %v2911 = vpop.permute.xlu0 %2910
  %v2913 = vadd.f32 %v2903, %v2911
  %v2914 = vtanh.pop %v2913
  %2916 = vrot.lane.b32.xlu0 %v2914, 32
  %v2917 = vpop.permute.xlu0 %2916
  %v2919 = vmul.f32 %v2901, %v2917
  %v2920 = vxor.u32 %v2895, 2147483648
  %v2921 = vmul.f32 %v2920, 1.442695
  %v2922 = vpow.pop %v2921
  %v2923 = vadd.f32 %v2922, 1.0
  %v2924 = vrcp.pop %v2923
  %v2925 = vmul.f32 1.0, %v2924
  %v2926 = vtanh.pop %v2895
  %v2927 = vmul.f32 %v2925, %v2831
  %2929 = vrot.lane.b32.xlu0 %v2926, 32
  %v2930 = vpop.permute.xlu0 %2929
  %v2932 = vmul.f32 %v2925, %v2930
  %2934 = vrot.lane.b32.xlu0 %v2932, 32
  %v2935 = vpop.permute.xlu0 %2934
  %v2937 = vadd.f32 %v2927, %v2935
  %v2938 = vtanh.pop %v2937
  %2940 = vrot.lane.b32.xlu0 %v2938, 32
  %v2941 = vpop.permute.xlu0 %2940
  %v2943 = vmul.f32 %v2925, %v2941
  %2945 = vrot.lane.b32.xlu0 %v2919, 64
  %v2946 = vpop.permute.xlu0 %2945
  %2949 = vrot.lane.b32.xlu0 %v2943, 96
  %v2950 = vpop.permute.xlu0 %2949
  %v2952 = vsel %vm472, %v2946, %v2950
  %v2953 = vpack.c.bf16 %v2952, %v2952
  %v2955 = vsel %vm515, %v2953, 0
  %2957 = vmatprep.subr.bf16.mxu0 %v500
  %2958 = vmatpush1.bf16.msra.mxu0 %v499
  %2959 = vmatprep.subr.bf16.mxu0 %v502
  %2960 = vmatpush1.bf16.msra.mxu0 %v501
  %2961 = vmatprep.subr.bf16.mxu0 %v504
  %2962 = vmatpush1.bf16.msra.mxu0 %v503
  %2963 = vmatprep.subr.bf16.mxu0 %v506
  %2964 = vmatpush1.bf16.msra.mxu0 %v505
  %2965 = vmatprep.subr.bf16.mxu0 0
  %2966 = vmatpush1.bf16.msra.mxu0 0
  %2967 = vmatprep.subr.bf16.mxu0 0
  %2968 = vmatpush1.bf16.msra.mxu0 0
  %2969 = vmatprep.subr.bf16.mxu0 0
  %2970 = vmatpush1.bf16.msra.mxu0 0
  %2971 = vmatprep.subr.bf16.mxu0 0
  %2972 = vmatpush1.bf16.msra.mxu0 0
  %2973 = vmatprep.subr.bf16.mxu0 0
  %2974 = vmatpush1.bf16.msra.mxu0 0
  %2975 = vmatprep.subr.bf16.mxu0 0
  %2976 = vmatpush1.bf16.msra.mxu0 0
  %2977 = vmatprep.subr.bf16.mxu0 0
  %2978 = vmatpush1.bf16.msra.mxu0 0
  %2979 = vmatprep.subr.bf16.mxu0 0
  %2980 = vmatpush1.bf16.msra.mxu0 0
  %2981 = vmatprep.subr.bf16.mxu0 0
  %2982 = vmatpush1.bf16.msra.mxu0 0
  %2983 = vmatprep.subr.bf16.mxu0 0
  %2984 = vmatpush1.bf16.msra.mxu0 0
  %2985 = vmatprep.subr.bf16.mxu0 0
  %2986 = vmatpush1.bf16.msra.mxu0 0
  %2987 = vmatprep.subr.bf16.mxu0 0
  %2988 = vmatpush1.bf16.msra.mxu0 0
  %2989 = vmatprep.mubr.bf16.mxu0 0
  %2990 = vmatmul.mubr.bf16.gmra.mrb[0].mxu0 %v2955
  %v2991 = vpop.f32.mrb[0].mxu0
  %v2992 = vadd.f32 0.0, %v2991
  %v2993 = vpop.f32.mrb[0].mxu0
  %v2994 = vadd.f32 0.0, %v2993
  %v2995 = vpop.f32.mrb[0].mxu0
  %v2996 = vpop.f32.mrb[0].mxu0
  %2997 = vdwg.mxu0
  %s2998 = scalar_lea.vmem [#allocation2], 192
  %v2999 = vld [vmem:[%s2998] sm:$0xff]
  %v3000 = vadd.f32 %v2992, %v2999
  %v3001 = vadd.f32 %v2994, %v441
  %v3002 = vxor.u32 %v3000, 2147483648
  %v3003 = vmul.f32 %v3002, 1.442695
  %v3004 = vpow.pop %v3003
  %v3005 = vadd.f32 %v3004, 1.0
  %v3006 = vrcp.pop %v3005
  %v3007 = vmul.f32 1.0, %v3006
  %v3008 = vtanh.pop %v3000
  %v3009 = vmul.f32 %v3007, %v2913
  %3011 = vrot.lane.b32.xlu0 %v3008, 32
  %v3012 = vpop.permute.xlu0 %3011
  %v3014 = vmul.f32 %v3007, %v3012
  %3016 = vrot.lane.b32.xlu0 %v3014, 32
  %v3017 = vpop.permute.xlu0 %3016
  %v3019 = vadd.f32 %v3009, %v3017
  %v3020 = vtanh.pop %v3019
  %3022 = vrot.lane.b32.xlu0 %v3020, 32
  %v3023 = vpop.permute.xlu0 %3022
  %v3025 = vmul.f32 %v3007, %v3023
  %v3026 = vxor.u32 %v3001, 2147483648
  %v3027 = vmul.f32 %v3026, 1.442695
  %v3028 = vpow.pop %v3027
  %v3029 = vadd.f32 %v3028, 1.0
  %v3030 = vrcp.pop %v3029
  %v3031 = vmul.f32 1.0, %v3030
  %v3032 = vtanh.pop %v3001
  %v3033 = vmul.f32 %v3031, %v2937
  %3035 = vrot.lane.b32.xlu0 %v3032, 32
  %v3036 = vpop.permute.xlu0 %3035
  %v3038 = vmul.f32 %v3031, %v3036
  %3040 = vrot.lane.b32.xlu0 %v3038, 32
  %v3041 = vpop.permute.xlu0 %3040
  %v3043 = vadd.f32 %v3033, %v3041
  %v3044 = vtanh.pop %v3043
  %3046 = vrot.lane.b32.xlu0 %v3044, 32
  %v3047 = vpop.permute.xlu0 %3046
  %v3049 = vmul.f32 %v3031, %v3047
  %3051 = vrot.lane.b32.xlu0 %v3025, 64
  %v3052 = vpop.permute.xlu0 %3051
  %3055 = vrot.lane.b32.xlu0 %v3049, 96
  %v3056 = vpop.permute.xlu0 %3055
  %v3058 = vsel %vm472, %v3052, %v3056
  %v3059 = vpack.c.bf16 %v3058, %v3058
  %v3061 = vsel %vm515, %v3059, 0
  %3063 = vmatprep.subr.bf16.mxu0 %v500
  %3064 = vmatpush1.bf16.msra.mxu0 %v499
  %3065 = vmatprep.subr.bf16.mxu0 %v502
  %3066 = vmatpush1.bf16.msra.mxu0 %v501
  %3067 = vmatprep.subr.bf16.mxu0 %v504
  %3068 = vmatpush1.bf16.msra.mxu0 %v503
  %3069 = vmatprep.subr.bf16.mxu0 %v506
  %3070 = vmatpush1.bf16.msra.mxu0 %v505
  %3071 = vmatprep.subr.bf16.mxu0 0
  %3072 = vmatpush1.bf16.msra.mxu0 0
  %3073 = vmatprep.subr.bf16.mxu0 0
  %3074 = vmatpush1.bf16.msra.mxu0 0
  %3075 = vmatprep.subr.bf16.mxu0 0
  %3076 = vmatpush1.bf16.msra.mxu0 0
  %3077 = vmatprep.subr.bf16.mxu0 0
  %3078 = vmatpush1.bf16.msra.mxu0 0
  %3079 = vmatprep.subr.bf16.mxu0 0
  %3080 = vmatpush1.bf16.msra.mxu0 0
  %3081 = vmatprep.subr.bf16.mxu0 0
  %3082 = vmatpush1.bf16.msra.mxu0 0
  %3083 = vmatprep.subr.bf16.mxu0 0
  %3084 = vmatpush1.bf16.msra.mxu0 0
  %3085 = vmatprep.subr.bf16.mxu0 0
  %3086 = vmatpush1.bf16.msra.mxu0 0
  %3087 = vmatprep.subr.bf16.mxu0 0
  %3088 = vmatpush1.bf16.msra.mxu0 0
  %3089 = vmatprep.subr.bf16.mxu0 0
  %3090 = vmatpush1.bf16.msra.mxu0 0
  %3091 = vmatprep.subr.bf16.mxu0 0
  %3092 = vmatpush1.bf16.msra.mxu0 0
  %3093 = vmatprep.subr.bf16.mxu0 0
  %3094 = vmatpush1.bf16.msra.mxu0 0
  %3095 = vmatprep.mubr.bf16.mxu0 0
  %3096 = vmatmul.mubr.bf16.gmra.mrb[0].mxu0 %v3061
  %v3097 = vpop.f32.mrb[0].mxu0
  %v3098 = vadd.f32 0.0, %v3097
  %v3099 = vpop.f32.mrb[0].mxu0
  %v3100 = vadd.f32 0.0, %v3099
  %v3101 = vpop.f32.mrb[0].mxu0
  %v3102 = vpop.f32.mrb[0].mxu0
  %3103 = vdwg.mxu0
  %s3104 = scalar_lea.vmem [#allocation2], 200
  %v3105 = vld [vmem:[%s3104] sm:$0xff]
  %v3106 = vadd.f32 %v3098, %v3105
  %v3107 = vadd.f32 %v3100, %v441
  %v3108 = vxor.u32 %v3106, 2147483648
  %v3109 = vmul.f32 %v3108, 1.442695
  %v3110 = vpow.pop %v3109
  %v3111 = vadd.f32 %v3110, 1.0
  %v3112 = vrcp.pop %v3111
  %v3113 = vmul.f32 1.0, %v3112
  %v3114 = vtanh.pop %v3106
  %v3115 = vmul.f32 %v3113, %v3019
  %3117 = vrot.lane.b32.xlu0 %v3114, 32
  %v3118 = vpop.permute.xlu0 %3117
  %v3120 = vmul.f32 %v3113, %v3118
  %3122 = vrot.lane.b32.xlu0 %v3120, 32
  %v3123 = vpop.permute.xlu0 %3122
  %v3125 = vadd.f32 %v3115, %v3123
  %v3126 = vtanh.pop %v3125
  %3128 = vrot.lane.b32.xlu0 %v3126, 32
  %v3129 = vpop.permute.xlu0 %3128
  %v3131 = vmul.f32 %v3113, %v3129
  %v3132 = vxor.u32 %v3107, 2147483648
  %v3133 = vmul.f32 %v3132, 1.442695
  %v3134 = vpow.pop %v3133
  %v3135 = vadd.f32 %v3134, 1.0
  %v3136 = vrcp.pop %v3135
  %v3137 = vmul.f32 1.0, %v3136
  %v3138 = vtanh.pop %v3107
  %v3139 = vmul.f32 %v3137, %v3043
  %3141 = vrot.lane.b32.xlu0 %v3138, 32
  %v3142 = vpop.permute.xlu0 %3141
  %v3144 = vmul.f32 %v3137, %v3142
  %3146 = vrot.lane.b32.xlu0 %v3144, 32
  %v3147 = vpop.permute.xlu0 %3146
  %v3149 = vadd.f32 %v3139, %v3147
  %v3150 = vtanh.pop %v3149
  %3152 = vrot.lane.b32.xlu0 %v3150, 32
  %v3153 = vpop.permute.xlu0 %3152
  %v3155 = vmul.f32 %v3137, %v3153
  %3157 = vrot.lane.b32.xlu0 %v3131, 64
  %v3158 = vpop.permute.xlu0 %3157
  %3161 = vrot.lane.b32.xlu0 %v3155, 96
  %v3162 = vpop.permute.xlu0 %3161
  %v3164 = vsel %vm472, %v3158, %v3162
  %v3165 = vpack.c.bf16 %v3164, %v3164
  %v3167 = vsel %vm515, %v3165, 0
  %3169 = vmatprep.subr.bf16.mxu0 %v500
  %3170 = vmatpush1.bf16.msra.mxu0 %v499
  %3171 = vmatprep.subr.bf16.mxu0 %v502
  %3172 = vmatpush1.bf16.msra.mxu0 %v501
  %3173 = vmatprep.subr.bf16.mxu0 %v504
  %3174 = vmatpush1.bf16.msra.mxu0 %v503
  %3175 = vmatprep.subr.bf16.mxu0 %v506
  %3176 = vmatpush1.bf16.msra.mxu0 %v505
  %3177 = vmatprep.subr.bf16.mxu0 0
  %3178 = vmatpush1.bf16.msra.mxu0 0
  %3179 = vmatprep.subr.bf16.mxu0 0
  %3180 = vmatpush1.bf16.msra.mxu0 0
  %3181 = vmatprep.subr.bf16.mxu0 0
  %3182 = vmatpush1.bf16.msra.mxu0 0
  %3183 = vmatprep.subr.bf16.mxu0 0
  %3184 = vmatpush1.bf16.msra.mxu0 0
  %3185 = vmatprep.subr.bf16.mxu0 0
  %3186 = vmatpush1.bf16.msra.mxu0 0
  %3187 = vmatprep.subr.bf16.mxu0 0
  %3188 = vmatpush1.bf16.msra.mxu0 0
  %3189 = vmatprep.subr.bf16.mxu0 0
  %3190 = vmatpush1.bf16.msra.mxu0 0
  %3191 = vmatprep.subr.bf16.mxu0 0
  %3192 = vmatpush1.bf16.msra.mxu0 0
  %3193 = vmatprep.subr.bf16.mxu0 0
  %3194 = vmatpush1.bf16.msra.mxu0 0
  %3195 = vmatprep.subr.bf16.mxu0 0
  %3196 = vmatpush1.bf16.msra.mxu0 0
  %3197 = vmatprep.subr.bf16.mxu0 0
  %3198 = vmatpush1.bf16.msra.mxu0 0
  %3199 = vmatprep.subr.bf16.mxu0 0
  %3200 = vmatpush1.bf16.msra.mxu0 0
  %3201 = vmatprep.mubr.bf16.mxu0 0
  %3202 = vmatmul.mubr.bf16.gmra.mrb[0].mxu0 %v3167
  %v3203 = vpop.f32.mrb[0].mxu0
  %v3204 = vadd.f32 0.0, %v3203
  %v3205 = vpop.f32.mrb[0].mxu0
  %v3206 = vadd.f32 0.0, %v3205
  %v3207 = vpop.f32.mrb[0].mxu0
  %v3208 = vpop.f32.mrb[0].mxu0
  %3209 = vdwg.mxu0
  %s3210 = scalar_lea.vmem [#allocation2], 208
  %v3211 = vld [vmem:[%s3210] sm:$0xff]
  %v3212 = vadd.f32 %v3204, %v3211
  %v3213 = vadd.f32 %v3206, %v441
  %v3214 = vxor.u32 %v3212, 2147483648
  %v3215 = vmul.f32 %v3214, 1.442695
  %v3216 = vpow.pop %v3215
  %v3217 = vadd.f32 %v3216, 1.0
  %v3218 = vrcp.pop %v3217
  %v3219 = vmul.f32 1.0, %v3218
  %v3220 = vtanh.pop %v3212
  %v3221 = vmul.f32 %v3219, %v3125
  %3223 = vrot.lane.b32.xlu0 %v3220, 32
  %v3224 = vpop.permute.xlu0 %3223
  %v3226 = vmul.f32 %v3219, %v3224
  %3228 = vrot.lane.b32.xlu0 %v3226, 32
  %v3229 = vpop.permute.xlu0 %3228
  %v3231 = vadd.f32 %v3221, %v3229
  %v3232 = vtanh.pop %v3231
  %3234 = vrot.lane.b32.xlu0 %v3232, 32
  %v3235 = vpop.permute.xlu0 %3234
  %v3237 = vmul.f32 %v3219, %v3235
  %v3238 = vxor.u32 %v3213, 2147483648
  %v3239 = vmul.f32 %v3238, 1.442695
  %v3240 = vpow.pop %v3239
  %v3241 = vadd.f32 %v3240, 1.0
  %v3242 = vrcp.pop %v3241
  %v3243 = vmul.f32 1.0, %v3242
  %v3244 = vtanh.pop %v3213
  %v3245 = vmul.f32 %v3243, %v3149
  %3247 = vrot.lane.b32.xlu0 %v3244, 32
  %v3248 = vpop.permute.xlu0 %3247
  %v3250 = vmul.f32 %v3243, %v3248
  %3252 = vrot.lane.b32.xlu0 %v3250, 32
  %v3253 = vpop.permute.xlu0 %3252
  %v3255 = vadd.f32 %v3245, %v3253
  %v3256 = vtanh.pop %v3255
  %3258 = vrot.lane.b32.xlu0 %v3256, 32
  %v3259 = vpop.permute.xlu0 %3258
  %v3261 = vmul.f32 %v3243, %v3259
  %3263 = vrot.lane.b32.xlu0 %v3237, 64
  %v3264 = vpop.permute.xlu0 %3263
  %3267 = vrot.lane.b32.xlu0 %v3261, 96
  %v3268 = vpop.permute.xlu0 %3267
  %v3270 = vsel %vm472, %v3264, %v3268
  %v3271 = vpack.c.bf16 %v3270, %v3270
  %v3273 = vsel %vm515, %v3271, 0
  %3275 = vmatprep.subr.bf16.mxu0 %v500
  %3276 = vmatpush1.bf16.msra.mxu0 %v499
  %3277 = vmatprep.subr.bf16.mxu0 %v502
  %3278 = vmatpush1.bf16.msra.mxu0 %v501
  %3279 = vmatprep.subr.bf16.mxu0 %v504
  %3280 = vmatpush1.bf16.msra.mxu0 %v503
  %3281 = vmatprep.subr.bf16.mxu0 %v506
  %3282 = vmatpush1.bf16.msra.mxu0 %v505
  %3283 = vmatprep.subr.bf16.mxu0 0
  %3284 = vmatpush1.bf16.msra.mxu0 0
  %3285 = vmatprep.subr.bf16.mxu0 0
  %3286 = vmatpush1.bf16.msra.mxu0 0
  %3287 = vmatprep.subr.bf16.mxu0 0
  %3288 = vmatpush1.bf16.msra.mxu0 0
  %3289 = vmatprep.subr.bf16.mxu0 0
  %3290 = vmatpush1.bf16.msra.mxu0 0
  %3291 = vmatprep.subr.bf16.mxu0 0
  %3292 = vmatpush1.bf16.msra.mxu0 0
  %3293 = vmatprep.subr.bf16.mxu0 0
  %3294 = vmatpush1.bf16.msra.mxu0 0
  %3295 = vmatprep.subr.bf16.mxu0 0
  %3296 = vmatpush1.bf16.msra.mxu0 0
  %3297 = vmatprep.subr.bf16.mxu0 0
  %3298 = vmatpush1.bf16.msra.mxu0 0
  %3299 = vmatprep.subr.bf16.mxu0 0
  %3300 = vmatpush1.bf16.msra.mxu0 0
  %3301 = vmatprep.subr.bf16.mxu0 0
  %3302 = vmatpush1.bf16.msra.mxu0 0
  %3303 = vmatprep.subr.bf16.mxu0 0
  %3304 = vmatpush1.bf16.msra.mxu0 0
  %3305 = vmatprep.subr.bf16.mxu0 0
  %3306 = vmatpush1.bf16.msra.mxu0 0
  %3307 = vmatprep.mubr.bf16.mxu0 0
  %3308 = vmatmul.mubr.bf16.gmra.mrb[0].mxu0 %v3273
  %v3309 = vpop.f32.mrb[0].mxu0
  %v3310 = vadd.f32 0.0, %v3309
  %v3311 = vpop.f32.mrb[0].mxu0
  %v3312 = vadd.f32 0.0, %v3311
  %v3313 = vpop.f32.mrb[0].mxu0
  %v3314 = vpop.f32.mrb[0].mxu0
  %3315 = vdwg.mxu0
  %s3316 = scalar_lea.vmem [#allocation2], 216
  %v3317 = vld [vmem:[%s3316] sm:$0xff]
  %v3318 = vadd.f32 %v3310, %v3317
  %v3319 = vadd.f32 %v3312, %v441
  %v3320 = vxor.u32 %v3318, 2147483648
  %v3321 = vmul.f32 %v3320, 1.442695
  %v3322 = vpow.pop %v3321
  %v3323 = vadd.f32 %v3322, 1.0
  %v3324 = vrcp.pop %v3323
  %v3325 = vmul.f32 1.0, %v3324
  %v3326 = vtanh.pop %v3318
  %v3327 = vmul.f32 %v3325, %v3231
  %3329 = vrot.lane.b32.xlu0 %v3326, 32
  %v3330 = vpop.permute.xlu0 %3329
  %v3332 = vmul.f32 %v3325, %v3330
  %3334 = vrot.lane.b32.xlu0 %v3332, 32
  %v3335 = vpop.permute.xlu0 %3334
  %v3337 = vadd.f32 %v3327, %v3335
  %v3338 = vtanh.pop %v3337
  %3340 = vrot.lane.b32.xlu0 %v3338, 32
  %v3341 = vpop.permute.xlu0 %3340
  %v3343 = vmul.f32 %v3325, %v3341
  %v3344 = vxor.u32 %v3319, 2147483648
  %v3345 = vmul.f32 %v3344, 1.442695
  %v3346 = vpow.pop %v3345
  %v3347 = vadd.f32 %v3346, 1.0
  %v3348 = vrcp.pop %v3347
  %v3349 = vmul.f32 1.0, %v3348
  %v3350 = vtanh.pop %v3319
  %v3351 = vmul.f32 %v3349, %v3255
  %3353 = vrot.lane.b32.xlu0 %v3350, 32
  %v3354 = vpop.permute.xlu0 %3353
  %v3356 = vmul.f32 %v3349, %v3354
  %3358 = vrot.lane.b32.xlu0 %v3356, 32
  %v3359 = vpop.permute.xlu0 %3358
  %v3361 = vadd.f32 %v3351, %v3359
  %v3362 = vtanh.pop %v3361
  %3364 = vrot.lane.b32.xlu0 %v3362, 32
  %v3365 = vpop.permute.xlu0 %3364
  %v3367 = vmul.f32 %v3349, %v3365
  %3369 = vrot.lane.b32.xlu0 %v3343, 64
  %v3370 = vpop.permute.xlu0 %3369
  %3373 = vrot.lane.b32.xlu0 %v3367, 96
  %v3374 = vpop.permute.xlu0 %3373
  %v3376 = vsel %vm472, %v3370, %v3374
  %v3377 = vpack.c.bf16 %v3376, %v3376
  %v3379 = vsel %vm515, %v3377, 0
  %3381 = vmatprep.subr.bf16.mxu0 %v500
  %3382 = vmatpush1.bf16.msra.mxu0 %v499
  %3383 = vmatprep.subr.bf16.mxu0 %v502
  %3384 = vmatpush1.bf16.msra.mxu0 %v501
  %3385 = vmatprep.subr.bf16.mxu0 %v504
  %3386 = vmatpush1.bf16.msra.mxu0 %v503
  %3387 = vmatprep.subr.bf16.mxu0 %v506
  %3388 = vmatpush1.bf16.msra.mxu0 %v505
  %3389 = vmatprep.subr.bf16.mxu0 0
  %3390 = vmatpush1.bf16.msra.mxu0 0
  %3391 = vmatprep.subr.bf16.mxu0 0
  %3392 = vmatpush1.bf16.msra.mxu0 0
  %3393 = vmatprep.subr.bf16.mxu0 0
  %3394 = vmatpush1.bf16.msra.mxu0 0
  %3395 = vmatprep.subr.bf16.mxu0 0
  %3396 = vmatpush1.bf16.msra.mxu0 0
  %3397 = vmatprep.subr.bf16.mxu0 0
  %3398 = vmatpush1.bf16.msra.mxu0 0
  %3399 = vmatprep.subr.bf16.mxu0 0
  %3400 = vmatpush1.bf16.msra.mxu0 0
  %3401 = vmatprep.subr.bf16.mxu0 0
  %3402 = vmatpush1.bf16.msra.mxu0 0
  %3403 = vmatprep.subr.bf16.mxu0 0
  %3404 = vmatpush1.bf16.msra.mxu0 0
  %3405 = vmatprep.subr.bf16.mxu0 0
  %3406 = vmatpush1.bf16.msra.mxu0 0
  %3407 = vmatprep.subr.bf16.mxu0 0
  %3408 = vmatpush1.bf16.msra.mxu0 0
  %3409 = vmatprep.subr.bf16.mxu0 0
  %3410 = vmatpush1.bf16.msra.mxu0 0
  %3411 = vmatprep.subr.bf16.mxu0 0
  %3412 = vmatpush1.bf16.msra.mxu0 0
  %3413 = vmatprep.mubr.bf16.mxu0 0
  %3414 = vmatmul.mubr.bf16.gmra.mrb[0].mxu0 %v3379
  %v3415 = vpop.f32.mrb[0].mxu0
  %v3416 = vadd.f32 0.0, %v3415
  %v3417 = vpop.f32.mrb[0].mxu0
  %v3418 = vadd.f32 0.0, %v3417
  %v3419 = vpop.f32.mrb[0].mxu0
  %v3420 = vpop.f32.mrb[0].mxu0
  %3421 = vdwg.mxu0
  %s3422 = scalar_lea.vmem [#allocation2], 224
  %v3423 = vld [vmem:[%s3422] sm:$0xff]
  %v3424 = vadd.f32 %v3416, %v3423
  %v3425 = vadd.f32 %v3418, %v441
  %v3426 = vxor.u32 %v3424, 2147483648
  %v3427 = vmul.f32 %v3426, 1.442695
  %v3428 = vpow.pop %v3427
  %v3429 = vadd.f32 %v3428, 1.0
  %v3430 = vrcp.pop %v3429
  %v3431 = vmul.f32 1.0, %v3430
  %v3432 = vtanh.pop %v3424
  %v3433 = vmul.f32 %v3431, %v3337
  %3435 = vrot.lane.b32.xlu0 %v3432, 32
  %v3436 = vpop.permute.xlu0 %3435
  %v3438 = vmul.f32 %v3431, %v3436
  %3440 = vrot.lane.b32.xlu0 %v3438, 32
  %v3441 = vpop.permute.xlu0 %3440
  %v3443 = vadd.f32 %v3433, %v3441
  %v3444 = vtanh.pop %v3443
  %3446 = vrot.lane.b32.xlu0 %v3444, 32
  %v3447 = vpop.permute.xlu0 %3446
  %v3449 = vmul.f32 %v3431, %v3447
  %v3450 = vxor.u32 %v3425, 2147483648
  %v3451 = vmul.f32 %v3450, 1.442695
  %v3452 = vpow.pop %v3451
  %v3453 = vadd.f32 %v3452, 1.0
  %v3454 = vrcp.pop %v3453
  %v3455 = vmul.f32 1.0, %v3454
  %v3456 = vtanh.pop %v3425
  %v3457 = vmul.f32 %v3455, %v3361
  %3459 = vrot.lane.b32.xlu0 %v3456, 32
  %v3460 = vpop.permute.xlu0 %3459
  %v3462 = vmul.f32 %v3455, %v3460
  %3464 = vrot.lane.b32.xlu0 %v3462, 32
  %v3465 = vpop.permute.xlu0 %3464
  %v3467 = vadd.f32 %v3457, %v3465
  %v3468 = vtanh.pop %v3467
  %3470 = vrot.lane.b32.xlu0 %v3468, 32
  %v3471 = vpop.permute.xlu0 %3470
  %v3473 = vmul.f32 %v3455, %v3471
  %3475 = vrot.lane.b32.xlu0 %v3449, 64
  %v3476 = vpop.permute.xlu0 %3475
  %3479 = vrot.lane.b32.xlu0 %v3473, 96
  %v3480 = vpop.permute.xlu0 %3479
  %v3482 = vsel %vm472, %v3476, %v3480
  %v3483 = vpack.c.bf16 %v3482, %v3482
  %v3485 = vsel %vm515, %v3483, 0
  %3487 = vmatprep.subr.bf16.mxu0 %v500
  %3488 = vmatpush1.bf16.msra.mxu0 %v499
  %3489 = vmatprep.subr.bf16.mxu0 %v502
  %3490 = vmatpush1.bf16.msra.mxu0 %v501
  %3491 = vmatprep.subr.bf16.mxu0 %v504
  %3492 = vmatpush1.bf16.msra.mxu0 %v503
  %3493 = vmatprep.subr.bf16.mxu0 %v506
  %3494 = vmatpush1.bf16.msra.mxu0 %v505
  %3495 = vmatprep.subr.bf16.mxu0 0
  %3496 = vmatpush1.bf16.msra.mxu0 0
  %3497 = vmatprep.subr.bf16.mxu0 0
  %3498 = vmatpush1.bf16.msra.mxu0 0
  %3499 = vmatprep.subr.bf16.mxu0 0
  %3500 = vmatpush1.bf16.msra.mxu0 0
  %3501 = vmatprep.subr.bf16.mxu0 0
  %3502 = vmatpush1.bf16.msra.mxu0 0
  %3503 = vmatprep.subr.bf16.mxu0 0
  %3504 = vmatpush1.bf16.msra.mxu0 0
  %3505 = vmatprep.subr.bf16.mxu0 0
  %3506 = vmatpush1.bf16.msra.mxu0 0
  %3507 = vmatprep.subr.bf16.mxu0 0
  %3508 = vmatpush1.bf16.msra.mxu0 0
  %3509 = vmatprep.subr.bf16.mxu0 0
  %3510 = vmatpush1.bf16.msra.mxu0 0
  %3511 = vmatprep.subr.bf16.mxu0 0
  %3512 = vmatpush1.bf16.msra.mxu0 0
  %3513 = vmatprep.subr.bf16.mxu0 0
  %3514 = vmatpush1.bf16.msra.mxu0 0
  %3515 = vmatprep.subr.bf16.mxu0 0
  %3516 = vmatpush1.bf16.msra.mxu0 0
  %3517 = vmatprep.subr.bf16.mxu0 0
  %3518 = vmatpush1.bf16.msra.mxu0 0
  %3519 = vmatprep.mubr.bf16.mxu0 0
  %3520 = vmatmul.mubr.bf16.gmra.mrb[0].mxu0 %v3485
  %v3521 = vpop.f32.mrb[0].mxu0
  %v3522 = vadd.f32 0.0, %v3521
  %v3523 = vpop.f32.mrb[0].mxu0
  %v3524 = vadd.f32 0.0, %v3523
  %v3525 = vpop.f32.mrb[0].mxu0
  %v3526 = vpop.f32.mrb[0].mxu0
  %3527 = vdwg.mxu0
  %s3528 = scalar_lea.vmem [#allocation2], 232
  %v3529 = vld [vmem:[%s3528] sm:$0xff]
  %v3530 = vadd.f32 %v3522, %v3529
  %v3531 = vadd.f32 %v3524, %v441
  %v3532 = vxor.u32 %v3530, 2147483648
  %v3533 = vmul.f32 %v3532, 1.442695
  %v3534 = vpow.pop %v3533
  %v3535 = vadd.f32 %v3534, 1.0
  %v3536 = vrcp.pop %v3535
  %v3537 = vmul.f32 1.0, %v3536
  %v3538 = vtanh.pop %v3530
  %v3539 = vmul.f32 %v3537, %v3443
  %3541 = vrot.lane.b32.xlu0 %v3538, 32
  %v3542 = vpop.permute.xlu0 %3541
  %v3544 = vmul.f32 %v3537, %v3542
  %3546 = vrot.lane.b32.xlu0 %v3544, 32
  %v3547 = vpop.permute.xlu0 %3546
  %v3549 = vadd.f32 %v3539, %v3547
  %v3550 = vtanh.pop %v3549
  %3552 = vrot.lane.b32.xlu0 %v3550, 32
  %v3553 = vpop.permute.xlu0 %3552
  %v3555 = vmul.f32 %v3537, %v3553
  %v3556 = vxor.u32 %v3531, 2147483648
  %v3557 = vmul.f32 %v3556, 1.442695
  %v3558 = vpow.pop %v3557
  %v3559 = vadd.f32 %v3558, 1.0
  %v3560 = vrcp.pop %v3559
  %v3561 = vmul.f32 1.0, %v3560
  %v3562 = vtanh.pop %v3531
  %v3563 = vmul.f32 %v3561, %v3467
  %3565 = vrot.lane.b32.xlu0 %v3562, 32
  %v3566 = vpop.permute.xlu0 %3565
  %v3568 = vmul.f32 %v3561, %v3566
  %3570 = vrot.lane.b32.xlu0 %v3568, 32
  %v3571 = vpop.permute.xlu0 %3570
  %v3573 = vadd.f32 %v3563, %v3571
  %v3574 = vtanh.pop %v3573
  %3576 = vrot.lane.b32.xlu0 %v3574, 32
  %v3577 = vpop.permute.xlu0 %3576
  %v3579 = vmul.f32 %v3561, %v3577
  %3581 = vrot.lane.b32.xlu0 %v3555, 64
  %v3582 = vpop.permute.xlu0 %3581
  %3585 = vrot.lane.b32.xlu0 %v3579, 96
  %v3586 = vpop.permute.xlu0 %3585
  %v3588 = vsel %vm472, %v3582, %v3586
  %v3589 = vpack.c.bf16 %v3588, %v3588
  %v3591 = vsel %vm515, %v3589, 0
  %3593 = vmatprep.subr.bf16.mxu0 %v500
  %3594 = vmatpush1.bf16.msra.mxu0 %v499
  %3595 = vmatprep.subr.bf16.mxu0 %v502
  %3596 = vmatpush1.bf16.msra.mxu0 %v501
  %3597 = vmatprep.subr.bf16.mxu0 %v504
  %3598 = vmatpush1.bf16.msra.mxu0 %v503
  %3599 = vmatprep.subr.bf16.mxu0 %v506
  %3600 = vmatpush1.bf16.msra.mxu0 %v505
  %3601 = vmatprep.subr.bf16.mxu0 0
  %3602 = vmatpush1.bf16.msra.mxu0 0
  %3603 = vmatprep.subr.bf16.mxu0 0
  %3604 = vmatpush1.bf16.msra.mxu0 0
  %3605 = vmatprep.subr.bf16.mxu0 0
  %3606 = vmatpush1.bf16.msra.mxu0 0
  %3607 = vmatprep.subr.bf16.mxu0 0
  %3608 = vmatpush1.bf16.msra.mxu0 0
  %3609 = vmatprep.subr.bf16.mxu0 0
  %3610 = vmatpush1.bf16.msra.mxu0 0
  %3611 = vmatprep.subr.bf16.mxu0 0
  %3612 = vmatpush1.bf16.msra.mxu0 0
  %3613 = vmatprep.subr.bf16.mxu0 0
  %3614 = vmatpush1.bf16.msra.mxu0 0
  %3615 = vmatprep.subr.bf16.mxu0 0
  %3616 = vmatpush1.bf16.msra.mxu0 0
  %3617 = vmatprep.subr.bf16.mxu0 0
  %3618 = vmatpush1.bf16.msra.mxu0 0
  %3619 = vmatprep.subr.bf16.mxu0 0
  %3620 = vmatpush1.bf16.msra.mxu0 0
  %3621 = vmatprep.subr.bf16.mxu0 0
  %3622 = vmatpush1.bf16.msra.mxu0 0
  %3623 = vmatprep.subr.bf16.mxu0 0
  %3624 = vmatpush1.bf16.msra.mxu0 0
  %3625 = vmatprep.mubr.bf16.mxu0 0
  %3626 = vmatmul.mubr.bf16.gmra.mrb[0].mxu0 %v3591
  %v3627 = vpop.f32.mrb[0].mxu0
  %v3628 = vpop.f32.mrb[0].mxu0
  %v3629 = vadd.f32 0.0, %v3628
  %v3630 = vpop.f32.mrb[0].mxu0
  %v3631 = vpop.f32.mrb[0].mxu0
  %3632 = vdwg.mxu0
  %v3633 = vadd.f32 %v3629, %v441
  %v3634 = vxor.u32 %v3633, 2147483648
  %v3635 = vmul.f32 %v3634, 1.442695
  %v3636 = vpow.pop %v3635
  %v3637 = vadd.f32 %v3636, 1.0
  %v3638 = vrcp.pop %v3637
  %v3639 = vmul.f32 1.0, %v3638
  %v3640 = vtanh.pop %v3633
  %v3641 = vmul.f32 %v3639, %v3573
  %3643 = vrot.lane.b32.xlu0 %v3640, 32
  %v3644 = vpop.permute.xlu0 %3643
  %v3646 = vmul.f32 %v3639, %v3644
  %3648 = vrot.lane.b32.xlu0 %v3646, 32
  %v3649 = vpop.permute.xlu0 %3648
  %v3651 = vadd.f32 %v3641, %v3649
  %v3652 = vtanh.pop %v3651
  %3654 = vrot.lane.b32.xlu0 %v3652, 32
  %v3655 = vpop.permute.xlu0 %3654
  %v3657 = vmul.f32 %v3639, %v3655
  %v3658 = vpack.c.bf16 %v3657, %v3657
  %v3659 = vld [vmem:[%s5] sm:$0xf]
  %v3660 = vld [vmem:[%s5 + $0x4] sm:$0xf]
  %v3661 = vld [vmem:[%s5 + $0x8] sm:$0xf]
  %v3662 = vld [vmem:[%s5 + $0xc] sm:$0xf]
  %v3663 = vld [vmem:[%s6] sm:$0x1]
  %v3665 = vlaneseq
  %v3666 = vshrl.u32 %v3665, 7
  %v3667 = vsub.s32 0, %v3666
  %v3668 = vrot.slane %v3663, %v3667
  %3671 = vrot.lane.b32.xlu0 %v3658, 64
  %v3672 = vpop.permute.xlu0 %3671
  %v3677 = vunpack.c.l.b16 %v3659
  %v3678 = vunpack.c.l.b16 %v3660
  %v3679 = vunpack.c.l.b16 %v3661
  %v3680 = vunpack.c.l.b16 %v3662
  %v3681 = vpack.c.b16 %v3678, %v3677
  %v3682 = vpack.c.b16 %v3680, %v3679
  %v3686 = vsel %vm472, %v3672, 0
  %3688 = vmatprep.subr.bf16.mxu0 0
  %3689 = vmatpush1.bf16.msra.mxu0 %v3681
  %3690 = vmatprep.subr.bf16.mxu0 0
  %3691 = vmatpush1.bf16.msra.mxu0 %v3682
  %3692 = vmatprep.subr.bf16.mxu0 0
  %3693 = vmatpush1.bf16.msra.mxu0 0
  %3694 = vmatprep.subr.bf16.mxu0 0
  %3695 = vmatpush1.bf16.msra.mxu0 0
  %3696 = vmatprep.subr.bf16.mxu0 0
  %3697 = vmatpush1.bf16.msra.mxu0 0
  %3698 = vmatprep.subr.bf16.mxu0 0
  %3699 = vmatpush1.bf16.msra.mxu0 0
  %3700 = vmatprep.subr.bf16.mxu0 0
  %3701 = vmatpush1.bf16.msra.mxu0 0
  %3702 = vmatprep.subr.bf16.mxu0 0
  %3703 = vmatpush1.bf16.msra.mxu0 0
  %3704 = vmatprep.subr.bf16.mxu0 0
  %3705 = vmatpush1.bf16.msra.mxu0 0
  %3706 = vmatprep.subr.bf16.mxu0 0
  %3707 = vmatpush1.bf16.msra.mxu0 0
  %3708 = vmatprep.subr.bf16.mxu0 0
  %3709 = vmatpush1.bf16.msra.mxu0 0
  %3710 = vmatprep.subr.bf16.mxu0 0
  %3711 = vmatpush1.bf16.msra.mxu0 0
  %3712 = vmatprep.subr.bf16.mxu0 0
  %3713 = vmatpush1.bf16.msra.mxu0 0
  %3714 = vmatprep.subr.bf16.mxu0 0
  %3715 = vmatpush1.bf16.msra.mxu0 0
  %3716 = vmatprep.subr.bf16.mxu0 0
  %3717 = vmatpush1.bf16.msra.mxu0 0
  %3718 = vmatprep.subr.bf16.mxu0 0
  %3719 = vmatpush1.bf16.msra.mxu0 0
  %3720 = vmatprep.mubr.bf16.mxu0 0
  %3721 = vmatmul.mubr.bf16.gmra.mrb[0].mxu0 %v3686
  %v3722 = vpop.f32.mrb[0].mxu0
  %v3723 = vadd.f32 %v3668, %v3722
  %v3724 = vpop.f32.mrb[0].mxu0
  %v3725 = vpop.f32.mrb[0].mxu0
  %v3726 = vpop.f32.mrb[0].mxu0
  %3727 = vdwg.mxu0
  %v3728 = vmax.f32 %v3723, 0.0
  %v3729 = vpack.c.bf16 %v3728, %v3728
  %v3730 = vld [vmem:[%s7] sm:$0xf]
  %v3731 = vld [vmem:[%s7 + $0x4] sm:$0xf]
  %v3732 = vld [vmem:[%s7 + $0x8] sm:$0xf]
  %v3733 = vld [vmem:[%s7 + $0xc] sm:$0xf]
  %v3734 = vld [vmem:[%s8] sm:$0x1]
  %v3736 = vlaneseq
  %v3737 = vshrl.u32 %v3736, 7
  %v3738 = vsub.s32 0, %v3737
  %v3739 = vrot.slane %v3734, %v3738
  %v3745 = vunpack.c.l.b16 %v3730
  %v3746 = vunpack.c.l.b16 %v3731
  %v3747 = vunpack.c.l.b16 %v3732
  %v3748 = vunpack.c.l.b16 %v3733
  %v3749 = vpack.c.b16 %v3746, %v3745
  %v3750 = vpack.c.b16 %v3748, %v3747
  %v3754 = vsel %vm472, %v3729, 0
  %3756 = vmatprep.subr.bf16.mxu0 0
  %3757 = vmatpush1.bf16.msra.mxu0 %v3749
  %3758 = vmatprep.subr.bf16.mxu0 0
  %3759 = vmatpush1.bf16.msra.mxu0 %v3750
  %3760 = vmatprep.subr.bf16.mxu0 0
  %3761 = vmatpush1.bf16.msra.mxu0 0
  %3762 = vmatprep.subr.bf16.mxu0 0
  %3763 = vmatpush1.bf16.msra.mxu0 0
  %3764 = vmatprep.subr.bf16.mxu0 0
  %3765 = vmatpush1.bf16.msra.mxu0 0
  %3766 = vmatprep.subr.bf16.mxu0 0
  %3767 = vmatpush1.bf16.msra.mxu0 0
  %3768 = vmatprep.subr.bf16.mxu0 0
  %3769 = vmatpush1.bf16.msra.mxu0 0
  %3770 = vmatprep.subr.bf16.mxu0 0
  %3771 = vmatpush1.bf16.msra.mxu0 0
  %3772 = vmatprep.subr.bf16.mxu0 0
  %3773 = vmatpush1.bf16.msra.mxu0 0
  %3774 = vmatprep.subr.bf16.mxu0 0
  %3775 = vmatpush1.bf16.msra.mxu0 0
  %3776 = vmatprep.subr.bf16.mxu0 0
  %3777 = vmatpush1.bf16.msra.mxu0 0
  %3778 = vmatprep.subr.bf16.mxu0 0
  %3779 = vmatpush1.bf16.msra.mxu0 0
  %3780 = vmatprep.subr.bf16.mxu0 0
  %3781 = vmatpush1.bf16.msra.mxu0 0
  %3782 = vmatprep.subr.bf16.mxu0 0
  %3783 = vmatpush1.bf16.msra.mxu0 0
  %3784 = vmatprep.subr.bf16.mxu0 0
  %3785 = vmatpush1.bf16.msra.mxu0 0
  %3786 = vmatprep.subr.bf16.mxu0 0
  %3787 = vmatpush1.bf16.msra.mxu0 0
  %3788 = vmatprep.mubr.bf16.mxu0 0
  %3789 = vmatmul.mubr.bf16.gmra.mrb[0].mxu0 %v3754
  %v3790 = vpop.f32.mrb[0].mxu0
  %v3791 = vadd.f32 %v3739, %v3790
  %v3792 = vpop.f32.mrb[0].mxu0
  %v3793 = vpop.f32.mrb[0].mxu0
  %v3794 = vpop.f32.mrb[0].mxu0
  %3795 = vdwg.mxu0
  %v3796 = vmax.f32 %v3791, 0.0
  %v3797 = vpack.c.bf16 %v3796, %v3796
  %v3798 = vld [vmem:[%s9] sm:$0xf]
  %v3799 = vld [vmem:[%s9 + $0x4] sm:$0xf]
  %v3800 = vld [vmem:[%s9 + $0x8] sm:$0xf]
  %v3801 = vld [vmem:[%s9 + $0xc] sm:$0xf]
  %v3802 = vld [vmem:[%s10] sm:$0x1]
  %v3804 = vlaneseq
  %v3805 = vshrl.u32 %v3804, 7
  %v3806 = vsub.s32 0, %v3805
  %v3807 = vrot.slane %v3802, %v3806
  %v3813 = vunpack.c.l.b16 %v3798
  %v3814 = vunpack.c.l.b16 %v3799
  %v3815 = vunpack.c.l.b16 %v3800
  %v3816 = vunpack.c.l.b16 %v3801
  %v3817 = vpack.c.b16 %v3814, %v3813
  %v3818 = vpack.c.b16 %v3816, %v3815
  %v3822 = vsel %vm472, %v3797, 0
  %3824 = vmatprep.subr.bf16.mxu0 0
  %3825 = vmatpush1.bf16.msra.mxu0 %v3817
  %3826 = vmatprep.subr.bf16.mxu0 0
  %3827 = vmatpush1.bf16.msra.mxu0 %v3818
  %3828 = vmatprep.subr.bf16.mxu0 0
  %3829 = vmatpush1.bf16.msra.mxu0 0
  %3830 = vmatprep.subr.bf16.mxu0 0
  %3831 = vmatpush1.bf16.msra.mxu0 0
  %3832 = vmatprep.subr.bf16.mxu0 0
  %3833 = vmatpush1.bf16.msra.mxu0 0
  %3834 = vmatprep.subr.bf16.mxu0 0
  %3835 = vmatpush1.bf16.msra.mxu0 0
  %3836 = vmatprep.subr.bf16.mxu0 0
  %3837 = vmatpush1.bf16.msra.mxu0 0
  %3838 = vmatprep.subr.bf16.mxu0 0
  %3839 = vmatpush1.bf16.msra.mxu0 0
  %3840 = vmatprep.subr.bf16.mxu0 0
  %3841 = vmatpush1.bf16.msra.mxu0 0
  %3842 = vmatprep.subr.bf16.mxu0 0
  %3843 = vmatpush1.bf16.msra.mxu0 0
  %3844 = vmatprep.subr.bf16.mxu0 0
  %3845 = vmatpush1.bf16.msra.mxu0 0
  %3846 = vmatprep.subr.bf16.mxu0 0
  %3847 = vmatpush1.bf16.msra.mxu0 0
  %3848 = vmatprep.subr.bf16.mxu0 0
  %3849 = vmatpush1.bf16.msra.mxu0 0
  %3850 = vmatprep.subr.bf16.mxu0 0
  %3851 = vmatpush1.bf16.msra.mxu0 0
  %3852 = vmatprep.subr.bf16.mxu0 0
  %3853 = vmatpush1.bf16.msra.mxu0 0
  %3854 = vmatprep.subr.bf16.mxu0 0
  %3855 = vmatpush1.bf16.msra.mxu0 0
  %3856 = vmatprep.mubr.bf16.mxu0 0
  %3857 = vmatmul.mubr.bf16.gmra.mrb[0].mxu0 %v3822
  %v3858 = vpop.f32.mrb[0].mxu0
  %v3859 = vadd.f32 %v3807, %v3858
  %v3860 = vpop.f32.mrb[0].mxu0
  %v3861 = vpop.f32.mrb[0].mxu0
  %v3862 = vpop.f32.mrb[0].mxu0
  %3863 = vdwg.mxu0
  %vm3864 = vcmask 80896
  %v3865 = vsel %vm3864, %v3859, -inf
  %3866 = vmax.xlane.f32.xlu0 %v3865
  %v3867 = vpop.xlane.xlu0 %3866
  %v3868 = vsub.f32 %v3859, %v3867
  %v3869 = vmul.f32 %v3868, 1.442695
  %v3870 = vpow.pop %v3869
  %v3871 = vsel %vm3864, %v3870, 0.0
  %3872 = vadd.xlane.f32.xlu0 %v3871
  %v3873 = vpop.xlane.xlu0 %3872
  %v3874 = vrcp.pop %v3873
  %v3875 = vmul.f32 %v3870, %v3874
  %3876 = vst.msk [vmem:[%s11] sm:$0xff] %vm3864, %v3875
  // Predicated region
  $region46: #{forward.1} parent=0 // pred_check
    _
  $region47: #{forward.1} parent=0 // pred_check_branch
    %3878 = sbr.rel (0) target = $region49
  $region48: #{forward.1} parent=0 // pred_region
    _
  $region49: #{forward.1} parent=0 // pred_fallthru
    _
  // Predicated region
  $region50: #{forward.1} parent=0 // pred_check
    _
  $region51: #{forward.1} parent=0 // pred_check_branch
    %3880 = sbr.rel (0) target = $region53
  $region52: #{forward.1} parent=0 // pred_region
    _
  $region53: #{forward.1} parent=0 // pred_fallthru
    _

</llo_original>
